<compile_context>
chip_gen: v6e
topology: v6e:2x2x1
jax: 0.10.0
libtpu: 0.0.40
codegen_flags: <defaults>
</compile_context>

<pallas_src>
import functools
import math

import jax
import jax.numpy as jnp
import numpy as np
from jax import lax
from jax.experimental import pallas as pl
from jax.experimental.pallas import tpu as pltpu


def transformer_block_kernel(x_ref, wq_ref, wk_ref, wv_ref, wo_ref, bo_ref,
                             w1_ref, b1_ref, w2_ref, b2_ref,
                             g1_ref, be1_ref, g2_ref, be2_ref,
                             o_ref, k_scr, v_scr, *, scale, num_heads, compute_dtype):
    s = pl.program_id(1)
    ts, d_model = o_ref.shape
    dk = d_model // num_heads

    # K/V for the full sequence: computed once per batch element (s == 0) as full-width
    # (S, D) @ (D, D) MXU matmuls, kept resident in VMEM scratch for all query tiles.
    @pl.when(s == 0)
    def _():
        x_all = x_ref[...].astype(compute_dtype)                       # (S, D)
        k_scr[...] = jnp.dot(x_all, wk_ref[...],
                             preferred_element_type=jnp.float32).astype(k_scr.dtype)
        v_scr[...] = jnp.dot(x_all, wv_ref[...],
                             preferred_element_type=jnp.float32).astype(v_scr.dtype)

    # Query tile sliced from the already-resident full-sequence block (no second x input).
    x_q = x_ref[pl.ds(pl.multiple_of(s * ts, ts), ts), :]              # (TS, D)

    # Fused full-width Q projection; 1/sqrt(dk) folded into q (scales TS*D, not TS*S elems).
    q = jnp.dot(x_q.astype(compute_dtype), wq_ref[...],
                preferred_element_type=jnp.float32) * scale            # (TS, D) f32
    k = k_scr[...]
    v = v_scr[...]

    # Per-head attention on static dk-wide lane slices (fully unrolled head loop).
    ctx_heads = []
    for h in range(num_heads):
        lo = h * dk
        q_h = q[:, lo:lo + dk].astype(compute_dtype)
        k_h = k[:, lo:lo + dk]
        v_h = v[:, lo:lo + dk]
        # scores = q_h @ k_h^T (contract last dims; no materialized transpose)
        scores = lax.dot_general(q_h, k_h, (((1,), (1,)), ((), ())),
                                 preferred_element_type=jnp.float32)   # (TS, S)
        scores = scores - jnp.max(scores, axis=-1, keepdims=True)
        p = jnp.exp(scores)
        p = p * pl.reciprocal(jnp.sum(p, axis=-1, keepdims=True), approx=True)
        ctx_heads.append(jnp.dot(p.astype(compute_dtype), v_h,
                                 preferred_element_type=jnp.float32))  # (TS, dk)
    ctx = jnp.concatenate(ctx_heads, axis=-1)                          # (TS, D)

    # Output projection as one full-width (TS, D) @ (D, D) matmul (no per-head accumulation).
    attn = jnp.dot(ctx.astype(compute_dtype), wo_ref[...],
                   preferred_element_type=jnp.float32) + bo_ref[...]

    # Residual + LayerNorm 1 (dropout = identity / eval mode; f32 statistics).
    h1 = x_q.astype(jnp.float32) + attn
    mu1 = jnp.mean(h1, axis=-1, keepdims=True)
    var1 = jnp.mean((h1 - mu1) ** 2, axis=-1, keepdims=True)
    h1 = (h1 - mu1) * lax.rsqrt(var1 + 1e-5) * g1_ref[...] + be1_ref[...]

    # FeedForward: Linear -> ReLU -> Linear (dropout = identity).
    f = jnp.dot(h1.astype(compute_dtype), w1_ref[...],
                preferred_element_type=jnp.float32) + b1_ref[...]
    f = jnp.maximum(f, 0.0)
    f = jnp.dot(f.astype(compute_dtype), w2_ref[...],
                preferred_element_type=jnp.float32) + b2_ref[...]

    # Residual + LayerNorm 2.
    h2 = h1 + f
    mu2 = jnp.mean(h2, axis=-1, keepdims=True)
    var2 = jnp.mean((h2 - mu2) ** 2, axis=-1, keepdims=True)
    out = (h2 - mu2) * lax.rsqrt(var2 + 1e-5) * g2_ref[...] + be2_ref[...]

    o_ref[...] = out.astype(o_ref.dtype)


def transformer_block(x, params, num_heads, *, ts=None, compute_dtype=jnp.float32):
    B, S, D = x.shape
    assert D % num_heads == 0
    d_ff = params["w1"].shape[1]
    if ts is None:
        # Big query tiles fill the MXU rows (>=128 on v5e, >=256 on v6e/v7x) and amortize
        # the ~0.35us per-grid-step overhead; bounded by S.
        ts = min(S, 256)
    assert S % ts == 0 and ts % 8 == 0, "ts must divide S and be a multiple of 8"

    scale = 1.0 / math.sqrt(D // num_heads)

    # Matmul weights in the compute dtype (use bf16 on v6e/v7x for ~2-4x MXU throughput and
    # half the weight DMA/VMEM); biases and LN params stay f32 for accurate statistics.
    wq = params["wq"].astype(compute_dtype)
    wk = params["wk"].astype(compute_dtype)
    wv = params["wv"].astype(compute_dtype)
    wo = params["wo"].astype(compute_dtype)
    w1 = params["w1"].astype(compute_dtype)
    w2 = params["w2"].astype(compute_dtype)

    # Generation-aware VMEM budget (v7x has only 64 MiB per TensorCore; leave headroom).
    try:
        cap = pltpu.get_tpu_info().vmem_capacity_bytes
        vmem_limit = min(100 << 20, (cap * 3) // 4)
    except Exception:
        vmem_limit = 48 << 20

    def wspec(shape):
        # Grid-invariant weights/params: single-buffer to halve their VMEM residency.
        zeros = (0,) * len(shape)
        return pl.BlockSpec(shape, lambda b, s, _z=zeros: _z,
                            pipeline_mode=pl.Buffered(1))

    grid = (B, S // ts)
    kernel = functools.partial(transformer_block_kernel, scale=scale,
                               num_heads=num_heads, compute_dtype=compute_dtype)

    return pl.pallas_call(
        kernel,
        out_shape=jax.ShapeDtypeStruct((B, S, D), x.dtype),
        grid=grid,
        in_specs=[
            pl.BlockSpec((None, S, D), lambda b, s: (b, 0, 0)),        # x: full sequence / batch
            wspec((D, D)), wspec((D, D)), wspec((D, D)), wspec((D, D)),  # Wq, Wk, Wv, Wo
            wspec((1, D)),                                             # bo
            wspec((D, d_ff)), wspec((1, d_ff)),                        # linear1
            wspec((d_ff, D)), wspec((1, D)),                           # linear2
            wspec((1, D)), wspec((1, D)),                              # ln1 gamma/beta
            wspec((1, D)), wspec((1, D)),                              # ln2 gamma/beta
        ],
        out_specs=pl.BlockSpec((None, ts, D), lambda b, s: (b, s, 0)),
        scratch_shapes=[pltpu.VMEM((S, D), compute_dtype),             # K (full sequence)
                        pltpu.VMEM((S, D), compute_dtype)],            # V (full sequence)
        compiler_params=pltpu.CompilerParams(
            # Batch is megacore-parallel; the s axis carries the K/V scratch -> arbitrary.
            dimension_semantics=("parallel", "arbitrary"),
            vmem_limit_bytes=vmem_limit),
    )(x, wq, wk, wv, wo, params["bo"], w1, params["b1"], w2, params["b2"],
      params["g1"], params["be1"], params["g2"], params["be2"])


def reference_block(x, p, num_heads):
    """Pure-JAX reference matching the PyTorch module (eval mode)."""
    B, S, D = x.shape
    dk = D // num_heads
    q = x @ p["wq"]
    k = x @ p["wk"]
    v = x @ p["wv"]
    reshape = lambda t: t.reshape(B, S, num_heads, dk).transpose(0, 2, 1, 3)
    q, k, v = reshape(q), reshape(k), reshape(v)
    scores = jnp.einsum("bhqd,bhkd->bhqk", q, k) / math.sqrt(dk)
    w = jax.nn.softmax(scores, axis=-1)
    attn = jnp.einsum("bhqk,bhkd->bhqd", w, v).transpose(0, 2, 1, 3).reshape(B, S, D)
    attn = attn @ p["wo"] + p["bo"]

    def ln(t, g, b):
        mu = jnp.mean(t, axis=-1, keepdims=True)
        var = jnp.mean((t - mu) ** 2, axis=-1, keepdims=True)
        return (t - mu) * lax.rsqrt(var + 1e-5) * g + b

    h1 = ln(x + attn, p["g1"], p["be1"])
    ff = jnp.maximum(h1 @ p["w1"] + p["b1"], 0.0) @ p["w2"] + p["b2"]
    return ln(h1 + ff, p["g2"], p["be2"])


if __name__ == "__main__":
    B, S, D, H, DFF = 2, 128, 128, 4, 256
    key = jax.random.PRNGKey(0)
    keys = jax.random.split(key, 10)

    params = {
        "wq": jax.random.normal(keys[0], (D, D), jnp.float32) * 0.05,
        "wk": jax.random.normal(keys[1], (D, D), jnp.float32) * 0.05,
        "wv": jax.random.normal(keys[2], (D, D), jnp.float32) * 0.05,
        "wo": jax.random.normal(keys[3], (D, D), jnp.float32) * 0.05,
        "bo": jax.random.normal(keys[4], (1, D), jnp.float32) * 0.05,
        "w1": jax.random.normal(keys[5], (D, DFF), jnp.float32) * 0.05,
        "b1": jax.random.normal(keys[6], (1, DFF), jnp.float32) * 0.05,
        "w2": jax.random.normal(keys[7], (DFF, D), jnp.float32) * 0.05,
        "b2": jax.random.normal(keys[8], (1, D), jnp.float32) * 0.05,
        "g1": jnp.ones((1, D), jnp.float32),
        "be1": jnp.zeros((1, D), jnp.float32),
        "g2": jnp.ones((1, D), jnp.float32),
        "be2": jnp.zeros((1, D), jnp.float32),
    }
    x = jax.random.normal(keys[9], (B, S, D), jnp.float32)

    out = jax.block_until_ready(transformer_block(x, params, num_heads=H))
    ref = jax.block_until_ready(reference_block(x, params, num_heads=H))

    assert out.shape == (B, S, D)
    # Tolerance accounts for the approximate (EUP) reciprocal in the softmax normalization.
    np.testing.assert_allclose(np.asarray(out), np.asarray(ref), atol=5e-3, rtol=5e-3)
    print("KERNEL_OK")
</pallas_src>

<mosaic_0001>
module attributes {stable_mosaic.version = 11 : i64} {
  func.func @transformer_block_kernel(%arg0: i32, %arg1: i32, %arg2: memref<1x128x128xf32, #tpu.memory_space<vmem>>, %arg3: memref<128x128xf32, #tpu.memory_space<vmem>>, %arg4: memref<128x128xf32, #tpu.memory_space<vmem>>, %arg5: memref<128x128xf32, #tpu.memory_space<vmem>>, %arg6: memref<128x128xf32, #tpu.memory_space<vmem>>, %arg7: memref<1x128xf32, #tpu.memory_space<vmem>>, %arg8: memref<128x256xf32, #tpu.memory_space<vmem>>, %arg9: memref<1x256xf32, #tpu.memory_space<vmem>>, %arg10: memref<256x128xf32, #tpu.memory_space<vmem>>, %arg11: memref<1x128xf32, #tpu.memory_space<vmem>>, %arg12: memref<1x128xf32, #tpu.memory_space<vmem>>, %arg13: memref<1x128xf32, #tpu.memory_space<vmem>>, %arg14: memref<1x128xf32, #tpu.memory_space<vmem>>, %arg15: memref<1x128xf32, #tpu.memory_space<vmem>>, %arg16: memref<1x128x128xf32, #tpu.memory_space<vmem>>, %arg17: memref<128x128xf32, #tpu.memory_space<vmem>>, %arg18: memref<128x128xf32, #tpu.memory_space<vmem>>) attributes {dimension_semantics = [#tpu.dimension_semantics<parallel>, #tpu.dimension_semantics<arbitrary>], iteration_bounds = array<i64: 2, 1>, scalar_prefetch = 0 : i64, scratch_operands = 2 : i64, tpu.core_type = #tpu.core_type<tc>, window_params = [{transform_indices = @transform_0, window_bounds = array<i64: 1, 128, 128>}, {pipeline_mode = #tpu.pipeline_mode<synchronous>, transform_indices = @transform_1, window_bounds = array<i64: 128, 128>}, {pipeline_mode = #tpu.pipeline_mode<synchronous>, transform_indices = @transform_2, window_bounds = array<i64: 128, 128>}, {pipeline_mode = #tpu.pipeline_mode<synchronous>, transform_indices = @transform_3, window_bounds = array<i64: 128, 128>}, {pipeline_mode = #tpu.pipeline_mode<synchronous>, transform_indices = @transform_4, window_bounds = array<i64: 128, 128>}, {pipeline_mode = #tpu.pipeline_mode<synchronous>, transform_indices = @transform_5, window_bounds = array<i64: 1, 128>}, {pipeline_mode = #tpu.pipeline_mode<synchronous>, transform_indices = @transform_6, window_bounds = array<i64: 128, 256>}, {pipeline_mode = #tpu.pipeline_mode<synchronous>, transform_indices = @transform_7, window_bounds = array<i64: 1, 256>}, {pipeline_mode = #tpu.pipeline_mode<synchronous>, transform_indices = @transform_8, window_bounds = array<i64: 256, 128>}, {pipeline_mode = #tpu.pipeline_mode<synchronous>, transform_indices = @transform_9, window_bounds = array<i64: 1, 128>}, {pipeline_mode = #tpu.pipeline_mode<synchronous>, transform_indices = @transform_10, window_bounds = array<i64: 1, 128>}, {pipeline_mode = #tpu.pipeline_mode<synchronous>, transform_indices = @transform_11, window_bounds = array<i64: 1, 128>}, {pipeline_mode = #tpu.pipeline_mode<synchronous>, transform_indices = @transform_12, window_bounds = array<i64: 1, 128>}, {pipeline_mode = #tpu.pipeline_mode<synchronous>, transform_indices = @transform_13, window_bounds = array<i64: 1, 128>}, {transform_indices = @transform_14, window_bounds = array<i64: 1, 128, 128>}]} {
    %c0_i32 = arith.constant 0 : i32
    %0 = arith.cmpi eq, %arg1, %c0_i32 : i32
    %1 = arith.extui %0 : i1 to i32
    %c0_i32_0 = arith.constant 0 : i32
    %2 = arith.cmpi ne, %1, %c0_i32_0 : i32
    scf.if %2 {
      %c0_62 = arith.constant 0 : index
      %c0_63 = arith.constant 0 : index
      %c0_64 = arith.constant 0 : index
      %145 = vector.load %arg2[%c0_62, %c0_63, %c0_64] : memref<1x128x128xf32, #tpu.memory_space<vmem>>, vector<1x128x128xf32>
      %146 = vector.shape_cast %145 : vector<1x128x128xf32> to vector<128x128xf32>
      %c0_65 = arith.constant 0 : index
      %c0_66 = arith.constant 0 : index
      %147 = vector.load %arg4[%c0_65, %c0_66] : memref<128x128xf32, #tpu.memory_space<vmem>>, vector<128x128xf32>
      %cst_67 = arith.constant dense<0.000000e+00> : vector<128x128xf32>
      %148 = tpu.matmul %146, %147, %cst_67 {dimension_numbers = #tpu.dot_dimension_numbers<[1], [0], [0], [1], [0, 0, 1, 1], [], []>} : vector<128x128xf32>, vector<128x128xf32>, vector<128x128xf32> -> vector<128x128xf32>
      %c0_68 = arith.constant 0 : index
      %c0_69 = arith.constant 0 : index
      %149 = vector.load %arg17[%c0_68, %c0_69] : memref<128x128xf32, #tpu.memory_space<vmem>>, vector<128x128xf32>
      tpu.vector_store %arg17[%c0_68, %c0_69], %148 {strides = array<i32>} : memref<128x128xf32, #tpu.memory_space<vmem>>, vector<128x128xf32>,
      %c0_70 = arith.constant 0 : index
      %c0_71 = arith.constant 0 : index
      %150 = vector.load %arg5[%c0_70, %c0_71] : memref<128x128xf32, #tpu.memory_space<vmem>>, vector<128x128xf32>
      %cst_72 = arith.constant dense<0.000000e+00> : vector<128x128xf32>
      %151 = tpu.matmul %146, %150, %cst_72 {dimension_numbers = #tpu.dot_dimension_numbers<[1], [0], [0], [1], [0, 0, 1, 1], [], []>} : vector<128x128xf32>, vector<128x128xf32>, vector<128x128xf32> -> vector<128x128xf32>
      %c0_73 = arith.constant 0 : index
      %c0_74 = arith.constant 0 : index
      %152 = vector.load %arg18[%c0_73, %c0_74] : memref<128x128xf32, #tpu.memory_space<vmem>>, vector<128x128xf32>
      tpu.vector_store %arg18[%c0_73, %c0_74], %151 {strides = array<i32>} : memref<128x128xf32, #tpu.memory_space<vmem>>, vector<128x128xf32>,
    } else {
    }
    %c128_i32 = arith.constant 128 : i32
    %3 = arith.muli %arg1, %c128_i32 : i32
    %4 = tpu.assume_multiple %3, 128 : i32
    %c0 = arith.constant 0 : index
    %5 = arith.index_cast %4 : i32 to index
    %c0_1 = arith.constant 0 : index
    %6 = vector.load %arg2[%c0, %5, %c0_1] : memref<1x128x128xf32, #tpu.memory_space<vmem>>, vector<1x128x128xf32>
    %7 = vector.shape_cast %6 : vector<1x128x128xf32> to vector<128x128xf32>
    %c0_2 = arith.constant 0 : index
    %c0_3 = arith.constant 0 : index
    %8 = vector.load %arg3[%c0_2, %c0_3] : memref<128x128xf32, #tpu.memory_space<vmem>>, vector<128x128xf32>
    %cst = arith.constant dense<0.000000e+00> : vector<128x128xf32>
    %9 = tpu.matmul %7, %8, %cst {dimension_numbers = #tpu.dot_dimension_numbers<[1], [0], [0], [1], [0, 0, 1, 1], [], []>} : vector<128x128xf32>, vector<128x128xf32>, vector<128x128xf32> -> vector<128x128xf32>
    %cst_4 = arith.constant 0.176776692 : f32
    %10 = vector.broadcast %cst_4 : f32 to vector<128x128xf32>
    %11 = arith.mulf %9, %10 : vector<128x128xf32>
    %c0_5 = arith.constant 0 : index
    %c0_6 = arith.constant 0 : index
    %12 = vector.load %arg17[%c0_5, %c0_6] : memref<128x128xf32, #tpu.memory_space<vmem>>, vector<128x128xf32>
    %c0_7 = arith.constant 0 : index
    %c0_8 = arith.constant 0 : index
    %13 = vector.load %arg18[%c0_7, %c0_8] : memref<128x128xf32, #tpu.memory_space<vmem>>, vector<128x128xf32>
    %14 = vector.extract_strided_slice %11 {offsets = [0, 0], sizes = [128, 32], strides = [1, 1]} : vector<128x128xf32> to vector<128x32xf32>
    %15 = vector.extract_strided_slice %12 {offsets = [0, 0], sizes = [128, 32], strides = [1, 1]} : vector<128x128xf32> to vector<128x32xf32>
    %16 = vector.extract_strided_slice %13 {offsets = [0, 0], sizes = [128, 32], strides = [1, 1]} : vector<128x128xf32> to vector<128x32xf32>
    %cst_9 = arith.constant dense<0.000000e+00> : vector<128x128xf32>
    %17 = tpu.matmul %14, %15, %cst_9 {dimension_numbers = #tpu.dot_dimension_numbers<[1], [1], [0], [0], [0, 0, 1, 0], [], []>} : vector<128x32xf32>, vector<128x32xf32>, vector<128x128xf32> -> vector<128x128xf32>
    %cst_10 = arith.constant dense<0xFF800000> : vector<128xf32>
    %18 = vector.multi_reduction <maximumf>, %17, %cst_10 [1] : vector<128x128xf32> to vector<128xf32>
    %19 = vector.shape_cast %18 : vector<128xf32> to vector<128x1xf32>
    %20 = vector.broadcast %19 : vector<128x1xf32> to vector<128x128xf32>
    %21 = arith.subf %17, %20 : vector<128x128xf32>
    %22 = math.exp %21 : vector<128x128xf32>
    %cst_11 = arith.constant dense<0.000000e+00> : vector<128xf32>
    %23 = vector.multi_reduction <add>, %22, %cst_11 [1] : vector<128x128xf32> to vector<128xf32>
    %24 = vector.shape_cast %23 : vector<128xf32> to vector<128x1xf32>
    %25 = tpu.reciprocal %24 {approx = true} : vector<128x1xf32> -> vector<128x1xf32>
    %26 = vector.broadcast %25 : vector<128x1xf32> to vector<128x128xf32>
    %27 = arith.mulf %22, %26 : vector<128x128xf32>
    %cst_12 = arith.constant dense<0.000000e+00> : vector<128x32xf32>
    %28 = tpu.matmul %27, %16, %cst_12 {dimension_numbers = #tpu.dot_dimension_numbers<[1], [0], [0], [1], [0, 0, 1, 1], [], []>} : vector<128x128xf32>, vector<128x32xf32>, vector<128x32xf32> -> vector<128x32xf32>
    %29 = vector.extract_strided_slice %11 {offsets = [0, 32], sizes = [128, 32], strides = [1, 1]} : vector<128x128xf32> to vector<128x32xf32>
    %30 = vector.extract_strided_slice %12 {offsets = [0, 32], sizes = [128, 32], strides = [1, 1]} : vector<128x128xf32> to vector<128x32xf32>
    %31 = vector.extract_strided_slice %13 {offsets = [0, 32], sizes = [128, 32], strides = [1, 1]} : vector<128x128xf32> to vector<128x32xf32>
    %cst_13 = arith.constant dense<0.000000e+00> : vector<128x128xf32>
    %32 = tpu.matmul %29, %30, %cst_13 {dimension_numbers = #tpu.dot_dimension_numbers<[1], [1], [0], [0], [0, 0, 1, 0], [], []>} : vector<128x32xf32>, vector<128x32xf32>, vector<128x128xf32> -> vector<128x128xf32>
    %cst_14 = arith.constant dense<0xFF800000> : vector<128xf32>
    %33 = vector.multi_reduction <maximumf>, %32, %cst_14 [1] : vector<128x128xf32> to vector<128xf32>
    %34 = vector.shape_cast %33 : vector<128xf32> to vector<128x1xf32>
    %35 = vector.broadcast %34 : vector<128x1xf32> to vector<128x128xf32>
    %36 = arith.subf %32, %35 : vector<128x128xf32>
    %37 = math.exp %36 : vector<128x128xf32>
    %cst_15 = arith.constant dense<0.000000e+00> : vector<128xf32>
    %38 = vector.multi_reduction <add>, %37, %cst_15 [1] : vector<128x128xf32> to vector<128xf32>
    %39 = vector.shape_cast %38 : vector<128xf32> to vector<128x1xf32>
    %40 = tpu.reciprocal %39 {approx = true} : vector<128x1xf32> -> vector<128x1xf32>
    %41 = vector.broadcast %40 : vector<128x1xf32> to vector<128x128xf32>
    %42 = arith.mulf %37, %41 : vector<128x128xf32>
    %cst_16 = arith.constant dense<0.000000e+00> : vector<128x32xf32>
    %43 = tpu.matmul %42, %31, %cst_16 {dimension_numbers = #tpu.dot_dimension_numbers<[1], [0], [0], [1], [0, 0, 1, 1], [], []>} : vector<128x128xf32>, vector<128x32xf32>, vector<128x32xf32> -> vector<128x32xf32>
    %44 = vector.extract_strided_slice %11 {offsets = [0, 64], sizes = [128, 32], strides = [1, 1]} : vector<128x128xf32> to vector<128x32xf32>
    %45 = vector.extract_strided_slice %12 {offsets = [0, 64], sizes = [128, 32], strides = [1, 1]} : vector<128x128xf32> to vector<128x32xf32>
    %46 = vector.extract_strided_slice %13 {offsets = [0, 64], sizes = [128, 32], strides = [1, 1]} : vector<128x128xf32> to vector<128x32xf32>
    %cst_17 = arith.constant dense<0.000000e+00> : vector<128x128xf32>
    %47 = tpu.matmul %44, %45, %cst_17 {dimension_numbers = #tpu.dot_dimension_numbers<[1], [1], [0], [0], [0, 0, 1, 0], [], []>} : vector<128x32xf32>, vector<128x32xf32>, vector<128x128xf32> -> vector<128x128xf32>
    %cst_18 = arith.constant dense<0xFF800000> : vector<128xf32>
    %48 = vector.multi_reduction <maximumf>, %47, %cst_18 [1] : vector<128x128xf32> to vector<128xf32>
    %49 = vector.shape_cast %48 : vector<128xf32> to vector<128x1xf32>
    %50 = vector.broadcast %49 : vector<128x1xf32> to vector<128x128xf32>
    %51 = arith.subf %47, %50 : vector<128x128xf32>
    %52 = math.exp %51 : vector<128x128xf32>
    %cst_19 = arith.constant dense<0.000000e+00> : vector<128xf32>
    %53 = vector.multi_reduction <add>, %52, %cst_19 [1] : vector<128x128xf32> to vector<128xf32>
    %54 = vector.shape_cast %53 : vector<128xf32> to vector<128x1xf32>
    %55 = tpu.reciprocal %54 {approx = true} : vector<128x1xf32> -> vector<128x1xf32>
    %56 = vector.broadcast %55 : vector<128x1xf32> to vector<128x128xf32>
    %57 = arith.mulf %52, %56 : vector<128x128xf32>
    %cst_20 = arith.constant dense<0.000000e+00> : vector<128x32xf32>
    %58 = tpu.matmul %57, %46, %cst_20 {dimension_numbers = #tpu.dot_dimension_numbers<[1], [0], [0], [1], [0, 0, 1, 1], [], []>} : vector<128x128xf32>, vector<128x32xf32>, vector<128x32xf32> -> vector<128x32xf32>
    %59 = vector.extract_strided_slice %11 {offsets = [0, 96], sizes = [128, 32], strides = [1, 1]} : vector<128x128xf32> to vector<128x32xf32>
    %60 = vector.extract_strided_slice %12 {offsets = [0, 96], sizes = [128, 32], strides = [1, 1]} : vector<128x128xf32> to vector<128x32xf32>
    %61 = vector.extract_strided_slice %13 {offsets = [0, 96], sizes = [128, 32], strides = [1, 1]} : vector<128x128xf32> to vector<128x32xf32>
    %cst_21 = arith.constant dense<0.000000e+00> : vector<128x128xf32>
    %62 = tpu.matmul %59, %60, %cst_21 {dimension_numbers = #tpu.dot_dimension_numbers<[1], [1], [0], [0], [0, 0, 1, 0], [], []>} : vector<128x32xf32>, vector<128x32xf32>, vector<128x128xf32> -> vector<128x128xf32>
    %cst_22 = arith.constant dense<0xFF800000> : vector<128xf32>
    %63 = vector.multi_reduction <maximumf>, %62, %cst_22 [1] : vector<128x128xf32> to vector<128xf32>
    %64 = vector.shape_cast %63 : vector<128xf32> to vector<128x1xf32>
    %65 = vector.broadcast %64 : vector<128x1xf32> to vector<128x128xf32>
    %66 = arith.subf %62, %65 : vector<128x128xf32>
    %67 = math.exp %66 : vector<128x128xf32>
    %cst_23 = arith.constant dense<0.000000e+00> : vector<128xf32>
    %68 = vector.multi_reduction <add>, %67, %cst_23 [1] : vector<128x128xf32> to vector<128xf32>
    %69 = vector.shape_cast %68 : vector<128xf32> to vector<128x1xf32>
    %70 = tpu.reciprocal %69 {approx = true} : vector<128x1xf32> -> vector<128x1xf32>
    %71 = vector.broadcast %70 : vector<128x1xf32> to vector<128x128xf32>
    %72 = arith.mulf %67, %71 : vector<128x128xf32>
    %cst_24 = arith.constant dense<0.000000e+00> : vector<128x32xf32>
    %73 = tpu.matmul %72, %61, %cst_24 {dimension_numbers = #tpu.dot_dimension_numbers<[1], [0], [0], [1], [0, 0, 1, 1], [], []>} : vector<128x128xf32>, vector<128x32xf32>, vector<128x32xf32> -> vector<128x32xf32>
    %74 = tpu.concatenate %28, %43, %58, %73 in 1 : vector<128x32xf32>, vector<128x32xf32>, vector<128x32xf32>, vector<128x32xf32> -> vector<128x128xf32>
    %c0_25 = arith.constant 0 : index
    %c0_26 = arith.constant 0 : index
    %75 = vector.load %arg6[%c0_25, %c0_26] : memref<128x128xf32, #tpu.memory_space<vmem>>, vector<128x128xf32>
    %cst_27 = arith.constant dense<0.000000e+00> : vector<128x128xf32>
    %76 = tpu.matmul %74, %75, %cst_27 {dimension_numbers = #tpu.dot_dimension_numbers<[1], [0], [0], [1], [0, 0, 1, 1], [], []>} : vector<128x128xf32>, vector<128x128xf32>, vector<128x128xf32> -> vector<128x128xf32>
    %c0_28 = arith.constant 0 : index
    %c0_29 = arith.constant 0 : index
    %77 = vector.load %arg7[%c0_28, %c0_29] : memref<1x128xf32, #tpu.memory_space<vmem>>, vector<1x128xf32>
    %78 = vector.broadcast %77 : vector<1x128xf32> to vector<128x128xf32>
    %79 = arith.addf %76, %78 : vector<128x128xf32>
    %80 = arith.addf %7, %79 : vector<128x128xf32>
    %cst_30 = arith.constant dense<0.000000e+00> : vector<128xf32>
    %81 = vector.multi_reduction <add>, %80, %cst_30 [1] : vector<128x128xf32> to vector<128xf32>
    %82 = vector.shape_cast %81 : vector<128xf32> to vector<128x1xf32>
    %cst_31 = arith.constant 1.280000e+02 : f32
    %83 = vector.broadcast %cst_31 : f32 to vector<128x1xf32>
    %84 = arith.divf %82, %83 : vector<128x1xf32>
    %85 = vector.broadcast %84 : vector<128x1xf32> to vector<128x128xf32>
    %86 = arith.subf %80, %85 : vector<128x128xf32>
    %87 = arith.mulf %86, %86 : vector<128x128xf32>
    %cst_32 = arith.constant dense<0.000000e+00> : vector<128xf32>
    %88 = vector.multi_reduction <add>, %87, %cst_32 [1] : vector<128x128xf32> to vector<128xf32>
    %89 = vector.shape_cast %88 : vector<128xf32> to vector<128x1xf32>
    %cst_33 = arith.constant 1.280000e+02 : f32
    %90 = vector.broadcast %cst_33 : f32 to vector<128x1xf32>
    %91 = arith.divf %89, %90 : vector<128x1xf32>
    %92 = vector.broadcast %84 : vector<128x1xf32> to vector<128x128xf32>
    %93 = arith.subf %80, %92 : vector<128x128xf32>
    %cst_34 = arith.constant 9.99999974E-6 : f32
    %94 = vector.broadcast %cst_34 : f32 to vector<128x1xf32>
    %95 = arith.addf %91, %94 : vector<128x1xf32>
    %96 = math.rsqrt %95 : vector<128x1xf32>
    %97 = vector.broadcast %96 : vector<128x1xf32> to vector<128x128xf32>
    %98 = arith.mulf %93, %97 : vector<128x128xf32>
    %c0_35 = arith.constant 0 : index
    %c0_36 = arith.constant 0 : index
    %99 = vector.load %arg12[%c0_35, %c0_36] : memref<1x128xf32, #tpu.memory_space<vmem>>, vector<1x128xf32>
    %100 = vector.broadcast %99 : vector<1x128xf32> to vector<128x128xf32>
    %101 = arith.mulf %98, %100 : vector<128x128xf32>
    %c0_37 = arith.constant 0 : index
    %c0_38 = arith.constant 0 : index
    %102 = vector.load %arg13[%c0_37, %c0_38] : memref<1x128xf32, #tpu.memory_space<vmem>>, vector<1x128xf32>
    %103 = vector.broadcast %102 : vector<1x128xf32> to vector<128x128xf32>
    %104 = arith.addf %101, %103 : vector<128x128xf32>
    %c0_39 = arith.constant 0 : index
    %c0_40 = arith.constant 0 : index
    %105 = vector.load %arg8[%c0_39, %c0_40] : memref<128x256xf32, #tpu.memory_space<vmem>>, vector<128x256xf32>
    %cst_41 = arith.constant dense<0.000000e+00> : vector<128x256xf32>
    %106 = tpu.matmul %104, %105, %cst_41 {dimension_numbers = #tpu.dot_dimension_numbers<[1], [0], [0], [1], [0, 0, 1, 1], [], []>} : vector<128x128xf32>, vector<128x256xf32>, vector<128x256xf32> -> vector<128x256xf32>
    %c0_42 = arith.constant 0 : index
    %c0_43 = arith.constant 0 : index
    %107 = vector.load %arg9[%c0_42, %c0_43] : memref<1x256xf32, #tpu.memory_space<vmem>>, vector<1x256xf32>
    %108 = vector.broadcast %107 : vector<1x256xf32> to vector<128x256xf32>
    %109 = arith.addf %106, %108 : vector<128x256xf32>
    %cst_44 = arith.constant 0.000000e+00 : f32
    %110 = vector.broadcast %cst_44 : f32 to vector<128x256xf32>
    %111 = arith.maximumf %109, %110 : vector<128x256xf32>
    %c0_45 = arith.constant 0 : index
    %c0_46 = arith.constant 0 : index
    %112 = vector.load %arg10[%c0_45, %c0_46] : memref<256x128xf32, #tpu.memory_space<vmem>>, vector<256x128xf32>
    %cst_47 = arith.constant dense<0.000000e+00> : vector<128x128xf32>
    %113 = tpu.matmul %111, %112, %cst_47 {dimension_numbers = #tpu.dot_dimension_numbers<[1], [0], [0], [1], [0, 0, 1, 1], [], []>} : vector<128x256xf32>, vector<256x128xf32>, vector<128x128xf32> -> vector<128x128xf32>
    %c0_48 = arith.constant 0 : index
    %c0_49 = arith.constant 0 : index
    %114 = vector.load %arg11[%c0_48, %c0_49] : memref<1x128xf32, #tpu.memory_space<vmem>>, vector<1x128xf32>
    %115 = vector.broadcast %114 : vector<1x128xf32> to vector<128x128xf32>
    %116 = arith.addf %113, %115 : vector<128x128xf32>
    %117 = arith.addf %104, %116 : vector<128x128xf32>
    %cst_50 = arith.constant dense<0.000000e+00> : vector<128xf32>
    %118 = vector.multi_reduction <add>, %117, %cst_50 [1] : vector<128x128xf32> to vector<128xf32>
    %119 = vector.shape_cast %118 : vector<128xf32> to vector<128x1xf32>
    %cst_51 = arith.constant 1.280000e+02 : f32
    %120 = vector.broadcast %cst_51 : f32 to vector<128x1xf32>
    %121 = arith.divf %119, %120 : vector<128x1xf32>
    %122 = vector.broadcast %121 : vector<128x1xf32> to vector<128x128xf32>
    %123 = arith.subf %117, %122 : vector<128x128xf32>
    %124 = arith.mulf %123, %123 : vector<128x128xf32>
    %cst_52 = arith.constant dense<0.000000e+00> : vector<128xf32>
    %125 = vector.multi_reduction <add>, %124, %cst_52 [1] : vector<128x128xf32> to vector<128xf32>
    %126 = vector.shape_cast %125 : vector<128xf32> to vector<128x1xf32>
    %cst_53 = arith.constant 1.280000e+02 : f32
    %127 = vector.broadcast %cst_53 : f32 to vector<128x1xf32>
    %128 = arith.divf %126, %127 : vector<128x1xf32>
    %129 = vector.broadcast %121 : vector<128x1xf32> to vector<128x128xf32>
    %130 = arith.subf %117, %129 : vector<128x128xf32>
    %cst_54 = arith.constant 9.99999974E-6 : f32
    %131 = vector.broadcast %cst_54 : f32 to vector<128x1xf32>
    %132 = arith.addf %128, %131 : vector<128x1xf32>
    %133 = math.rsqrt %132 : vector<128x1xf32>
    %134 = vector.broadcast %133 : vector<128x1xf32> to vector<128x128xf32>
    %135 = arith.mulf %130, %134 : vector<128x128xf32>
    %c0_55 = arith.constant 0 : index
    %c0_56 = arith.constant 0 : index
    %136 = vector.load %arg14[%c0_55, %c0_56] : memref<1x128xf32, #tpu.memory_space<vmem>>, vector<1x128xf32>
    %137 = vector.broadcast %136 : vector<1x128xf32> to vector<128x128xf32>
    %138 = arith.mulf %135, %137 : vector<128x128xf32>
    %c0_57 = arith.constant 0 : index
    %c0_58 = arith.constant 0 : index
    %139 = vector.load %arg15[%c0_57, %c0_58] : memref<1x128xf32, #tpu.memory_space<vmem>>, vector<1x128xf32>
    %140 = vector.broadcast %139 : vector<1x128xf32> to vector<128x128xf32>
    %141 = arith.addf %138, %140 : vector<128x128xf32>
    %c0_59 = arith.constant 0 : index
    %c0_60 = arith.constant 0 : index
    %c0_61 = arith.constant 0 : index
    %142 = vector.load %arg16[%c0_59, %c0_60, %c0_61] : memref<1x128x128xf32, #tpu.memory_space<vmem>>, vector<1x128x128xf32>
    %143 = vector.shape_cast %142 : vector<1x128x128xf32> to vector<128x128xf32>
    %144 = vector.shape_cast %141 : vector<128x128xf32> to vector<1x128x128xf32>
    tpu.vector_store %arg16[%c0_59, %c0_60, %c0_61], %144 {strides = array<i32>} : memref<1x128x128xf32, #tpu.memory_space<vmem>>, vector<1x128x128xf32>,
    return
  }
  func.func @transform_0(%arg0: i32, %arg1: i32) -> (i32, i32, i32) {
    %c0_i32 = arith.constant 0 : i32
    %c0_i32_0 = arith.constant 0 : i32
    %c0_i32_1 = arith.constant 0 : i32
    return %arg0, %c0_i32, %c0_i32_0 : i32, i32, i32
  }
  func.func @transform_1(%arg0: i32, %arg1: i32) -> (i32, i32) {
    %c0_i32 = arith.constant 0 : i32
    %c0_i32_0 = arith.constant 0 : i32
    %c0_i32_1 = arith.constant 0 : i32
    return %c0_i32, %c0_i32_0 : i32, i32
  }
  func.func @transform_2(%arg0: i32, %arg1: i32) -> (i32, i32) {
    %c0_i32 = arith.constant 0 : i32
    %c0_i32_0 = arith.constant 0 : i32
    %c0_i32_1 = arith.constant 0 : i32
    return %c0_i32, %c0_i32_0 : i32, i32
  }
  func.func @transform_3(%arg0: i32, %arg1: i32) -> (i32, i32) {
    %c0_i32 = arith.constant 0 : i32
    %c0_i32_0 = arith.constant 0 : i32
    %c0_i32_1 = arith.constant 0 : i32
    return %c0_i32, %c0_i32_0 : i32, i32
  }
  func.func @transform_4(%arg0: i32, %arg1: i32) -> (i32, i32) {
    %c0_i32 = arith.constant 0 : i32
    %c0_i32_0 = arith.constant 0 : i32
    %c0_i32_1 = arith.constant 0 : i32
    return %c0_i32, %c0_i32_0 : i32, i32
  }
  func.func @transform_5(%arg0: i32, %arg1: i32) -> (i32, i32) {
    %c0_i32 = arith.constant 0 : i32
    %c0_i32_0 = arith.constant 0 : i32
    %c0_i32_1 = arith.constant 0 : i32
    return %c0_i32, %c0_i32_0 : i32, i32
  }
  func.func @transform_6(%arg0: i32, %arg1: i32) -> (i32, i32) {
    %c0_i32 = arith.constant 0 : i32
    %c0_i32_0 = arith.constant 0 : i32
    %c0_i32_1 = arith.constant 0 : i32
    return %c0_i32, %c0_i32_0 : i32, i32
  }
  func.func @transform_7(%arg0: i32, %arg1: i32) -> (i32, i32) {
    %c0_i32 = arith.constant 0 : i32
    %c0_i32_0 = arith.constant 0 : i32
    %c0_i32_1 = arith.constant 0 : i32
    return %c0_i32, %c0_i32_0 : i32, i32
  }
  func.func @transform_8(%arg0: i32, %arg1: i32) -> (i32, i32) {
    %c0_i32 = arith.constant 0 : i32
    %c0_i32_0 = arith.constant 0 : i32
    %c0_i32_1 = arith.constant 0 : i32
    return %c0_i32, %c0_i32_0 : i32, i32
  }
  func.func @transform_9(%arg0: i32, %arg1: i32) -> (i32, i32) {
    %c0_i32 = arith.constant 0 : i32
    %c0_i32_0 = arith.constant 0 : i32
    %c0_i32_1 = arith.constant 0 : i32
    return %c0_i32, %c0_i32_0 : i32, i32
  }
  func.func @transform_10(%arg0: i32, %arg1: i32) -> (i32, i32) {
    %c0_i32 = arith.constant 0 : i32
    %c0_i32_0 = arith.constant 0 : i32
    %c0_i32_1 = arith.constant 0 : i32
    return %c0_i32, %c0_i32_0 : i32, i32
  }
  func.func @transform_11(%arg0: i32, %arg1: i32) -> (i32, i32) {
    %c0_i32 = arith.constant 0 : i32
    %c0_i32_0 = arith.constant 0 : i32
    %c0_i32_1 = arith.constant 0 : i32
    return %c0_i32, %c0_i32_0 : i32, i32
  }
  func.func @transform_12(%arg0: i32, %arg1: i32) -> (i32, i32) {
    %c0_i32 = arith.constant 0 : i32
    %c0_i32_0 = arith.constant 0 : i32
    %c0_i32_1 = arith.constant 0 : i32
    return %c0_i32, %c0_i32_0 : i32, i32
  }
  func.func @transform_13(%arg0: i32, %arg1: i32) -> (i32, i32) {
    %c0_i32 = arith.constant 0 : i32
    %c0_i32_0 = arith.constant 0 : i32
    %c0_i32_1 = arith.constant 0 : i32
    return %c0_i32, %c0_i32_0 : i32, i32
  }
  func.func @transform_14(%arg0: i32, %arg1: i32) -> (i32, i32, i32) {
    %c0_i32 = arith.constant 0 : i32
    %c0_i32_0 = arith.constant 0 : i32
    return %arg0, %arg1, %c0_i32 : i32, i32, i32
  }
}

</mosaic_0001>

<llo_original>
// kernel: tpu_custom_call.1
$region0: #{tpu_custom_call.1}
  #allocation0 [shape = 'u32[]', space=smem, size = 0x4, offset = 0x4, fixed_abs, tag = 'smem constant byte address 0x4 - core index']
  #allocation1 [shape = 'u32[144,128]{1,0:T(1,128)}', space=vmem, size = 0x12000, scoped, tag = 'internal scratch']
  #allocation2 [shape = 'f32[128,128]{1,0:T(8,128)}', space=vmem, size = 0x10000, scoped, tag = 'scratch operand']
  #allocation3 [shape = 'f32[128,128]{1,0:T(8,128)}', space=vmem, size = 0x10000, scoped, tag = 'scratch operand']
  %s0 = inlined_call_operand.hbm [shape: f32[2,128,128], index: 0, kind: input, shape index: {}]
  %s1 = inlined_call_operand.hbm [shape: f32[128,128], index: 1, kind: input, shape index: {}]
  %s2 = inlined_call_operand.hbm [shape: f32[128,128], index: 2, kind: input, shape index: {}]
  %s3 = inlined_call_operand.hbm [shape: f32[128,128], index: 3, kind: input, shape index: {}]
  %s4 = inlined_call_operand.hbm [shape: f32[128,128], index: 4, kind: input, shape index: {}]
  %s5 = inlined_call_operand.vmem [shape: f32[1,128], index: 5, kind: input, shape index: {}]
  %s6 = inlined_call_operand.hbm [shape: f32[128,256], index: 6, kind: input, shape index: {}]
  %s7 = inlined_call_operand.vmem [shape: f32[1,256], index: 7, kind: input, shape index: {}]
  %s8 = inlined_call_operand.hbm [shape: f32[256,128], index: 8, kind: input, shape index: {}]
  %s9 = inlined_call_operand.vmem [shape: f32[1,128], index: 9, kind: input, shape index: {}]
  %s10 = inlined_call_operand.vmem [shape: f32[1,128], index: 10, kind: input, shape index: {}]
  %s11 = inlined_call_operand.vmem [shape: f32[1,128], index: 11, kind: input, shape index: {}]
  %s12 = inlined_call_operand.vmem [shape: f32[1,128], index: 12, kind: input, shape index: {}]
  %s13 = inlined_call_operand.vmem [shape: f32[1,128], index: 13, kind: input, shape index: {}]
  %s14 = inlined_call_operand.hbm [shape: f32[2,128,128], index: 14, kind: output, shape index: {}]
  %s15 = sld [smem:[#allocation0]]
  $region121: #{tpu_custom_call.1} parent=0
    _
  %s17 = ssub.s32 1, %s15
  %s18 = scalar_select 0, %s17, %s15
  $region1: #{tpu_custom_call.1} parent=0
    #allocation4 [shape = 'u8[131072]{0}', space=vmem, size = 0x20000, scoped, tag = 'input window, operand 0']
    #allocation5 [shape = 's32[2]{0}', space=sflag, size = 0x8, scoped, tag = 'scoped memory for tpu_custom_call.1']
    #allocation6 [shape = 's32[2]{0}', space=sflag, size = 0x8, scoped, tag = 'scoped memory for tpu_custom_call.1']
    #allocation7 [shape = 'u8[65536]{0}', space=vmem, size = 0x10000, scoped, tag = 'input window, operand 1, single buffered']
    #allocation8 [shape = 's32[1]{0}', space=sflag, size = 0x4, scoped, tag = 'scoped memory for tpu_custom_call.1']
    #allocation9 [shape = 'u8[65536]{0}', space=vmem, size = 0x10000, scoped, tag = 'input window, operand 2, single buffered']
    #allocation10 [shape = 'u8[65536]{0}', space=vmem, size = 0x10000, scoped, tag = 'input window, operand 3, single buffered']
    #allocation11 [shape = 's32[1]{0}', space=sflag, size = 0x4, scoped, tag = 'scoped memory for tpu_custom_call.1']
    #allocation12 [shape = 'u8[65536]{0}', space=vmem, size = 0x10000, scoped, tag = 'input window, operand 4, single buffered']
    #allocation13 [shape = 'u8[131072]{0}', space=vmem, size = 0x20000, scoped, tag = 'input window, operand 6, single buffered']
    #allocation14 [shape = 's32[1]{0}', space=sflag, size = 0x4, scoped, tag = 'scoped memory for tpu_custom_call.1']
    #allocation15 [shape = 'u8[131072]{0}', space=vmem, size = 0x20000, scoped, tag = 'input window, operand 8, single buffered']
    #allocation16 [shape = 'u8[131072]{0}', space=vmem, size = 0x20000, scoped, tag = 'output window, operand 0']
    %19 = vsyncpa [#allocation5], 0
    %s20 = scalar_lea.sflag [#allocation5], 1
    %21 = vsyncpa %s20, 0
    %22 = vsyncpa [#allocation8], 0
    %23 = vsyncpa [#allocation11], 0
    %24 = vsyncpa [#allocation14], 0
    %25 = vsyncpa [#allocation6], 0
    %s26 = scalar_lea.sflag [#allocation6], 1
    %27 = vsyncpa %s26, 0
    loop: start=0, step=1, limit=4
    $region2: #{tpu_custom_call.1} parent=1 // loop_pre_header
      _
    $region3: #{tpu_custom_call.1} parent=1 // loop_header
      %s29 = sphi 0, %s33
      %p30 = scmp.ge.s32.totalorder %s29, 4
      %s36 = sphi 0, %s48
      %s37 = sphi 0, %s44
      %s38 = sphi 0, %s36
      %s39 = sphi 0, %s37
      %s40 = sphi 0, %s38
      %s41 = sphi 0, %s39
      %s51 = sphi 0, %s53
      %s54 = sphi 0, %s51
      %s55 = sphi 0, %s54
      %s71 = sphi 0, %s55
      %s75 = sphi 0, %s75
      %s77 = sphi 0, %s75
      %s78 = sphi 0, %s77
      %s92 = sphi 0, %s78
      %s96 = sphi 0, %s96
      %s98 = sphi 0, %s96
      %s99 = sphi 0, %s98
      %s113 = sphi 0, %s99
      %s117 = sphi 0, %s117
      %s119 = sphi 0, %s117
      %s120 = sphi 0, %s119
      %s134 = sphi 0, %s120
      %s138 = sphi 0, %s138
      %s140 = sphi 0, %s138
      %s141 = sphi 0, %s140
      %s155 = sphi 0, %s141
      %s159 = sphi 0, %s159
      %s161 = sphi 0, %s159
      %s162 = sphi 0, %s161
      %s176 = sphi 0, %s162
      %s180 = sphi 0, %s180
      %s182 = sphi 0, %s180
      %s183 = sphi 0, %s182
      %s197 = sphi 0, %s183
      %s201 = sphi 0, %s201
      %s203 = sphi 0, %s201
      %s204 = sphi 0, %s203
      %s218 = sphi 0, %s204
      %s222 = sphi 0, %s222
      %s224 = sphi 0, %s222
      %s225 = sphi 0, %s224
      %s239 = sphi 0, %s225
      %s243 = sphi 0, %s243
      %s245 = sphi 0, %s243
      %s246 = sphi 0, %s245
      %s260 = sphi 0, %s246
      %s264 = sphi 0, %s264
      %s266 = sphi 0, %s264
      %s267 = sphi 0, %s266
      %s281 = sphi 0, %s267
      %s285 = sphi 0, %s285
      %s287 = sphi 0, %s285
      %s288 = sphi 0, %s287
      %s302 = sphi 0, %s288
      %s306 = sphi 0, %s306
      %s308 = sphi 0, %s306
      %s309 = sphi 0, %s308
      %s323 = sphi 0, %s309
      %s327 = sphi 0, %s327
      %s329 = sphi 0, %s327
      %s330 = sphi 0, %s329
      %s344 = sphi 0, %s330
      %s352 = sphi 0, %s354
      %s355 = sphi 0, %s352
      %s356 = sphi 0, %s355
      %s372 = sphi 0, %s356
    $region4: #{tpu_custom_call.1} parent=1 // loop_header_branch
      %32 = sbr.rel (%p30) target = $region8
    $region5: #{tpu_custom_call.1} parent=1 // loop_body
      %s34 = ssub.s32 %s29, 1
      %s35 = ssub.s32 %s29, 2
      %s42 = sadd.s32 1, %s37
      %p43 = scmp.ge.s32.totalorder %s42, 1
      %s44 = scalar_select %p43, 0, %s42
      %s45 = sadd.s32 1, %s36
      %s46 = scalar_select %p43, %s45, %s36
      %p47 = scmp.ge.s32.totalorder %s46, 2
      %s48 = scalar_select %p47, 0, %s46
      %s49 = ssub.s32 %s36, %s48
      %p50 = scmp.eq.s32.totalorder %s49, 0
      %s52 = sadd.s32 %s51, 1
      %s53 = scalar_select %p50, %s51, %s52
      %p56 = pneg %p50
      %p57 = scmp.eq.s32.totalorder %s29, 1
      %p58 = por %p56, %p57
      %p59 = scmp.ne.s32.totalorder %s51, %s54
      %p60 = scmp.eq.s32.totalorder %s29, 0
      %p61 = por %p59, %p60
      %p62 = scmp.ne.s32.totalorder %s51, %s54
      %p63 = scmp.eq.s32.totalorder %s34, 1
      %p64 = por %p62, %p63
      %p65 = scmp.ne.s32.totalorder %s54, %s55
      %p66 = scmp.eq.s32.totalorder %s34, 0
      %p67 = por %p65, %p66
      %p68 = scmp.ne.s32.totalorder %s54, %s55
      %p69 = scmp.eq.s32.totalorder %s35, 1
      %p70 = por %p68, %p69
      %p72 = scmp.ne.s32.totalorder %s55, %s71
      %p73 = scmp.eq.s32.totalorder %s35, 0
      %p74 = por %p72, %p73
      %s76 = sadd.s32 %s75, 1
      %p79 = scmp.eq.s32.totalorder %s29, 1
      %p80 = scmp.ne.s32.totalorder %s75, %s77
      %p81 = scmp.eq.s32.totalorder %s29, 0
      %p82 = por %p80, %p81
      %p83 = scmp.ne.s32.totalorder %s75, %s77
      %p84 = scmp.eq.s32.totalorder %s34, 1
      %p85 = por %p83, %p84
      %p86 = scmp.ne.s32.totalorder %s77, %s78
      %p87 = scmp.eq.s32.totalorder %s34, 0
      %p88 = por %p86, %p87
      %p89 = scmp.ne.s32.totalorder %s77, %s78
      %p90 = scmp.eq.s32.totalorder %s35, 1
      %p91 = por %p89, %p90
      %p93 = scmp.ne.s32.totalorder %s78, %s92
      %p94 = scmp.eq.s32.totalorder %s35, 0
      %p95 = por %p93, %p94
      %s97 = sadd.s32 %s96, 1
      %p100 = scmp.eq.s32.totalorder %s29, 1
      %p101 = scmp.ne.s32.totalorder %s96, %s98
      %p102 = scmp.eq.s32.totalorder %s29, 0
      %p103 = por %p101, %p102
      %p104 = scmp.ne.s32.totalorder %s96, %s98
      %p105 = scmp.eq.s32.totalorder %s34, 1
      %p106 = por %p104, %p105
      %p107 = scmp.ne.s32.totalorder %s98, %s99
      %p108 = scmp.eq.s32.totalorder %s34, 0
      %p109 = por %p107, %p108
      %p110 = scmp.ne.s32.totalorder %s98, %s99
      %p111 = scmp.eq.s32.totalorder %s35, 1
      %p112 = por %p110, %p111
      %p114 = scmp.ne.s32.totalorder %s99, %s113
      %p115 = scmp.eq.s32.totalorder %s35, 0
      %p116 = por %p114, %p115
      %s118 = sadd.s32 %s117, 1
      %p121 = scmp.eq.s32.totalorder %s29, 1
      %p122 = scmp.ne.s32.totalorder %s117, %s119
      %p123 = scmp.eq.s32.totalorder %s29, 0
      %p124 = por %p122, %p123
      %p125 = scmp.ne.s32.totalorder %s117, %s119
      %p126 = scmp.eq.s32.totalorder %s34, 1
      %p127 = por %p125, %p126
      %p128 = scmp.ne.s32.totalorder %s119, %s120
      %p129 = scmp.eq.s32.totalorder %s34, 0
      %p130 = por %p128, %p129
      %p131 = scmp.ne.s32.totalorder %s119, %s120
      %p132 = scmp.eq.s32.totalorder %s35, 1
      %p133 = por %p131, %p132
      %p135 = scmp.ne.s32.totalorder %s120, %s134
      %p136 = scmp.eq.s32.totalorder %s35, 0
      %p137 = por %p135, %p136
      %s139 = sadd.s32 %s138, 1
      %p142 = scmp.eq.s32.totalorder %s29, 1
      %p143 = scmp.ne.s32.totalorder %s138, %s140
      %p144 = scmp.eq.s32.totalorder %s29, 0
      %p145 = por %p143, %p144
      %p146 = scmp.ne.s32.totalorder %s138, %s140
      %p147 = scmp.eq.s32.totalorder %s34, 1
      %p148 = por %p146, %p147
      %p149 = scmp.ne.s32.totalorder %s140, %s141
      %p150 = scmp.eq.s32.totalorder %s34, 0
      %p151 = por %p149, %p150
      %p152 = scmp.ne.s32.totalorder %s140, %s141
      %p153 = scmp.eq.s32.totalorder %s35, 1
      %p154 = por %p152, %p153
      %p156 = scmp.ne.s32.totalorder %s141, %s155
      %p157 = scmp.eq.s32.totalorder %s35, 0
      %p158 = por %p156, %p157
      %s160 = sadd.s32 %s159, 1
      %p163 = scmp.eq.s32.totalorder %s29, 1
      %p164 = scmp.ne.s32.totalorder %s159, %s161
      %p165 = scmp.eq.s32.totalorder %s29, 0
      %p166 = por %p164, %p165
      %p167 = scmp.ne.s32.totalorder %s159, %s161
      %p168 = scmp.eq.s32.totalorder %s34, 1
      %p169 = por %p167, %p168
      %p170 = scmp.ne.s32.totalorder %s161, %s162
      %p171 = scmp.eq.s32.totalorder %s34, 0
      %p172 = por %p170, %p171
      %p173 = scmp.ne.s32.totalorder %s161, %s162
      %p174 = scmp.eq.s32.totalorder %s35, 1
      %p175 = por %p173, %p174
      %p177 = scmp.ne.s32.totalorder %s162, %s176
      %p178 = scmp.eq.s32.totalorder %s35, 0
      %p179 = por %p177, %p178
      %s181 = sadd.s32 %s180, 1
      %p184 = scmp.eq.s32.totalorder %s29, 1
      %p185 = scmp.ne.s32.totalorder %s180, %s182
      %p186 = scmp.eq.s32.totalorder %s29, 0
      %p187 = por %p185, %p186
      %p188 = scmp.ne.s32.totalorder %s180, %s182
      %p189 = scmp.eq.s32.totalorder %s34, 1
      %p190 = por %p188, %p189
      %p191 = scmp.ne.s32.totalorder %s182, %s183
      %p192 = scmp.eq.s32.totalorder %s34, 0
      %p193 = por %p191, %p192
      %p194 = scmp.ne.s32.totalorder %s182, %s183
      %p195 = scmp.eq.s32.totalorder %s35, 1
      %p196 = por %p194, %p195
      %p198 = scmp.ne.s32.totalorder %s183, %s197
      %p199 = scmp.eq.s32.totalorder %s35, 0
      %p200 = por %p198, %p199
      %s202 = sadd.s32 %s201, 1
      %p205 = scmp.eq.s32.totalorder %s29, 1
      %p206 = scmp.ne.s32.totalorder %s201, %s203
      %p207 = scmp.eq.s32.totalorder %s29, 0
      %p208 = por %p206, %p207
      %p209 = scmp.ne.s32.totalorder %s201, %s203
      %p210 = scmp.eq.s32.totalorder %s34, 1
      %p211 = por %p209, %p210
      %p212 = scmp.ne.s32.totalorder %s203, %s204
      %p213 = scmp.eq.s32.totalorder %s34, 0
      %p214 = por %p212, %p213
      %p215 = scmp.ne.s32.totalorder %s203, %s204
      %p216 = scmp.eq.s32.totalorder %s35, 1
      %p217 = por %p215, %p216
      %p219 = scmp.ne.s32.totalorder %s204, %s218
      %p220 = scmp.eq.s32.totalorder %s35, 0
      %p221 = por %p219, %p220
      %s223 = sadd.s32 %s222, 1
      %p226 = scmp.eq.s32.totalorder %s29, 1
      %p227 = scmp.ne.s32.totalorder %s222, %s224
      %p228 = scmp.eq.s32.totalorder %s29, 0
      %p229 = por %p227, %p228
      %p230 = scmp.ne.s32.totalorder %s222, %s224
      %p231 = scmp.eq.s32.totalorder %s34, 1
      %p232 = por %p230, %p231
      %p233 = scmp.ne.s32.totalorder %s224, %s225
      %p234 = scmp.eq.s32.totalorder %s34, 0
      %p235 = por %p233, %p234
      %p236 = scmp.ne.s32.totalorder %s224, %s225
      %p237 = scmp.eq.s32.totalorder %s35, 1
      %p238 = por %p236, %p237
      %p240 = scmp.ne.s32.totalorder %s225, %s239
      %p241 = scmp.eq.s32.totalorder %s35, 0
      %p242 = por %p240, %p241
      %s244 = sadd.s32 %s243, 1
      %p247 = scmp.eq.s32.totalorder %s29, 1
      %p248 = scmp.ne.s32.totalorder %s243, %s245
      %p249 = scmp.eq.s32.totalorder %s29, 0
      %p250 = por %p248, %p249
      %p251 = scmp.ne.s32.totalorder %s243, %s245
      %p252 = scmp.eq.s32.totalorder %s34, 1
      %p253 = por %p251, %p252
      %p254 = scmp.ne.s32.totalorder %s245, %s246
      %p255 = scmp.eq.s32.totalorder %s34, 0
      %p256 = por %p254, %p255
      %p257 = scmp.ne.s32.totalorder %s245, %s246
      %p258 = scmp.eq.s32.totalorder %s35, 1
      %p259 = por %p257, %p258
      %p261 = scmp.ne.s32.totalorder %s246, %s260
      %p262 = scmp.eq.s32.totalorder %s35, 0
      %p263 = por %p261, %p262
      %s265 = sadd.s32 %s264, 1
      %p268 = scmp.eq.s32.totalorder %s29, 1
      %p269 = scmp.ne.s32.totalorder %s264, %s266
      %p270 = scmp.eq.s32.totalorder %s29, 0
      %p271 = por %p269, %p270
      %p272 = scmp.ne.s32.totalorder %s264, %s266
      %p273 = scmp.eq.s32.totalorder %s34, 1
      %p274 = por %p272, %p273
      %p275 = scmp.ne.s32.totalorder %s266, %s267
      %p276 = scmp.eq.s32.totalorder %s34, 0
      %p277 = por %p275, %p276
      %p278 = scmp.ne.s32.totalorder %s266, %s267
      %p279 = scmp.eq.s32.totalorder %s35, 1
      %p280 = por %p278, %p279
      %p282 = scmp.ne.s32.totalorder %s267, %s281
      %p283 = scmp.eq.s32.totalorder %s35, 0
      %p284 = por %p282, %p283
      %s286 = sadd.s32 %s285, 1
      %p289 = scmp.eq.s32.totalorder %s29, 1
      %p290 = scmp.ne.s32.totalorder %s285, %s287
      %p291 = scmp.eq.s32.totalorder %s29, 0
      %p292 = por %p290, %p291
      %p293 = scmp.ne.s32.totalorder %s285, %s287
      %p294 = scmp.eq.s32.totalorder %s34, 1
      %p295 = por %p293, %p294
      %p296 = scmp.ne.s32.totalorder %s287, %s288
      %p297 = scmp.eq.s32.totalorder %s34, 0
      %p298 = por %p296, %p297
      %p299 = scmp.ne.s32.totalorder %s287, %s288
      %p300 = scmp.eq.s32.totalorder %s35, 1
      %p301 = por %p299, %p300
      %p303 = scmp.ne.s32.totalorder %s288, %s302
      %p304 = scmp.eq.s32.totalorder %s35, 0
      %p305 = por %p303, %p304
      %s307 = sadd.s32 %s306, 1
      %p310 = scmp.eq.s32.totalorder %s29, 1
      %p311 = scmp.ne.s32.totalorder %s306, %s308
      %p312 = scmp.eq.s32.totalorder %s29, 0
      %p313 = por %p311, %p312
      %p314 = scmp.ne.s32.totalorder %s306, %s308
      %p315 = scmp.eq.s32.totalorder %s34, 1
      %p316 = por %p314, %p315
      %p317 = scmp.ne.s32.totalorder %s308, %s309
      %p318 = scmp.eq.s32.totalorder %s34, 0
      %p319 = por %p317, %p318
      %p320 = scmp.ne.s32.totalorder %s308, %s309
      %p321 = scmp.eq.s32.totalorder %s35, 1
      %p322 = por %p320, %p321
      %p324 = scmp.ne.s32.totalorder %s309, %s323
      %p325 = scmp.eq.s32.totalorder %s35, 0
      %p326 = por %p324, %p325
      %s328 = sadd.s32 %s327, 1
      %p331 = scmp.eq.s32.totalorder %s29, 1
      %p332 = scmp.ne.s32.totalorder %s327, %s329
      %p333 = scmp.eq.s32.totalorder %s29, 0
      %p334 = por %p332, %p333
      %p335 = scmp.ne.s32.totalorder %s327, %s329
      %p336 = scmp.eq.s32.totalorder %s34, 1
      %p337 = por %p335, %p336
      %p338 = scmp.ne.s32.totalorder %s329, %s330
      %p339 = scmp.eq.s32.totalorder %s34, 0
      %p340 = por %p338, %p339
      %p341 = scmp.ne.s32.totalorder %s329, %s330
      %p342 = scmp.eq.s32.totalorder %s35, 1
      %p343 = por %p341, %p342
      %p345 = scmp.ne.s32.totalorder %s330, %s344
      %p346 = scmp.eq.s32.totalorder %s35, 0
      %p347 = por %p345, %p346
      %s348 = ssub.s32 %s36, %s48
      %s349 = ssub.s32 %s37, %s44
      %s350 = sor.u32 %s348, %s349
      %p351 = scmp.eq.s32.totalorder %s350, 0
      %s353 = sadd.s32 %s352, 1
      %s354 = scalar_select %p351, %s352, %s353
      %p357 = pneg %p351
      %p358 = scmp.eq.s32.totalorder %s29, 1
      %p359 = por %p357, %p358
      %p360 = scmp.ne.s32.totalorder %s352, %s355
      %p361 = scmp.eq.s32.totalorder %s29, 0
      %p362 = por %p360, %p361
      %p363 = scmp.ne.s32.totalorder %s352, %s355
      %p364 = scmp.eq.s32.totalorder %s34, 1
      %p365 = por %p363, %p364
      %p366 = scmp.ne.s32.totalorder %s355, %s356
      %p367 = scmp.eq.s32.totalorder %s34, 0
      %p368 = por %p366, %p367
      %p369 = scmp.ne.s32.totalorder %s355, %s356
      %p370 = scmp.eq.s32.totalorder %s35, 1
      %p371 = por %p369, %p370
      %p373 = scmp.ne.s32.totalorder %s356, %s372
      %p374 = scmp.eq.s32.totalorder %s35, 0
      %p375 = por %p373, %p374
      %p376 = scmp.le.s32.totalorder 1, %s29
      %p377 = scmp.lt.s32.totalorder %s29, 3
      %p378 = pnand %p376, %p377
      %p379 = pneg %p378
      // Predicated region
      $region9: #{tpu_custom_call.1} parent=5 // pred_check
        _
      $region10: #{tpu_custom_call.1} parent=5 // pred_check_branch
        %381 = sbr.rel (%p378) target = $region12
      $region11: #{tpu_custom_call.1} parent=5 // pred_region
        %s382 = ssub.s32 %s29, 1
        // Predicated region
        $region13: #{tpu_custom_call.1} parent=11 // pred_check
          %p383 = pneg %p88
        $region14: #{tpu_custom_call.1} parent=11 // pred_check_branch
          %385 = sbr.rel (%p383) target = $region16
        $region15: #{tpu_custom_call.1} parent=11 // pred_region
          %s387 = ssub.s32 2048, 2048
          %388 = vsyncadd [#allocation8], %s387
          %s389 = sshll.u32 [#allocation7], 4
          %s390 = int_to_ptr.vmem [resolvable:$true] %s389
          %395 = dma.hbm_to_vmem [thread:$0]  %s1, 2048, %s390, [#allocation8], 128, 128, 8
        $region16: #{tpu_custom_call.1} parent=11 // pred_fallthru
          _
        // Predicated region
        $region17: #{tpu_custom_call.1} parent=11 // pred_check
          %p396 = pneg %p109
        $region18: #{tpu_custom_call.1} parent=11 // pred_check_branch
          %398 = sbr.rel (%p396) target = $region20
        $region19: #{tpu_custom_call.1} parent=11 // pred_region
          %s400 = ssub.s32 2048, 2048
          %401 = vsyncadd [#allocation8], %s400
          %s402 = sshll.u32 [#allocation9], 4
          %s403 = int_to_ptr.vmem [resolvable:$true] %s402
          %408 = dma.hbm_to_vmem [thread:$0]  %s2, 2048, %s403, [#allocation8], 128, 128, 8
        $region20: #{tpu_custom_call.1} parent=11 // pred_fallthru
          _
        // Predicated region
        $region21: #{tpu_custom_call.1} parent=11 // pred_check
          %p409 = pneg %p130
        $region22: #{tpu_custom_call.1} parent=11 // pred_check_branch
          %411 = sbr.rel (%p409) target = $region24
        $region23: #{tpu_custom_call.1} parent=11 // pred_region
          %s413 = ssub.s32 2048, 2048
          %414 = vsyncadd [#allocation11], %s413
          %s415 = sshll.u32 [#allocation10], 4
          %s416 = int_to_ptr.vmem [resolvable:$true] %s415
          %421 = dma.hbm_to_vmem [thread:$0]  %s3, 2048, %s416, [#allocation11], 128, 128, 8
        $region24: #{tpu_custom_call.1} parent=11 // pred_fallthru
          _
        // Predicated region
        $region25: #{tpu_custom_call.1} parent=11 // pred_check
          %p422 = pneg %p151
        $region26: #{tpu_custom_call.1} parent=11 // pred_check_branch
          %424 = sbr.rel (%p422) target = $region28
        $region27: #{tpu_custom_call.1} parent=11 // pred_region
          %s426 = ssub.s32 2048, 2048
          %427 = vsyncadd [#allocation11], %s426
          %s428 = sshll.u32 [#allocation12], 4
          %s429 = int_to_ptr.vmem [resolvable:$true] %s428
          %434 = dma.hbm_to_vmem [thread:$0]  %s4, 2048, %s429, [#allocation11], 128, 128, 8
        $region28: #{tpu_custom_call.1} parent=11 // pred_fallthru
          _
        // Predicated region
        $region29: #{tpu_custom_call.1} parent=11 // pred_check
          %p435 = pneg %p172
        $region30: #{tpu_custom_call.1} parent=11 // pred_check_branch
          %437 = sbr.rel (%p435) target = $region32
        $region31: #{tpu_custom_call.1} parent=11 // pred_region
          _
        $region32: #{tpu_custom_call.1} parent=11 // pred_fallthru
          _
        // Predicated region
        $region33: #{tpu_custom_call.1} parent=11 // pred_check
          %p438 = pneg %p193
        $region34: #{tpu_custom_call.1} parent=11 // pred_check_branch
          %440 = sbr.rel (%p438) target = $region36
        $region35: #{tpu_custom_call.1} parent=11 // pred_region
          %s442 = ssub.s32 4096, 4096
          %443 = vsyncadd [#allocation14], %s442
          %s444 = sshll.u32 [#allocation13], 4
          %s445 = int_to_ptr.vmem [resolvable:$true] %s444
          %450 = dma.hbm_to_vmem [thread:$0]  %s6, 4096, %s445, [#allocation14], 256, 256, 16
        $region36: #{tpu_custom_call.1} parent=11 // pred_fallthru
          _
        // Predicated region
        $region37: #{tpu_custom_call.1} parent=11 // pred_check
          %p451 = pneg %p214
        $region38: #{tpu_custom_call.1} parent=11 // pred_check_branch
          %453 = sbr.rel (%p451) target = $region40
        $region39: #{tpu_custom_call.1} parent=11 // pred_region
          _
        $region40: #{tpu_custom_call.1} parent=11 // pred_fallthru
          _
        // Predicated region
        $region41: #{tpu_custom_call.1} parent=11 // pred_check
          %p454 = pneg %p235
        $region42: #{tpu_custom_call.1} parent=11 // pred_check_branch
          %456 = sbr.rel (%p454) target = $region44
        $region43: #{tpu_custom_call.1} parent=11 // pred_region
          %s458 = ssub.s32 4096, 4096
          %459 = vsyncadd [#allocation14], %s458
          %s460 = sshll.u32 [#allocation15], 4
          %s461 = int_to_ptr.vmem [resolvable:$true] %s460
          %466 = dma.hbm_to_vmem [thread:$0]  %s8, 4096, %s461, [#allocation14], 128, 128, 8
        $region44: #{tpu_custom_call.1} parent=11 // pred_fallthru
          _
        // Predicated region
        $region45: #{tpu_custom_call.1} parent=11 // pred_check
          %p467 = pneg %p256
        $region46: #{tpu_custom_call.1} parent=11 // pred_check_branch
          %469 = sbr.rel (%p467) target = $region48
        $region47: #{tpu_custom_call.1} parent=11 // pred_region
          _
        $region48: #{tpu_custom_call.1} parent=11 // pred_fallthru
          _
        // Predicated region
        $region49: #{tpu_custom_call.1} parent=11 // pred_check
          %p470 = pneg %p277
        $region50: #{tpu_custom_call.1} parent=11 // pred_check_branch
          %472 = sbr.rel (%p470) target = $region52
        $region51: #{tpu_custom_call.1} parent=11 // pred_region
          _
        $region52: #{tpu_custom_call.1} parent=11 // pred_fallthru
          _
        // Predicated region
        $region53: #{tpu_custom_call.1} parent=11 // pred_check
          %p473 = pneg %p298
        $region54: #{tpu_custom_call.1} parent=11 // pred_check_branch
          %475 = sbr.rel (%p473) target = $region56
        $region55: #{tpu_custom_call.1} parent=11 // pred_region
          _
        $region56: #{tpu_custom_call.1} parent=11 // pred_fallthru
          _
        // Predicated region
        $region57: #{tpu_custom_call.1} parent=11 // pred_check
          %p476 = pneg %p319
        $region58: #{tpu_custom_call.1} parent=11 // pred_check_branch
          %478 = sbr.rel (%p476) target = $region60
        $region59: #{tpu_custom_call.1} parent=11 // pred_region
          _
        $region60: #{tpu_custom_call.1} parent=11 // pred_fallthru
          _
        // Predicated region
        $region61: #{tpu_custom_call.1} parent=11 // pred_check
          %p479 = pneg %p340
        $region62: #{tpu_custom_call.1} parent=11 // pred_check_branch
          %481 = sbr.rel (%p479) target = $region64
        $region63: #{tpu_custom_call.1} parent=11 // pred_region
          _
        $region64: #{tpu_custom_call.1} parent=11 // pred_fallthru
          _
      $region12: #{tpu_custom_call.1} parent=5 // pred_fallthru
        _
      %p482 = scmp.lt.s32.totalorder %s29, 2
      // Predicated region
      $region65: #{tpu_custom_call.1} parent=5 // pred_check
        %p483 = pneg %p482
      $region66: #{tpu_custom_call.1} parent=5 // pred_check_branch
        %485 = sbr.rel (%p483) target = $region68
      $region67: #{tpu_custom_call.1} parent=5 // pred_region
        // Predicated region
        $region69: #{tpu_custom_call.1} parent=67 // pred_check
          %p486 = pneg %p61
        $region70: #{tpu_custom_call.1} parent=67 // pred_check_branch
          %488 = sbr.rel (%p486) target = $region72
        $region71: #{tpu_custom_call.1} parent=67 // pred_region
          %s489 = sand.u32 %s51, 1
          %s490 = scalar_lea.sflag [#allocation5], %s489
          %s491 = sand.u32 %s51, 1
          %s492 = smul.addr %s491, 128
          %s493 = scalar_lea.vmem [#allocation4], %s492
          %s495 = ssub.s32 2048, 2048
          %496 = vsyncadd %s490, %s495
          %s497 = smul.addr %s36, 16
          %s498 = smul.addr %s497, 128
          %s499 = scalar_lea.hbm %s0, %s498
          %s500 = sshll.u32 %s493, 4
          %s501 = int_to_ptr.vmem [resolvable:$true] %s500
          %506 = dma.hbm_to_vmem [thread:$0]  %s499, 2048, %s501, %s490, 128, 128, 8
        $region72: #{tpu_custom_call.1} parent=67 // pred_fallthru
          _
      $region68: #{tpu_custom_call.1} parent=5 // pred_fallthru
        _
      %p507 = scmp.le.s32.totalorder 1, %s29
      %p508 = scmp.lt.s32.totalorder %s29, 3
      %p509 = pnand %p507, %p508
      %p510 = pneg %p509
      // Predicated region
      $region73: #{tpu_custom_call.1} parent=5 // pred_check
        _
      $region74: #{tpu_custom_call.1} parent=5 // pred_check_branch
        %512 = sbr.rel (%p509) target = $region76
      $region75: #{tpu_custom_call.1} parent=5 // pred_region
        %s513 = ssub.s32 %s29, 1
        %s514 = sand.u32 %s54, 1
        %s515 = scalar_lea.sflag [#allocation5], %s514
        %s516 = sand.u32 %s54, 1
        %s517 = smul.addr %s516, 128
        %s518 = scalar_lea.vmem [#allocation4], %s517
        // Predicated region
        $region77: #{tpu_custom_call.1} parent=75 // pred_check
          %p519 = pneg %p67
        $region78: #{tpu_custom_call.1} parent=75 // pred_check_branch
          %521 = sbr.rel (%p519) target = $region80
        $region79: #{tpu_custom_call.1} parent=75 // pred_region
          %522 = dma.done %s515, 2048
        $region80: #{tpu_custom_call.1} parent=75 // pred_fallthru
          _
        // Predicated region
        $region81: #{tpu_custom_call.1} parent=75 // pred_check
          %p523 = pneg %p88
        $region82: #{tpu_custom_call.1} parent=75 // pred_check_branch
          %525 = sbr.rel (%p523) target = $region84
        $region83: #{tpu_custom_call.1} parent=75 // pred_region
          %526 = dma.done [#allocation8], 2048
        $region84: #{tpu_custom_call.1} parent=75 // pred_fallthru
          _
        // Predicated region
        $region85: #{tpu_custom_call.1} parent=75 // pred_check
          %p527 = pneg %p109
        $region86: #{tpu_custom_call.1} parent=75 // pred_check_branch
          %529 = sbr.rel (%p527) target = $region88
        $region87: #{tpu_custom_call.1} parent=75 // pred_region
          %530 = dma.done [#allocation8], 2048
        $region88: #{tpu_custom_call.1} parent=75 // pred_fallthru
          _
        // Predicated region
        $region89: #{tpu_custom_call.1} parent=75 // pred_check
          %p531 = pneg %p130
        $region90: #{tpu_custom_call.1} parent=75 // pred_check_branch
          %533 = sbr.rel (%p531) target = $region92
        $region91: #{tpu_custom_call.1} parent=75 // pred_region
          %534 = dma.done [#allocation11], 2048
        $region92: #{tpu_custom_call.1} parent=75 // pred_fallthru
          _
        // Predicated region
        $region93: #{tpu_custom_call.1} parent=75 // pred_check
          %p535 = pneg %p151
        $region94: #{tpu_custom_call.1} parent=75 // pred_check_branch
          %537 = sbr.rel (%p535) target = $region96
        $region95: #{tpu_custom_call.1} parent=75 // pred_region
          %538 = dma.done [#allocation11], 2048
        $region96: #{tpu_custom_call.1} parent=75 // pred_fallthru
          _
        // Predicated region
        $region97: #{tpu_custom_call.1} parent=75 // pred_check
          %p539 = pneg %p193
        $region98: #{tpu_custom_call.1} parent=75 // pred_check_branch
          %541 = sbr.rel (%p539) target = $region100
        $region99: #{tpu_custom_call.1} parent=75 // pred_region
          %542 = dma.done [#allocation14], 4096
        $region100: #{tpu_custom_call.1} parent=75 // pred_fallthru
          _
        // Predicated region
        $region101: #{tpu_custom_call.1} parent=75 // pred_check
          %p543 = pneg %p235
        $region102: #{tpu_custom_call.1} parent=75 // pred_check_branch
          %545 = sbr.rel (%p543) target = $region104
        $region103: #{tpu_custom_call.1} parent=75 // pred_region
          %546 = dma.done [#allocation14], 4096
        $region104: #{tpu_custom_call.1} parent=75 // pred_fallthru
          _
        %s547 = sand.u32 %s54, 1
        %s548 = scalar_lea.sflag [#allocation5], %s547
        %s549 = sand.u32 %s54, 1
        %s550 = smul.addr %s549, 128
        %s551 = scalar_lea.vmem [#allocation4], %s550
        %p552 = pneg %p67
        %p553 = pneg %p64
        %p554 = pneg %p88
        %p555 = pneg %p85
        %p556 = pneg %p109
        %p557 = pneg %p106
        %p558 = pneg %p130
        %p559 = pneg %p127
        %p560 = pneg %p151
        %p561 = pneg %p148
        %p562 = pneg %p172
        %p563 = pneg %p169
        %p564 = pneg %p193
        %p565 = pneg %p190
        %p566 = pneg %p214
        %p567 = pneg %p211
        %p568 = pneg %p235
        %p569 = pneg %p232
        %p570 = pneg %p256
        %p571 = pneg %p253
        %p572 = pneg %p277
        %p573 = pneg %p274
        %p574 = pneg %p298
        %p575 = pneg %p295
        %p576 = pneg %p319
        %p577 = pneg %p316
        %p578 = pneg %p340
        %p579 = pneg %p337
        %p580 = pneg %p368
        %p581 = pneg %p365
        %s582 = sand.u32 %s355, 1
        %s583 = scalar_lea.sflag [#allocation6], %s582
        %s584 = sand.u32 %s355, 1
        %s585 = smul.addr %s584, 128
        %s586 = scalar_lea.vmem [#allocation16], %s585
        %s587 = smul.u32 16, %s39
        %p588 = scmp.eq.s32.totalorder %s39, 0
        // Predicated region
        $region105: #{tpu_custom_call.1} parent=75 // pred_check
          %p589 = pneg %p588
        $region106: #{tpu_custom_call.1} parent=75 // pred_check_branch
          %591 = sbr.rel (%p589) target = $region108
        $region107: #{tpu_custom_call.1} parent=75 // pred_region
          %v592 = vld [vmem:[%s518] sm:$0xff]
          %v593 = vld [vmem:[%s518 + $0x8] sm:$0xff]
          %v594 = vld [vmem:[%s518 + $0x10] sm:$0xff]
          %v595 = vld [vmem:[%s518 + $0x18] sm:$0xff]
          %v596 = vld [vmem:[%s518 + $0x20] sm:$0xff]
          %v597 = vld [vmem:[%s518 + $0x28] sm:$0xff]
          %v598 = vld [vmem:[%s518 + $0x30] sm:$0xff]
          %v599 = vld [vmem:[%s518 + $0x38] sm:$0xff]
          %v600 = vld [vmem:[%s518 + $0x40] sm:$0xff]
          %v601 = vld [vmem:[%s518 + $0x48] sm:$0xff]
          %v602 = vld [vmem:[%s518 + $0x50] sm:$0xff]
          %v603 = vld [vmem:[%s518 + $0x58] sm:$0xff]
          %v604 = vld [vmem:[%s518 + $0x60] sm:$0xff]
          %v605 = vld [vmem:[%s518 + $0x68] sm:$0xff]
          %v606 = vld [vmem:[%s518 + $0x70] sm:$0xff]
          %v607 = vld [vmem:[%s518 + $0x78] sm:$0xff]
          %v608 = vld [vmem:[#allocation9] sm:$0xff]
          %v609 = vld [vmem:[#allocation9 + $0x8] sm:$0xff]
          %v610 = vld [vmem:[#allocation9 + $0x10] sm:$0xff]
          %v611 = vld [vmem:[#allocation9 + $0x18] sm:$0xff]
          %v612 = vld [vmem:[#allocation9 + $0x20] sm:$0xff]
          %v613 = vld [vmem:[#allocation9 + $0x28] sm:$0xff]
          %v614 = vld [vmem:[#allocation9 + $0x30] sm:$0xff]
          %v615 = vld [vmem:[#allocation9 + $0x38] sm:$0xff]
          %v616 = vld [vmem:[#allocation9 + $0x40] sm:$0xff]
          %v617 = vld [vmem:[#allocation9 + $0x48] sm:$0xff]
          %v618 = vld [vmem:[#allocation9 + $0x50] sm:$0xff]
          %v619 = vld [vmem:[#allocation9 + $0x58] sm:$0xff]
          %v620 = vld [vmem:[#allocation9 + $0x60] sm:$0xff]
          %v621 = vld [vmem:[#allocation9 + $0x68] sm:$0xff]
          %v622 = vld [vmem:[#allocation9 + $0x70] sm:$0xff]
          %v623 = vld [vmem:[#allocation9 + $0x78] sm:$0xff]
          %624 = vmatprep.subr.mxu0 0.0
          %625 = vmatpush1.msra.mxu0 %v623
          %626 = vmatprep.subr.mxu0 0.0
          %627 = vmatpush1.msra.mxu0 %v622
          %628 = vmatprep.subr.mxu0 0.0
          %629 = vmatpush1.msra.mxu0 %v621
          %630 = vmatprep.subr.mxu0 0.0
          %631 = vmatpush1.msra.mxu0 %v620
          %632 = vmatprep.subr.mxu0 0.0
          %633 = vmatpush1.msra.mxu0 %v619
          %634 = vmatprep.subr.mxu0 0.0
          %635 = vmatpush1.msra.mxu0 %v618
          %636 = vmatprep.subr.mxu0 0.0
          %637 = vmatpush1.msra.mxu0 %v617
          %638 = vmatprep.subr.mxu0 0.0
          %639 = vmatpush1.msra.mxu0 %v616
          %640 = vmatprep.subr.mxu0 0.0
          %641 = vmatpush1.msra.mxu0 %v615
          %642 = vmatprep.subr.mxu0 0.0
          %643 = vmatpush1.msra.mxu0 %v614
          %644 = vmatprep.subr.mxu0 0.0
          %645 = vmatpush1.msra.mxu0 %v613
          %646 = vmatprep.subr.mxu0 0.0
          %647 = vmatpush1.msra.mxu0 %v612
          %648 = vmatprep.subr.mxu0 0.0
          %649 = vmatpush1.msra.mxu0 %v611
          %650 = vmatprep.subr.mxu0 0.0
          %651 = vmatpush1.msra.mxu0 %v610
          %652 = vmatprep.subr.mxu0 0.0
          %653 = vmatpush1.msra.mxu0 %v609
          %654 = vmatprep.subr.mxu0 0.0
          %655 = vmatpush1.msra.mxu0 %v608
          %656 = vmatprep.subr.mxu0 0.0
          %657 = vmatpush2.msra.mxu0 0.0
          %658 = vmatprep.subr.mxu0 0.0
          %659 = vmatpush2.msra.mxu0 0.0
          %660 = vmatprep.subr.mxu0 0.0
          %661 = vmatpush2.msra.mxu0 0.0
          %662 = vmatprep.subr.mxu0 0.0
          %663 = vmatpush2.msra.mxu0 0.0
          %664 = vmatprep.subr.mxu0 0.0
          %665 = vmatpush2.msra.mxu0 0.0
          %666 = vmatprep.subr.mxu0 0.0
          %667 = vmatpush2.msra.mxu0 0.0
          %668 = vmatprep.subr.mxu0 0.0
          %669 = vmatpush2.msra.mxu0 0.0
          %670 = vmatprep.subr.mxu0 0.0
          %671 = vmatpush2.msra.mxu0 0.0
          %672 = vmatprep.subr.mxu0 0.0
          %673 = vmatpush2.msra.mxu0 0.0
          %674 = vmatprep.subr.mxu0 0.0
          %675 = vmatpush2.msra.mxu0 0.0
          %676 = vmatprep.subr.mxu0 0.0
          %677 = vmatpush2.msra.mxu0 0.0
          %678 = vmatprep.subr.mxu0 0.0
          %679 = vmatpush2.msra.mxu0 0.0
          %680 = vmatprep.subr.mxu0 0.0
          %681 = vmatpush2.msra.mxu0 0.0
          %682 = vmatprep.subr.mxu0 0.0
          %683 = vmatpush2.msra.mxu0 0.0
          %684 = vmatprep.subr.mxu0 0.0
          %685 = vmatpush2.msra.mxu0 0.0
          %686 = vmatprep.subr.mxu0 0.0
          %687 = vmatpush2.msra.mxu0 0.0
          %688 = vmatprep.mubr.f32.mxu0 0.0
          %689 = vmatmul.mubr.f32.gmra.mxu0 %v592
          %v690 = vpop.f32.mrf.mxu0
          %v691 = vadd.f32 0.0, %v690
          %v692 = vpop.f32.mrf.mxu0
          %693 = vmatprep.mubr.f32.mxu0 0.0
          %694 = vmatmul.mubr.f32.gmra.mxu0 %v593
          %v695 = vpop.f32.mrf.mxu0
          %v696 = vadd.f32 0.0, %v695
          %v697 = vpop.f32.mrf.mxu0
          %698 = vmatprep.mubr.f32.mxu0 0.0
          %699 = vmatmul.mubr.f32.gmra.mxu0 %v594
          %v700 = vpop.f32.mrf.mxu0
          %v701 = vadd.f32 0.0, %v700
          %v702 = vpop.f32.mrf.mxu0
          %703 = vmatprep.mubr.f32.mxu0 0.0
          %704 = vmatmul.mubr.f32.gmra.mxu0 %v595
          %v705 = vpop.f32.mrf.mxu0
          %v706 = vadd.f32 0.0, %v705
          %v707 = vpop.f32.mrf.mxu0
          %708 = vmatprep.mubr.f32.mxu0 0.0
          %709 = vmatmul.mubr.f32.gmra.mxu0 %v596
          %v710 = vpop.f32.mrf.mxu0
          %v711 = vadd.f32 0.0, %v710
          %v712 = vpop.f32.mrf.mxu0
          %713 = vmatprep.mubr.f32.mxu0 0.0
          %714 = vmatmul.mubr.f32.gmra.mxu0 %v597
          %v715 = vpop.f32.mrf.mxu0
          %v716 = vadd.f32 0.0, %v715
          %v717 = vpop.f32.mrf.mxu0
          %718 = vmatprep.mubr.f32.mxu0 0.0
          %719 = vmatmul.mubr.f32.gmra.mxu0 %v598
          %v720 = vpop.f32.mrf.mxu0
          %v721 = vadd.f32 0.0, %v720
          %v722 = vpop.f32.mrf.mxu0
          %723 = vmatprep.mubr.f32.mxu0 0.0
          %724 = vmatmul.mubr.f32.gmra.mxu0 %v599
          %v725 = vpop.f32.mrf.mxu0
          %v726 = vadd.f32 0.0, %v725
          %v727 = vpop.f32.mrf.mxu0
          %728 = vmatprep.mubr.f32.mxu0 0.0
          %729 = vmatmul.mubr.f32.gmra.mxu0 %v600
          %v730 = vpop.f32.mrf.mxu0
          %v731 = vadd.f32 0.0, %v730
          %v732 = vpop.f32.mrf.mxu0
          %733 = vmatprep.mubr.f32.mxu0 0.0
          %734 = vmatmul.mubr.f32.gmra.mxu0 %v601
          %v735 = vpop.f32.mrf.mxu0
          %v736 = vadd.f32 0.0, %v735
          %v737 = vpop.f32.mrf.mxu0
          %738 = vmatprep.mubr.f32.mxu0 0.0
          %739 = vmatmul.mubr.f32.gmra.mxu0 %v602
          %v740 = vpop.f32.mrf.mxu0
          %v741 = vadd.f32 0.0, %v740
          %v742 = vpop.f32.mrf.mxu0
          %743 = vmatprep.mubr.f32.mxu0 0.0
          %744 = vmatmul.mubr.f32.gmra.mxu0 %v603
          %v745 = vpop.f32.mrf.mxu0
          %v746 = vadd.f32 0.0, %v745
          %v747 = vpop.f32.mrf.mxu0
          %748 = vmatprep.mubr.f32.mxu0 0.0
          %749 = vmatmul.mubr.f32.gmra.mxu0 %v604
          %v750 = vpop.f32.mrf.mxu0
          %v751 = vadd.f32 0.0, %v750
          %v752 = vpop.f32.mrf.mxu0
          %753 = vmatprep.mubr.f32.mxu0 0.0
          %754 = vmatmul.mubr.f32.gmra.mxu0 %v605
          %v755 = vpop.f32.mrf.mxu0
          %v756 = vadd.f32 0.0, %v755
          %v757 = vpop.f32.mrf.mxu0
          %758 = vmatprep.mubr.f32.mxu0 0.0
          %759 = vmatmul.mubr.f32.gmra.mxu0 %v606
          %v760 = vpop.f32.mrf.mxu0
          %v761 = vadd.f32 0.0, %v760
          %v762 = vpop.f32.mrf.mxu0
          %763 = vmatprep.mubr.f32.mxu0 0.0
          %764 = vmatmul.mubr.f32.gmra.mxu0 %v607
          %v765 = vpop.f32.mrf.mxu0
          %v766 = vadd.f32 0.0, %v765
          %v767 = vpop.f32.mrf.mxu0
          %768 = vdwg.mxu0
          %769 = vst [vmem:[#allocation2] sm:$0xff] %v691
          %770 = vst [vmem:[#allocation2 + $0x8] sm:$0xff] %v696
          %771 = vst [vmem:[#allocation2 + $0x10] sm:$0xff] %v701
          %772 = vst [vmem:[#allocation2 + $0x18] sm:$0xff] %v706
          %773 = vst [vmem:[#allocation2 + $0x20] sm:$0xff] %v711
          %774 = vst [vmem:[#allocation2 + $0x28] sm:$0xff] %v716
          %775 = vst [vmem:[#allocation2 + $0x30] sm:$0xff] %v721
          %776 = vst [vmem:[#allocation2 + $0x38] sm:$0xff] %v726
          %777 = vst [vmem:[#allocation2 + $0x40] sm:$0xff] %v731
          %778 = vst [vmem:[#allocation2 + $0x48] sm:$0xff] %v736
          %779 = vst [vmem:[#allocation2 + $0x50] sm:$0xff] %v741
          %780 = vst [vmem:[#allocation2 + $0x58] sm:$0xff] %v746
          %781 = vst [vmem:[#allocation2 + $0x60] sm:$0xff] %v751
          %782 = vst [vmem:[#allocation2 + $0x68] sm:$0xff] %v756
          %783 = vst [vmem:[#allocation2 + $0x70] sm:$0xff] %v761
          %784 = vst [vmem:[#allocation2 + $0x78] sm:$0xff] %v766
          %v785 = vld [vmem:[#allocation10] sm:$0xff]
          %v786 = vld [vmem:[#allocation10 + $0x8] sm:$0xff]
          %v787 = vld [vmem:[#allocation10 + $0x10] sm:$0xff]
          %v788 = vld [vmem:[#allocation10 + $0x18] sm:$0xff]
          %v789 = vld [vmem:[#allocation10 + $0x20] sm:$0xff]
          %v790 = vld [vmem:[#allocation10 + $0x28] sm:$0xff]
          %v791 = vld [vmem:[#allocation10 + $0x30] sm:$0xff]
          %v792 = vld [vmem:[#allocation10 + $0x38] sm:$0xff]
          %v793 = vld [vmem:[#allocation10 + $0x40] sm:$0xff]
          %v794 = vld [vmem:[#allocation10 + $0x48] sm:$0xff]
          %v795 = vld [vmem:[#allocation10 + $0x50] sm:$0xff]
          %v796 = vld [vmem:[#allocation10 + $0x58] sm:$0xff]
          %v797 = vld [vmem:[#allocation10 + $0x60] sm:$0xff]
          %v798 = vld [vmem:[#allocation10 + $0x68] sm:$0xff]
          %v799 = vld [vmem:[#allocation10 + $0x70] sm:$0xff]
          %v800 = vld [vmem:[#allocation10 + $0x78] sm:$0xff]
          %801 = vmatprep.subr.mxu0 0.0
          %802 = vmatpush1.msra.mxu0 %v800
          %803 = vmatprep.subr.mxu0 0.0
          %804 = vmatpush1.msra.mxu0 %v799
          %805 = vmatprep.subr.mxu0 0.0
          %806 = vmatpush1.msra.mxu0 %v798
          %807 = vmatprep.subr.mxu0 0.0
          %808 = vmatpush1.msra.mxu0 %v797
          %809 = vmatprep.subr.mxu0 0.0
          %810 = vmatpush1.msra.mxu0 %v796
          %811 = vmatprep.subr.mxu0 0.0
          %812 = vmatpush1.msra.mxu0 %v795
          %813 = vmatprep.subr.mxu0 0.0
          %814 = vmatpush1.msra.mxu0 %v794
          %815 = vmatprep.subr.mxu0 0.0
          %816 = vmatpush1.msra.mxu0 %v793
          %817 = vmatprep.subr.mxu0 0.0
          %818 = vmatpush1.msra.mxu0 %v792
          %819 = vmatprep.subr.mxu0 0.0
          %820 = vmatpush1.msra.mxu0 %v791
          %821 = vmatprep.subr.mxu0 0.0
          %822 = vmatpush1.msra.mxu0 %v790
          %823 = vmatprep.subr.mxu0 0.0
          %824 = vmatpush1.msra.mxu0 %v789
          %825 = vmatprep.subr.mxu0 0.0
          %826 = vmatpush1.msra.mxu0 %v788
          %827 = vmatprep.subr.mxu0 0.0
          %828 = vmatpush1.msra.mxu0 %v787
          %829 = vmatprep.subr.mxu0 0.0
          %830 = vmatpush1.msra.mxu0 %v786
          %831 = vmatprep.subr.mxu0 0.0
          %832 = vmatpush1.msra.mxu0 %v785
          %833 = vmatprep.subr.mxu0 0.0
          %834 = vmatpush2.msra.mxu0 0.0
          %835 = vmatprep.subr.mxu0 0.0
          %836 = vmatpush2.msra.mxu0 0.0
          %837 = vmatprep.subr.mxu0 0.0
          %838 = vmatpush2.msra.mxu0 0.0
          %839 = vmatprep.subr.mxu0 0.0
          %840 = vmatpush2.msra.mxu0 0.0
          %841 = vmatprep.subr.mxu0 0.0
          %842 = vmatpush2.msra.mxu0 0.0
          %843 = vmatprep.subr.mxu0 0.0
          %844 = vmatpush2.msra.mxu0 0.0
          %845 = vmatprep.subr.mxu0 0.0
          %846 = vmatpush2.msra.mxu0 0.0
          %847 = vmatprep.subr.mxu0 0.0
          %848 = vmatpush2.msra.mxu0 0.0
          %849 = vmatprep.subr.mxu0 0.0
          %850 = vmatpush2.msra.mxu0 0.0
          %851 = vmatprep.subr.mxu0 0.0
          %852 = vmatpush2.msra.mxu0 0.0
          %853 = vmatprep.subr.mxu0 0.0
          %854 = vmatpush2.msra.mxu0 0.0
          %855 = vmatprep.subr.mxu0 0.0
          %856 = vmatpush2.msra.mxu0 0.0
          %857 = vmatprep.subr.mxu0 0.0
          %858 = vmatpush2.msra.mxu0 0.0
          %859 = vmatprep.subr.mxu0 0.0
          %860 = vmatpush2.msra.mxu0 0.0
          %861 = vmatprep.subr.mxu0 0.0
          %862 = vmatpush2.msra.mxu0 0.0
          %863 = vmatprep.subr.mxu0 0.0
          %864 = vmatpush2.msra.mxu0 0.0
          %865 = vmatprep.mubr.f32.mxu0 0.0
          %866 = vmatmul.mubr.f32.gmra.mxu0 %v592
          %v867 = vpop.f32.mrf.mxu0
          %v868 = vadd.f32 0.0, %v867
          %v869 = vpop.f32.mrf.mxu0
          %870 = vmatprep.mubr.f32.mxu0 0.0
          %871 = vmatmul.mubr.f32.gmra.mxu0 %v593
          %v872 = vpop.f32.mrf.mxu0
          %v873 = vadd.f32 0.0, %v872
          %v874 = vpop.f32.mrf.mxu0
          %875 = vmatprep.mubr.f32.mxu0 0.0
          %876 = vmatmul.mubr.f32.gmra.mxu0 %v594
          %v877 = vpop.f32.mrf.mxu0
          %v878 = vadd.f32 0.0, %v877
          %v879 = vpop.f32.mrf.mxu0
          %880 = vmatprep.mubr.f32.mxu0 0.0
          %881 = vmatmul.mubr.f32.gmra.mxu0 %v595
          %v882 = vpop.f32.mrf.mxu0
          %v883 = vadd.f32 0.0, %v882
          %v884 = vpop.f32.mrf.mxu0
          %885 = vmatprep.mubr.f32.mxu0 0.0
          %886 = vmatmul.mubr.f32.gmra.mxu0 %v596
          %v887 = vpop.f32.mrf.mxu0
          %v888 = vadd.f32 0.0, %v887
          %v889 = vpop.f32.mrf.mxu0
          %890 = vmatprep.mubr.f32.mxu0 0.0
          %891 = vmatmul.mubr.f32.gmra.mxu0 %v597
          %v892 = vpop.f32.mrf.mxu0
          %v893 = vadd.f32 0.0, %v892
          %v894 = vpop.f32.mrf.mxu0
          %895 = vmatprep.mubr.f32.mxu0 0.0
          %896 = vmatmul.mubr.f32.gmra.mxu0 %v598
          %v897 = vpop.f32.mrf.mxu0
          %v898 = vadd.f32 0.0, %v897
          %v899 = vpop.f32.mrf.mxu0
          %900 = vmatprep.mubr.f32.mxu0 0.0
          %901 = vmatmul.mubr.f32.gmra.mxu0 %v599
          %v902 = vpop.f32.mrf.mxu0
          %v903 = vadd.f32 0.0, %v902
          %v904 = vpop.f32.mrf.mxu0
          %905 = vmatprep.mubr.f32.mxu0 0.0
          %906 = vmatmul.mubr.f32.gmra.mxu0 %v600
          %v907 = vpop.f32.mrf.mxu0
          %v908 = vadd.f32 0.0, %v907
          %v909 = vpop.f32.mrf.mxu0
          %910 = vmatprep.mubr.f32.mxu0 0.0
          %911 = vmatmul.mubr.f32.gmra.mxu0 %v601
          %v912 = vpop.f32.mrf.mxu0
          %v913 = vadd.f32 0.0, %v912
          %v914 = vpop.f32.mrf.mxu0
          %915 = vmatprep.mubr.f32.mxu0 0.0
          %916 = vmatmul.mubr.f32.gmra.mxu0 %v602
          %v917 = vpop.f32.mrf.mxu0
          %v918 = vadd.f32 0.0, %v917
          %v919 = vpop.f32.mrf.mxu0
          %920 = vmatprep.mubr.f32.mxu0 0.0
          %921 = vmatmul.mubr.f32.gmra.mxu0 %v603
          %v922 = vpop.f32.mrf.mxu0
          %v923 = vadd.f32 0.0, %v922
          %v924 = vpop.f32.mrf.mxu0
          %925 = vmatprep.mubr.f32.mxu0 0.0
          %926 = vmatmul.mubr.f32.gmra.mxu0 %v604
          %v927 = vpop.f32.mrf.mxu0
          %v928 = vadd.f32 0.0, %v927
          %v929 = vpop.f32.mrf.mxu0
          %930 = vmatprep.mubr.f32.mxu0 0.0
          %931 = vmatmul.mubr.f32.gmra.mxu0 %v605
          %v932 = vpop.f32.mrf.mxu0
          %v933 = vadd.f32 0.0, %v932
          %v934 = vpop.f32.mrf.mxu0
          %935 = vmatprep.mubr.f32.mxu0 0.0
          %936 = vmatmul.mubr.f32.gmra.mxu0 %v606
          %v937 = vpop.f32.mrf.mxu0
          %v938 = vadd.f32 0.0, %v937
          %v939 = vpop.f32.mrf.mxu0
          %940 = vmatprep.mubr.f32.mxu0 0.0
          %941 = vmatmul.mubr.f32.gmra.mxu0 %v607
          %v942 = vpop.f32.mrf.mxu0
          %v943 = vadd.f32 0.0, %v942
          %v944 = vpop.f32.mrf.mxu0
          %945 = vdwg.mxu0
          %946 = vst [vmem:[#allocation3] sm:$0xff] %v868
          %947 = vst [vmem:[#allocation3 + $0x8] sm:$0xff] %v873
          %948 = vst [vmem:[#allocation3 + $0x10] sm:$0xff] %v878
          %949 = vst [vmem:[#allocation3 + $0x18] sm:$0xff] %v883
          %950 = vst [vmem:[#allocation3 + $0x20] sm:$0xff] %v888
          %951 = vst [vmem:[#allocation3 + $0x28] sm:$0xff] %v893
          %952 = vst [vmem:[#allocation3 + $0x30] sm:$0xff] %v898
          %953 = vst [vmem:[#allocation3 + $0x38] sm:$0xff] %v903
          %954 = vst [vmem:[#allocation3 + $0x40] sm:$0xff] %v908
          %955 = vst [vmem:[#allocation3 + $0x48] sm:$0xff] %v913
          %956 = vst [vmem:[#allocation3 + $0x50] sm:$0xff] %v918
          %957 = vst [vmem:[#allocation3 + $0x58] sm:$0xff] %v923
          %958 = vst [vmem:[#allocation3 + $0x60] sm:$0xff] %v928
          %959 = vst [vmem:[#allocation3 + $0x68] sm:$0xff] %v933
          %960 = vst [vmem:[#allocation3 + $0x70] sm:$0xff] %v938
          %961 = vst [vmem:[#allocation3 + $0x78] sm:$0xff] %v943
        $region108: #{tpu_custom_call.1} parent=75 // pred_fallthru
          _
        %s962 = smul.u32 %s39, 128
        %s963 = scalar_lea.vmem %s518, %s962 [#allocation4]
        %v964 = vld [vmem:[%s963] sm:$0xff]
        %v965 = vld [vmem:[%s963 + $0x8] sm:$0xff]
        %v966 = vld [vmem:[%s963 + $0x10] sm:$0xff]
        %v967 = vld [vmem:[%s963 + $0x18] sm:$0xff]
        %v968 = vld [vmem:[%s963 + $0x20] sm:$0xff]
        %v969 = vld [vmem:[%s963 + $0x28] sm:$0xff]
        %v970 = vld [vmem:[%s963 + $0x30] sm:$0xff]
        %v971 = vld [vmem:[%s963 + $0x38] sm:$0xff]
        %v972 = vld [vmem:[%s963 + $0x40] sm:$0xff]
        %v973 = vld [vmem:[%s963 + $0x48] sm:$0xff]
        %v974 = vld [vmem:[%s963 + $0x50] sm:$0xff]
        %v975 = vld [vmem:[%s963 + $0x58] sm:$0xff]
        %v976 = vld [vmem:[%s963 + $0x60] sm:$0xff]
        %v977 = vld [vmem:[%s963 + $0x68] sm:$0xff]
        %v978 = vld [vmem:[%s963 + $0x70] sm:$0xff]
        %v979 = vld [vmem:[%s963 + $0x78] sm:$0xff]
        %v980 = vld [vmem:[#allocation7] sm:$0xff]
        %v981 = vld [vmem:[#allocation7 + $0x8] sm:$0xff]
        %v982 = vld [vmem:[#allocation7 + $0x10] sm:$0xff]
        %v983 = vld [vmem:[#allocation7 + $0x18] sm:$0xff]
        %v984 = vld [vmem:[#allocation7 + $0x20] sm:$0xff]
        %v985 = vld [vmem:[#allocation7 + $0x28] sm:$0xff]
        %v986 = vld [vmem:[#allocation7 + $0x30] sm:$0xff]
        %v987 = vld [vmem:[#allocation7 + $0x38] sm:$0xff]
        %v988 = vld [vmem:[#allocation7 + $0x40] sm:$0xff]
        %v989 = vld [vmem:[#allocation7 + $0x48] sm:$0xff]
        %v990 = vld [vmem:[#allocation7 + $0x50] sm:$0xff]
        %v991 = vld [vmem:[#allocation7 + $0x58] sm:$0xff]
        %v992 = vld [vmem:[#allocation7 + $0x60] sm:$0xff]
        %v993 = vld [vmem:[#allocation7 + $0x68] sm:$0xff]
        %v994 = vld [vmem:[#allocation7 + $0x70] sm:$0xff]
        %v995 = vld [vmem:[#allocation7 + $0x78] sm:$0xff]
        %996 = vmatprep.subr.mxu0 0.0
        %997 = vmatpush1.msra.mxu0 %v995
        %998 = vmatprep.subr.mxu0 0.0
        %999 = vmatpush1.msra.mxu0 %v994
        %1000 = vmatprep.subr.mxu0 0.0
        %1001 = vmatpush1.msra.mxu0 %v993
        %1002 = vmatprep.subr.mxu0 0.0
        %1003 = vmatpush1.msra.mxu0 %v992
        %1004 = vmatprep.subr.mxu0 0.0
        %1005 = vmatpush1.msra.mxu0 %v991
        %1006 = vmatprep.subr.mxu0 0.0
        %1007 = vmatpush1.msra.mxu0 %v990
        %1008 = vmatprep.subr.mxu0 0.0
        %1009 = vmatpush1.msra.mxu0 %v989
        %1010 = vmatprep.subr.mxu0 0.0
        %1011 = vmatpush1.msra.mxu0 %v988
        %1012 = vmatprep.subr.mxu0 0.0
        %1013 = vmatpush1.msra.mxu0 %v987
        %1014 = vmatprep.subr.mxu0 0.0
        %1015 = vmatpush1.msra.mxu0 %v986
        %1016 = vmatprep.subr.mxu0 0.0
        %1017 = vmatpush1.msra.mxu0 %v985
        %1018 = vmatprep.subr.mxu0 0.0
        %1019 = vmatpush1.msra.mxu0 %v984
        %1020 = vmatprep.subr.mxu0 0.0
        %1021 = vmatpush1.msra.mxu0 %v983
        %1022 = vmatprep.subr.mxu0 0.0
        %1023 = vmatpush1.msra.mxu0 %v982
        %1024 = vmatprep.subr.mxu0 0.0
        %1025 = vmatpush1.msra.mxu0 %v981
        %1026 = vmatprep.subr.mxu0 0.0
        %1027 = vmatpush1.msra.mxu0 %v980
        %1028 = vmatprep.subr.mxu0 0.0
        %1029 = vmatpush2.msra.mxu0 0.0
        %1030 = vmatprep.subr.mxu0 0.0
        %1031 = vmatpush2.msra.mxu0 0.0
        %1032 = vmatprep.subr.mxu0 0.0
        %1033 = vmatpush2.msra.mxu0 0.0
        %1034 = vmatprep.subr.mxu0 0.0
        %1035 = vmatpush2.msra.mxu0 0.0
        %1036 = vmatprep.subr.mxu0 0.0
        %1037 = vmatpush2.msra.mxu0 0.0
        %1038 = vmatprep.subr.mxu0 0.0
        %1039 = vmatpush2.msra.mxu0 0.0
        %1040 = vmatprep.subr.mxu0 0.0
        %1041 = vmatpush2.msra.mxu0 0.0
        %1042 = vmatprep.subr.mxu0 0.0
        %1043 = vmatpush2.msra.mxu0 0.0
        %1044 = vmatprep.subr.mxu0 0.0
        %1045 = vmatpush2.msra.mxu0 0.0
        %1046 = vmatprep.subr.mxu0 0.0
        %1047 = vmatpush2.msra.mxu0 0.0
        %1048 = vmatprep.subr.mxu0 0.0
        %1049 = vmatpush2.msra.mxu0 0.0
        %1050 = vmatprep.subr.mxu0 0.0
        %1051 = vmatpush2.msra.mxu0 0.0
        %1052 = vmatprep.subr.mxu0 0.0
        %1053 = vmatpush2.msra.mxu0 0.0
        %1054 = vmatprep.subr.mxu0 0.0
        %1055 = vmatpush2.msra.mxu0 0.0
        %1056 = vmatprep.subr.mxu0 0.0
        %1057 = vmatpush2.msra.mxu0 0.0
        %1058 = vmatprep.subr.mxu0 0.0
        %1059 = vmatpush2.msra.mxu0 0.0
        %1060 = vmatprep.mubr.f32.mxu0 0.0
        %1061 = vmatmul.mubr.f32.gmra.mxu0 %v964
        %v1062 = vpop.f32.mrf.mxu0
        %v1063 = vadd.f32 0.0, %v1062
        %v1064 = vpop.f32.mrf.mxu0
        %1065 = vmatprep.mubr.f32.mxu0 0.0
        %1066 = vmatmul.mubr.f32.gmra.mxu0 %v965
        %v1067 = vpop.f32.mrf.mxu0
        %v1068 = vadd.f32 0.0, %v1067
        %v1069 = vpop.f32.mrf.mxu0
        %1070 = vmatprep.mubr.f32.mxu0 0.0
        %1071 = vmatmul.mubr.f32.gmra.mxu0 %v966
        %v1072 = vpop.f32.mrf.mxu0
        %v1073 = vadd.f32 0.0, %v1072
        %v1074 = vpop.f32.mrf.mxu0
        %1075 = vmatprep.mubr.f32.mxu0 0.0
        %1076 = vmatmul.mubr.f32.gmra.mxu0 %v967
        %v1077 = vpop.f32.mrf.mxu0
        %v1078 = vadd.f32 0.0, %v1077
        %v1079 = vpop.f32.mrf.mxu0
        %1080 = vmatprep.mubr.f32.mxu0 0.0
        %1081 = vmatmul.mubr.f32.gmra.mxu0 %v968
        %v1082 = vpop.f32.mrf.mxu0
        %v1083 = vadd.f32 0.0, %v1082
        %v1084 = vpop.f32.mrf.mxu0
        %1085 = vmatprep.mubr.f32.mxu0 0.0
        %1086 = vmatmul.mubr.f32.gmra.mxu0 %v969
        %v1087 = vpop.f32.mrf.mxu0
        %v1088 = vadd.f32 0.0, %v1087
        %v1089 = vpop.f32.mrf.mxu0
        %1090 = vmatprep.mubr.f32.mxu0 0.0
        %1091 = vmatmul.mubr.f32.gmra.mxu0 %v970
        %v1092 = vpop.f32.mrf.mxu0
        %v1093 = vadd.f32 0.0, %v1092
        %v1094 = vpop.f32.mrf.mxu0
        %1095 = vmatprep.mubr.f32.mxu0 0.0
        %1096 = vmatmul.mubr.f32.gmra.mxu0 %v971
        %v1097 = vpop.f32.mrf.mxu0
        %v1098 = vadd.f32 0.0, %v1097
        %v1099 = vpop.f32.mrf.mxu0
        %1100 = vmatprep.mubr.f32.mxu0 0.0
        %1101 = vmatmul.mubr.f32.gmra.mxu0 %v972
        %v1102 = vpop.f32.mrf.mxu0
        %v1103 = vadd.f32 0.0, %v1102
        %v1104 = vpop.f32.mrf.mxu0
        %1105 = vmatprep.mubr.f32.mxu0 0.0
        %1106 = vmatmul.mubr.f32.gmra.mxu0 %v973
        %v1107 = vpop.f32.mrf.mxu0
        %v1108 = vadd.f32 0.0, %v1107
        %v1109 = vpop.f32.mrf.mxu0
        %1110 = vmatprep.mubr.f32.mxu0 0.0
        %1111 = vmatmul.mubr.f32.gmra.mxu0 %v974
        %v1112 = vpop.f32.mrf.mxu0
        %v1113 = vadd.f32 0.0, %v1112
        %v1114 = vpop.f32.mrf.mxu0
        %1115 = vmatprep.mubr.f32.mxu0 0.0
        %1116 = vmatmul.mubr.f32.gmra.mxu0 %v975
        %v1117 = vpop.f32.mrf.mxu0
        %v1118 = vadd.f32 0.0, %v1117
        %v1119 = vpop.f32.mrf.mxu0
        %1120 = vmatprep.mubr.f32.mxu0 0.0
        %1121 = vmatmul.mubr.f32.gmra.mxu0 %v976
        %v1122 = vpop.f32.mrf.mxu0
        %v1123 = vadd.f32 0.0, %v1122
        %v1124 = vpop.f32.mrf.mxu0
        %1125 = vmatprep.mubr.f32.mxu0 0.0
        %1126 = vmatmul.mubr.f32.gmra.mxu0 %v977
        %v1127 = vpop.f32.mrf.mxu0
        %v1128 = vadd.f32 0.0, %v1127
        %v1129 = vpop.f32.mrf.mxu0
        %1130 = vmatprep.mubr.f32.mxu0 0.0
        %1131 = vmatmul.mubr.f32.gmra.mxu0 %v978
        %v1132 = vpop.f32.mrf.mxu0
        %v1133 = vadd.f32 0.0, %v1132
        %v1134 = vpop.f32.mrf.mxu0
        %1135 = vmatprep.mubr.f32.mxu0 0.0
        %1136 = vmatmul.mubr.f32.gmra.mxu0 %v979
        %v1137 = vpop.f32.mrf.mxu0
        %v1138 = vadd.f32 0.0, %v1137
        %v1139 = vpop.f32.mrf.mxu0
        %1140 = vdwg.mxu0
        %v1141 = vmul.f32 %v1063, 0.17677669
        %v1142 = vmul.f32 %v1068, 0.17677669
        %v1143 = vmul.f32 %v1073, 0.17677669
        %v1144 = vmul.f32 %v1078, 0.17677669
        %v1145 = vmul.f32 %v1083, 0.17677669
        %v1146 = vmul.f32 %v1088, 0.17677669
        %v1147 = vmul.f32 %v1093, 0.17677669
        %v1148 = vmul.f32 %v1098, 0.17677669
        %v1149 = vmul.f32 %v1103, 0.17677669
        %v1150 = vmul.f32 %v1108, 0.17677669
        %v1151 = vmul.f32 %v1113, 0.17677669
        %v1152 = vmul.f32 %v1118, 0.17677669
        %v1153 = vmul.f32 %v1123, 0.17677669
        %v1154 = vmul.f32 %v1128, 0.17677669
        %v1155 = vmul.f32 %v1133, 0.17677669
        %v1156 = vmul.f32 %v1138, 0.17677669
        %v1157 = vld [vmem:[#allocation2] sm:$0xff]
        %v1158 = vld [vmem:[#allocation2 + $0x8] sm:$0xff]
        %v1159 = vld [vmem:[#allocation2 + $0x10] sm:$0xff]
        %v1160 = vld [vmem:[#allocation2 + $0x18] sm:$0xff]
        %v1161 = vld [vmem:[#allocation2 + $0x20] sm:$0xff]
        %v1162 = vld [vmem:[#allocation2 + $0x28] sm:$0xff]
        %v1163 = vld [vmem:[#allocation2 + $0x30] sm:$0xff]
        %v1164 = vld [vmem:[#allocation2 + $0x38] sm:$0xff]
        %v1165 = vld [vmem:[#allocation2 + $0x40] sm:$0xff]
        %v1166 = vld [vmem:[#allocation2 + $0x48] sm:$0xff]
        %v1167 = vld [vmem:[#allocation2 + $0x50] sm:$0xff]
        %v1168 = vld [vmem:[#allocation2 + $0x58] sm:$0xff]
        %v1169 = vld [vmem:[#allocation2 + $0x60] sm:$0xff]
        %v1170 = vld [vmem:[#allocation2 + $0x68] sm:$0xff]
        %v1171 = vld [vmem:[#allocation2 + $0x70] sm:$0xff]
        %v1172 = vld [vmem:[#allocation2 + $0x78] sm:$0xff]
        %v1173 = vld [vmem:[#allocation3] sm:$0xff]
        %v1174 = vld [vmem:[#allocation3 + $0x8] sm:$0xff]
        %v1175 = vld [vmem:[#allocation3 + $0x10] sm:$0xff]
        %v1176 = vld [vmem:[#allocation3 + $0x18] sm:$0xff]
        %v1177 = vld [vmem:[#allocation3 + $0x20] sm:$0xff]
        %v1178 = vld [vmem:[#allocation3 + $0x28] sm:$0xff]
        %v1179 = vld [vmem:[#allocation3 + $0x30] sm:$0xff]
        %v1180 = vld [vmem:[#allocation3 + $0x38] sm:$0xff]
        %v1181 = vld [vmem:[#allocation3 + $0x40] sm:$0xff]
        %v1182 = vld [vmem:[#allocation3 + $0x48] sm:$0xff]
        %v1183 = vld [vmem:[#allocation3 + $0x50] sm:$0xff]
        %v1184 = vld [vmem:[#allocation3 + $0x58] sm:$0xff]
        %v1185 = vld [vmem:[#allocation3 + $0x60] sm:$0xff]
        %v1186 = vld [vmem:[#allocation3 + $0x68] sm:$0xff]
        %v1187 = vld [vmem:[#allocation3 + $0x70] sm:$0xff]
        %v1188 = vld [vmem:[#allocation3 + $0x78] sm:$0xff]
        %vm1189 = vcmask 261120
        %v1191 = vsel %vm1189, %v1141, 0
        %v1194 = vsel %vm1189, %v1142, 0
        %v1197 = vsel %vm1189, %v1143, 0
        %v1200 = vsel %vm1189, %v1144, 0
        %v1203 = vsel %vm1189, %v1145, 0
        %v1206 = vsel %vm1189, %v1146, 0
        %v1209 = vsel %vm1189, %v1147, 0
        %v1212 = vsel %vm1189, %v1148, 0
        %v1215 = vsel %vm1189, %v1149, 0
        %v1218 = vsel %vm1189, %v1150, 0
        %v1221 = vsel %vm1189, %v1151, 0
        %v1224 = vsel %vm1189, %v1152, 0
        %v1227 = vsel %vm1189, %v1153, 0
        %v1230 = vsel %vm1189, %v1154, 0
        %v1233 = vsel %vm1189, %v1155, 0
        %v1236 = vsel %vm1189, %v1156, 0
        %v1239 = vsel %vm1189, %v1157, 0
        %v1242 = vsel %vm1189, %v1158, 0
        %v1245 = vsel %vm1189, %v1159, 0
        %v1248 = vsel %vm1189, %v1160, 0
        %v1251 = vsel %vm1189, %v1161, 0
        %v1254 = vsel %vm1189, %v1162, 0
        %v1257 = vsel %vm1189, %v1163, 0
        %v1260 = vsel %vm1189, %v1164, 0
        %v1263 = vsel %vm1189, %v1165, 0
        %v1266 = vsel %vm1189, %v1166, 0
        %v1269 = vsel %vm1189, %v1167, 0
        %v1272 = vsel %vm1189, %v1168, 0
        %v1275 = vsel %vm1189, %v1169, 0
        %v1278 = vsel %vm1189, %v1170, 0
        %v1281 = vsel %vm1189, %v1171, 0
        %v1284 = vsel %vm1189, %v1172, 0
        %1286 = vmatprep.subr.mxu0 0.0
        %1287 = vmatpush1.xpose.msra.mxu0 %v1284
        %1288 = vmatprep.subr.mxu0 0.0
        %1289 = vmatpush1.xpose.msra.mxu0 %v1281
        %1290 = vmatprep.subr.mxu0 0.0
        %1291 = vmatpush1.xpose.msra.mxu0 %v1278
        %1292 = vmatprep.subr.mxu0 0.0
        %1293 = vmatpush1.xpose.msra.mxu0 %v1275
        %1294 = vmatprep.subr.mxu0 0.0
        %1295 = vmatpush1.xpose.msra.mxu0 %v1272
        %1296 = vmatprep.subr.mxu0 0.0
        %1297 = vmatpush1.xpose.msra.mxu0 %v1269
        %1298 = vmatprep.subr.mxu0 0.0
        %1299 = vmatpush1.xpose.msra.mxu0 %v1266
        %1300 = vmatprep.subr.mxu0 0.0
        %1301 = vmatpush1.xpose.msra.mxu0 %v1263
        %1302 = vmatprep.subr.mxu0 0.0
        %1303 = vmatpush1.xpose.msra.mxu0 %v1260
        %1304 = vmatprep.subr.mxu0 0.0
        %1305 = vmatpush1.xpose.msra.mxu0 %v1257
        %1306 = vmatprep.subr.mxu0 0.0
        %1307 = vmatpush1.xpose.msra.mxu0 %v1254
        %1308 = vmatprep.subr.mxu0 0.0
        %1309 = vmatpush1.xpose.msra.mxu0 %v1251
        %1310 = vmatprep.subr.mxu0 0.0
        %1311 = vmatpush1.xpose.msra.mxu0 %v1248
        %1312 = vmatprep.subr.mxu0 0.0
        %1313 = vmatpush1.xpose.msra.mxu0 %v1245
        %1314 = vmatprep.subr.mxu0 0.0
        %1315 = vmatpush1.xpose.msra.mxu0 %v1242
        %1316 = vmatprep.subr.mxu0 0.0
        %1317 = vmatpush1.xpose.msra.mxu0 %v1239
        %1318 = vmatprep.subr.mxu0 0.0
        %1319 = vmatpush2.xpose.msra.mxu0 0.0
        %1320 = vmatprep.subr.mxu0 0.0
        %1321 = vmatpush2.xpose.msra.mxu0 0.0
        %1322 = vmatprep.subr.mxu0 0.0
        %1323 = vmatpush2.xpose.msra.mxu0 0.0
        %1324 = vmatprep.subr.mxu0 0.0
        %1325 = vmatpush2.xpose.msra.mxu0 0.0
        %1326 = vmatprep.subr.mxu0 0.0
        %1327 = vmatpush2.xpose.msra.mxu0 0.0
        %1328 = vmatprep.subr.mxu0 0.0
        %1329 = vmatpush2.xpose.msra.mxu0 0.0
        %1330 = vmatprep.subr.mxu0 0.0
        %1331 = vmatpush2.xpose.msra.mxu0 0.0
        %1332 = vmatprep.subr.mxu0 0.0
        %1333 = vmatpush2.xpose.msra.mxu0 0.0
        %1334 = vmatprep.subr.mxu0 0.0
        %1335 = vmatpush2.xpose.msra.mxu0 0.0
        %1336 = vmatprep.subr.mxu0 0.0
        %1337 = vmatpush2.xpose.msra.mxu0 0.0
        %1338 = vmatprep.subr.mxu0 0.0
        %1339 = vmatpush2.xpose.msra.mxu0 0.0
        %1340 = vmatprep.subr.mxu0 0.0
        %1341 = vmatpush2.xpose.msra.mxu0 0.0
        %1342 = vmatprep.subr.mxu0 0.0
        %1343 = vmatpush2.xpose.msra.mxu0 0.0
        %1344 = vmatprep.subr.mxu0 0.0
        %1345 = vmatpush2.xpose.msra.mxu0 0.0
        %1346 = vmatprep.subr.mxu0 0.0
        %1347 = vmatpush2.xpose.msra.mxu0 0.0
        %1348 = vmatprep.subr.mxu0 0.0
        %1349 = vmatpush2.xpose.msra.mxu0 0.0
        %1350 = vmatprep.mubr.f32.mxu0 0.0
        %1351 = vmatmul.mubr.f32.gmra.mxu0 %v1191
        %v1352 = vpop.f32.mrf.mxu0
        %v1353 = vadd.f32 0.0, %v1352
        %v1354 = vpop.f32.mrf.mxu0
        %1355 = vmatprep.mubr.f32.mxu0 0.0
        %1356 = vmatmul.mubr.f32.gmra.mxu0 %v1194
        %v1357 = vpop.f32.mrf.mxu0
        %v1358 = vadd.f32 0.0, %v1357
        %v1359 = vpop.f32.mrf.mxu0
        %1360 = vmatprep.mubr.f32.mxu0 0.0
        %1361 = vmatmul.mubr.f32.gmra.mxu0 %v1197
        %v1362 = vpop.f32.mrf.mxu0
        %v1363 = vadd.f32 0.0, %v1362
        %v1364 = vpop.f32.mrf.mxu0
        %1365 = vmatprep.mubr.f32.mxu0 0.0
        %1366 = vmatmul.mubr.f32.gmra.mxu0 %v1200
        %v1367 = vpop.f32.mrf.mxu0
        %v1368 = vadd.f32 0.0, %v1367
        %v1369 = vpop.f32.mrf.mxu0
        %1370 = vmatprep.mubr.f32.mxu0 0.0
        %1371 = vmatmul.mubr.f32.gmra.mxu0 %v1203
        %v1372 = vpop.f32.mrf.mxu0
        %v1373 = vadd.f32 0.0, %v1372
        %v1374 = vpop.f32.mrf.mxu0
        %1375 = vmatprep.mubr.f32.mxu0 0.0
        %1376 = vmatmul.mubr.f32.gmra.mxu0 %v1206
        %v1377 = vpop.f32.mrf.mxu0
        %v1378 = vadd.f32 0.0, %v1377
        %v1379 = vpop.f32.mrf.mxu0
        %1380 = vmatprep.mubr.f32.mxu0 0.0
        %1381 = vmatmul.mubr.f32.gmra.mxu0 %v1209
        %v1382 = vpop.f32.mrf.mxu0
        %v1383 = vadd.f32 0.0, %v1382
        %v1384 = vpop.f32.mrf.mxu0
        %1385 = vmatprep.mubr.f32.mxu0 0.0
        %1386 = vmatmul.mubr.f32.gmra.mxu0 %v1212
        %v1387 = vpop.f32.mrf.mxu0
        %v1388 = vadd.f32 0.0, %v1387
        %v1389 = vpop.f32.mrf.mxu0
        %1390 = vmatprep.mubr.f32.mxu0 0.0
        %1391 = vmatmul.mubr.f32.gmra.mxu0 %v1215
        %v1392 = vpop.f32.mrf.mxu0
        %v1393 = vadd.f32 0.0, %v1392
        %v1394 = vpop.f32.mrf.mxu0
        %1395 = vmatprep.mubr.f32.mxu0 0.0
        %1396 = vmatmul.mubr.f32.gmra.mxu0 %v1218
        %v1397 = vpop.f32.mrf.mxu0
        %v1398 = vadd.f32 0.0, %v1397
        %v1399 = vpop.f32.mrf.mxu0
        %1400 = vmatprep.mubr.f32.mxu0 0.0
        %1401 = vmatmul.mubr.f32.gmra.mxu0 %v1221
        %v1402 = vpop.f32.mrf.mxu0
        %v1403 = vadd.f32 0.0, %v1402
        %v1404 = vpop.f32.mrf.mxu0
        %1405 = vmatprep.mubr.f32.mxu0 0.0
        %1406 = vmatmul.mubr.f32.gmra.mxu0 %v1224
        %v1407 = vpop.f32.mrf.mxu0
        %v1408 = vadd.f32 0.0, %v1407
        %v1409 = vpop.f32.mrf.mxu0
        %1410 = vmatprep.mubr.f32.mxu0 0.0
        %1411 = vmatmul.mubr.f32.gmra.mxu0 %v1227
        %v1412 = vpop.f32.mrf.mxu0
        %v1413 = vadd.f32 0.0, %v1412
        %v1414 = vpop.f32.mrf.mxu0
        %1415 = vmatprep.mubr.f32.mxu0 0.0
        %1416 = vmatmul.mubr.f32.gmra.mxu0 %v1230
        %v1417 = vpop.f32.mrf.mxu0
        %v1418 = vadd.f32 0.0, %v1417
        %v1419 = vpop.f32.mrf.mxu0
        %1420 = vmatprep.mubr.f32.mxu0 0.0
        %1421 = vmatmul.mubr.f32.gmra.mxu0 %v1233
        %v1422 = vpop.f32.mrf.mxu0
        %v1423 = vadd.f32 0.0, %v1422
        %v1424 = vpop.f32.mrf.mxu0
        %1425 = vmatprep.mubr.f32.mxu0 0.0
        %1426 = vmatmul.mubr.f32.gmra.mxu0 %v1236
        %v1427 = vpop.f32.mrf.mxu0
        %v1428 = vadd.f32 0.0, %v1427
        %v1429 = vpop.f32.mrf.mxu0
        %1430 = vdwg.mxu0
        %1431 = vmax.xlane.f32.xlu0 %v1353
        %v1432 = vpop.xlane.xlu0 %1431
        %1433 = vmax.xlane.f32.xlu0 %v1358
        %v1434 = vpop.xlane.xlu0 %1433
        %1435 = vmax.xlane.f32.xlu0 %v1363
        %v1436 = vpop.xlane.xlu0 %1435
        %1437 = vmax.xlane.f32.xlu0 %v1368
        %v1438 = vpop.xlane.xlu0 %1437
        %1439 = vmax.xlane.f32.xlu0 %v1373
        %v1440 = vpop.xlane.xlu0 %1439
        %1441 = vmax.xlane.f32.xlu0 %v1378
        %v1442 = vpop.xlane.xlu0 %1441
        %1443 = vmax.xlane.f32.xlu0 %v1383
        %v1444 = vpop.xlane.xlu0 %1443
        %1445 = vmax.xlane.f32.xlu0 %v1388
        %v1446 = vpop.xlane.xlu0 %1445
        %1447 = vmax.xlane.f32.xlu0 %v1393
        %v1448 = vpop.xlane.xlu0 %1447
        %1449 = vmax.xlane.f32.xlu0 %v1398
        %v1450 = vpop.xlane.xlu0 %1449
        %1451 = vmax.xlane.f32.xlu0 %v1403
        %v1452 = vpop.xlane.xlu0 %1451
        %1453 = vmax.xlane.f32.xlu0 %v1408
        %v1454 = vpop.xlane.xlu0 %1453
        %1455 = vmax.xlane.f32.xlu0 %v1413
        %v1456 = vpop.xlane.xlu0 %1455
        %1457 = vmax.xlane.f32.xlu0 %v1418
        %v1458 = vpop.xlane.xlu0 %1457
        %1459 = vmax.xlane.f32.xlu0 %v1423
        %v1460 = vpop.xlane.xlu0 %1459
        %1461 = vmax.xlane.f32.xlu0 %v1428
        %v1462 = vpop.xlane.xlu0 %1461
        %v1463 = vsub.f32 %v1353, %v1432
        %v1464 = vsub.f32 %v1358, %v1434
        %v1465 = vsub.f32 %v1363, %v1436
        %v1466 = vsub.f32 %v1368, %v1438
        %v1467 = vsub.f32 %v1373, %v1440
        %v1468 = vsub.f32 %v1378, %v1442
        %v1469 = vsub.f32 %v1383, %v1444
        %v1470 = vsub.f32 %v1388, %v1446
        %v1471 = vsub.f32 %v1393, %v1448
        %v1472 = vsub.f32 %v1398, %v1450
        %v1473 = vsub.f32 %v1403, %v1452
        %v1474 = vsub.f32 %v1408, %v1454
        %v1475 = vsub.f32 %v1413, %v1456
        %v1476 = vsub.f32 %v1418, %v1458
        %v1477 = vsub.f32 %v1423, %v1460
        %v1478 = vsub.f32 %v1428, %v1462
        %v1479 = vmul.f32 %v1463, 1.442695
        %v1480 = vpow.pop %v1479
        %v1481 = vmul.f32 %v1464, 1.442695
        %v1482 = vpow.pop %v1481
        %v1483 = vmul.f32 %v1465, 1.442695
        %v1484 = vpow.pop %v1483
        %v1485 = vmul.f32 %v1466, 1.442695
        %v1486 = vpow.pop %v1485
        %v1487 = vmul.f32 %v1467, 1.442695
        %v1488 = vpow.pop %v1487
        %v1489 = vmul.f32 %v1468, 1.442695
        %v1490 = vpow.pop %v1489
        %v1491 = vmul.f32 %v1469, 1.442695
        %v1492 = vpow.pop %v1491
        %v1493 = vmul.f32 %v1470, 1.442695
        %v1494 = vpow.pop %v1493
        %v1495 = vmul.f32 %v1471, 1.442695
        %v1496 = vpow.pop %v1495
        %v1497 = vmul.f32 %v1472, 1.442695
        %v1498 = vpow.pop %v1497
        %v1499 = vmul.f32 %v1473, 1.442695
        %v1500 = vpow.pop %v1499
        %v1501 = vmul.f32 %v1474, 1.442695
        %v1502 = vpow.pop %v1501
        %v1503 = vmul.f32 %v1475, 1.442695
        %v1504 = vpow.pop %v1503
        %v1505 = vmul.f32 %v1476, 1.442695
        %v1506 = vpow.pop %v1505
        %v1507 = vmul.f32 %v1477, 1.442695
        %v1508 = vpow.pop %v1507
        %v1509 = vmul.f32 %v1478, 1.442695
        %v1510 = vpow.pop %v1509
        %1511 = vadd.xlane.f32.xlu0 %v1480
        %v1512 = vpop.xlane.xlu0 %1511
        %1513 = vadd.xlane.f32.xlu0 %v1482
        %v1514 = vpop.xlane.xlu0 %1513
        %1515 = vadd.xlane.f32.xlu0 %v1484
        %v1516 = vpop.xlane.xlu0 %1515
        %1517 = vadd.xlane.f32.xlu0 %v1486
        %v1518 = vpop.xlane.xlu0 %1517
        %1519 = vadd.xlane.f32.xlu0 %v1488
        %v1520 = vpop.xlane.xlu0 %1519
        %1521 = vadd.xlane.f32.xlu0 %v1490
        %v1522 = vpop.xlane.xlu0 %1521
        %1523 = vadd.xlane.f32.xlu0 %v1492
        %v1524 = vpop.xlane.xlu0 %1523
        %1525 = vadd.xlane.f32.xlu0 %v1494
        %v1526 = vpop.xlane.xlu0 %1525
        %1527 = vadd.xlane.f32.xlu0 %v1496
        %v1528 = vpop.xlane.xlu0 %1527
        %1529 = vadd.xlane.f32.xlu0 %v1498
        %v1530 = vpop.xlane.xlu0 %1529
        %1531 = vadd.xlane.f32.xlu0 %v1500
        %v1532 = vpop.xlane.xlu0 %1531
        %1533 = vadd.xlane.f32.xlu0 %v1502
        %v1534 = vpop.xlane.xlu0 %1533
        %1535 = vadd.xlane.f32.xlu0 %v1504
        %v1536 = vpop.xlane.xlu0 %1535
        %1537 = vadd.xlane.f32.xlu0 %v1506
        %v1538 = vpop.xlane.xlu0 %1537
        %1539 = vadd.xlane.f32.xlu0 %v1508
        %v1540 = vpop.xlane.xlu0 %1539
        %1541 = vadd.xlane.f32.xlu0 %v1510
        %v1542 = vpop.xlane.xlu0 %1541
        %v1543 = vrcp.pop %v1512
        %v1544 = vrcp.pop %v1514
        %v1545 = vrcp.pop %v1516
        %v1546 = vrcp.pop %v1518
        %v1547 = vrcp.pop %v1520
        %v1548 = vrcp.pop %v1522
        %v1549 = vrcp.pop %v1524
        %v1550 = vrcp.pop %v1526
        %v1551 = vrcp.pop %v1528
        %v1552 = vrcp.pop %v1530
        %v1553 = vrcp.pop %v1532
        %v1554 = vrcp.pop %v1534
        %v1555 = vrcp.pop %v1536
        %v1556 = vrcp.pop %v1538
        %v1557 = vrcp.pop %v1540
        %v1558 = vrcp.pop %v1542
        %v1559 = vmul.f32 %v1480, %v1543
        %v1560 = vmul.f32 %v1482, %v1544
        %v1561 = vmul.f32 %v1484, %v1545
        %v1562 = vmul.f32 %v1486, %v1546
        %v1563 = vmul.f32 %v1488, %v1547
        %v1564 = vmul.f32 %v1490, %v1548
        %v1565 = vmul.f32 %v1492, %v1549
        %v1566 = vmul.f32 %v1494, %v1550
        %v1567 = vmul.f32 %v1496, %v1551
        %v1568 = vmul.f32 %v1498, %v1552
        %v1569 = vmul.f32 %v1500, %v1553
        %v1570 = vmul.f32 %v1502, %v1554
        %v1571 = vmul.f32 %v1504, %v1555
        %v1572 = vmul.f32 %v1506, %v1556
        %v1573 = vmul.f32 %v1508, %v1557
        %v1574 = vmul.f32 %v1510, %v1558
        %1575 = vmatprep.subr.mxu0 0.0
        %1576 = vmatpush1.msra.mxu0 %v1188
        %1577 = vmatprep.subr.mxu0 0.0
        %1578 = vmatpush1.msra.mxu0 %v1187
        %1579 = vmatprep.subr.mxu0 0.0
        %1580 = vmatpush1.msra.mxu0 %v1186
        %1581 = vmatprep.subr.mxu0 0.0
        %1582 = vmatpush1.msra.mxu0 %v1185
        %1583 = vmatprep.subr.mxu0 0.0
        %1584 = vmatpush1.msra.mxu0 %v1184
        %1585 = vmatprep.subr.mxu0 0.0
        %1586 = vmatpush1.msra.mxu0 %v1183
        %1587 = vmatprep.subr.mxu0 0.0
        %1588 = vmatpush1.msra.mxu0 %v1182
        %1589 = vmatprep.subr.mxu0 0.0
        %1590 = vmatpush1.msra.mxu0 %v1181
        %1591 = vmatprep.subr.mxu0 0.0
        %1592 = vmatpush1.msra.mxu0 %v1180
        %1593 = vmatprep.subr.mxu0 0.0
        %1594 = vmatpush1.msra.mxu0 %v1179
        %1595 = vmatprep.subr.mxu0 0.0
        %1596 = vmatpush1.msra.mxu0 %v1178
        %1597 = vmatprep.subr.mxu0 0.0
        %1598 = vmatpush1.msra.mxu0 %v1177
        %1599 = vmatprep.subr.mxu0 0.0
        %1600 = vmatpush1.msra.mxu0 %v1176
        %1601 = vmatprep.subr.mxu0 0.0
        %1602 = vmatpush1.msra.mxu0 %v1175
        %1603 = vmatprep.subr.mxu0 0.0
        %1604 = vmatpush1.msra.mxu0 %v1174
        %1605 = vmatprep.subr.mxu0 0.0
        %1606 = vmatpush1.msra.mxu0 %v1173
        %1607 = vmatprep.subr.mxu0 0.0
        %1608 = vmatpush2.msra.mxu0 0.0
        %1609 = vmatprep.subr.mxu0 0.0
        %1610 = vmatpush2.msra.mxu0 0.0
        %1611 = vmatprep.subr.mxu0 0.0
        %1612 = vmatpush2.msra.mxu0 0.0
        %1613 = vmatprep.subr.mxu0 0.0
        %1614 = vmatpush2.msra.mxu0 0.0
        %1615 = vmatprep.subr.mxu0 0.0
        %1616 = vmatpush2.msra.mxu0 0.0
        %1617 = vmatprep.subr.mxu0 0.0
        %1618 = vmatpush2.msra.mxu0 0.0
        %1619 = vmatprep.subr.mxu0 0.0
        %1620 = vmatpush2.msra.mxu0 0.0
        %1621 = vmatprep.subr.mxu0 0.0
        %1622 = vmatpush2.msra.mxu0 0.0
        %1623 = vmatprep.subr.mxu0 0.0
        %1624 = vmatpush2.msra.mxu0 0.0
        %1625 = vmatprep.subr.mxu0 0.0
        %1626 = vmatpush2.msra.mxu0 0.0
        %1627 = vmatprep.subr.mxu0 0.0
        %1628 = vmatpush2.msra.mxu0 0.0
        %1629 = vmatprep.subr.mxu0 0.0
        %1630 = vmatpush2.msra.mxu0 0.0
        %1631 = vmatprep.subr.mxu0 0.0
        %1632 = vmatpush2.msra.mxu0 0.0
        %1633 = vmatprep.subr.mxu0 0.0
        %1634 = vmatpush2.msra.mxu0 0.0
        %1635 = vmatprep.subr.mxu0 0.0
        %1636 = vmatpush2.msra.mxu0 0.0
        %1637 = vmatprep.subr.mxu0 0.0
        %1638 = vmatpush2.msra.mxu0 0.0
        %1639 = vmatprep.mubr.f32.mxu0 0.0
        %1640 = vmatmul.mubr.f32.gmra.mxu0 %v1559
        %v1641 = vpop.f32.mrf.mxu0
        %v1642 = vadd.f32 0.0, %v1641
        %v1643 = vpop.f32.mrf.mxu0
        %1644 = vmatprep.mubr.f32.mxu0 0.0
        %1645 = vmatmul.mubr.f32.gmra.mxu0 %v1560
        %v1646 = vpop.f32.mrf.mxu0
        %v1647 = vadd.f32 0.0, %v1646
        %v1648 = vpop.f32.mrf.mxu0
        %1649 = vmatprep.mubr.f32.mxu0 0.0
        %1650 = vmatmul.mubr.f32.gmra.mxu0 %v1561
        %v1651 = vpop.f32.mrf.mxu0
        %v1652 = vadd.f32 0.0, %v1651
        %v1653 = vpop.f32.mrf.mxu0
        %1654 = vmatprep.mubr.f32.mxu0 0.0
        %1655 = vmatmul.mubr.f32.gmra.mxu0 %v1562
        %v1656 = vpop.f32.mrf.mxu0
        %v1657 = vadd.f32 0.0, %v1656
        %v1658 = vpop.f32.mrf.mxu0
        %1659 = vmatprep.mubr.f32.mxu0 0.0
        %1660 = vmatmul.mubr.f32.gmra.mxu0 %v1563
        %v1661 = vpop.f32.mrf.mxu0
        %v1662 = vadd.f32 0.0, %v1661
        %v1663 = vpop.f32.mrf.mxu0
        %1664 = vmatprep.mubr.f32.mxu0 0.0
        %1665 = vmatmul.mubr.f32.gmra.mxu0 %v1564
        %v1666 = vpop.f32.mrf.mxu0
        %v1667 = vadd.f32 0.0, %v1666
        %v1668 = vpop.f32.mrf.mxu0
        %1669 = vmatprep.mubr.f32.mxu0 0.0
        %1670 = vmatmul.mubr.f32.gmra.mxu0 %v1565
        %v1671 = vpop.f32.mrf.mxu0
        %v1672 = vadd.f32 0.0, %v1671
        %v1673 = vpop.f32.mrf.mxu0
        %1674 = vmatprep.mubr.f32.mxu0 0.0
        %1675 = vmatmul.mubr.f32.gmra.mxu0 %v1566
        %v1676 = vpop.f32.mrf.mxu0
        %v1677 = vadd.f32 0.0, %v1676
        %v1678 = vpop.f32.mrf.mxu0
        %1679 = vmatprep.mubr.f32.mxu0 0.0
        %1680 = vmatmul.mubr.f32.gmra.mxu0 %v1567
        %v1681 = vpop.f32.mrf.mxu0
        %v1682 = vadd.f32 0.0, %v1681
        %v1683 = vpop.f32.mrf.mxu0
        %1684 = vmatprep.mubr.f32.mxu0 0.0
        %1685 = vmatmul.mubr.f32.gmra.mxu0 %v1568
        %v1686 = vpop.f32.mrf.mxu0
        %v1687 = vadd.f32 0.0, %v1686
        %v1688 = vpop.f32.mrf.mxu0
        %1689 = vmatprep.mubr.f32.mxu0 0.0
        %1690 = vmatmul.mubr.f32.gmra.mxu0 %v1569
        %v1691 = vpop.f32.mrf.mxu0
        %v1692 = vadd.f32 0.0, %v1691
        %v1693 = vpop.f32.mrf.mxu0
        %1694 = vmatprep.mubr.f32.mxu0 0.0
        %1695 = vmatmul.mubr.f32.gmra.mxu0 %v1570
        %v1696 = vpop.f32.mrf.mxu0
        %v1697 = vadd.f32 0.0, %v1696
        %v1698 = vpop.f32.mrf.mxu0
        %1699 = vmatprep.mubr.f32.mxu0 0.0
        %1700 = vmatmul.mubr.f32.gmra.mxu0 %v1571
        %v1701 = vpop.f32.mrf.mxu0
        %v1702 = vadd.f32 0.0, %v1701
        %v1703 = vpop.f32.mrf.mxu0
        %1704 = vmatprep.mubr.f32.mxu0 0.0
        %1705 = vmatmul.mubr.f32.gmra.mxu0 %v1572
        %v1706 = vpop.f32.mrf.mxu0
        %v1707 = vadd.f32 0.0, %v1706
        %v1708 = vpop.f32.mrf.mxu0
        %1709 = vmatprep.mubr.f32.mxu0 0.0
        %1710 = vmatmul.mubr.f32.gmra.mxu0 %v1573
        %v1711 = vpop.f32.mrf.mxu0
        %v1712 = vadd.f32 0.0, %v1711
        %v1713 = vpop.f32.mrf.mxu0
        %1714 = vmatprep.mubr.f32.mxu0 0.0
        %1715 = vmatmul.mubr.f32.gmra.mxu0 %v1574
        %v1716 = vpop.f32.mrf.mxu0
        %v1717 = vadd.f32 0.0, %v1716
        %v1718 = vpop.f32.mrf.mxu0
        %1719 = vdwg.mxu0
        %1720 = vrot.lane.b32.xlu0 %v1141, 96
        %v1721 = vpop.permute.xlu0 %1720
        %1722 = vrot.lane.b32.xlu0 %v1142, 96
        %v1723 = vpop.permute.xlu0 %1722
        %1724 = vrot.lane.b32.xlu0 %v1143, 96
        %v1725 = vpop.permute.xlu0 %1724
        %1726 = vrot.lane.b32.xlu0 %v1144, 96
        %v1727 = vpop.permute.xlu0 %1726
        %1728 = vrot.lane.b32.xlu0 %v1145, 96
        %v1729 = vpop.permute.xlu0 %1728
        %1730 = vrot.lane.b32.xlu0 %v1146, 96
        %v1731 = vpop.permute.xlu0 %1730
        %1732 = vrot.lane.b32.xlu0 %v1147, 96
        %v1733 = vpop.permute.xlu0 %1732
        %1734 = vrot.lane.b32.xlu0 %v1148, 96
        %v1735 = vpop.permute.xlu0 %1734
        %1736 = vrot.lane.b32.xlu0 %v1149, 96
        %v1737 = vpop.permute.xlu0 %1736
        %1738 = vrot.lane.b32.xlu0 %v1150, 96
        %v1739 = vpop.permute.xlu0 %1738
        %1740 = vrot.lane.b32.xlu0 %v1151, 96
        %v1741 = vpop.permute.xlu0 %1740
        %1742 = vrot.lane.b32.xlu0 %v1152, 96
        %v1743 = vpop.permute.xlu0 %1742
        %1744 = vrot.lane.b32.xlu0 %v1153, 96
        %v1745 = vpop.permute.xlu0 %1744
        %1746 = vrot.lane.b32.xlu0 %v1154, 96
        %v1747 = vpop.permute.xlu0 %1746
        %1748 = vrot.lane.b32.xlu0 %v1155, 96
        %v1749 = vpop.permute.xlu0 %1748
        %1750 = vrot.lane.b32.xlu0 %v1156, 96
        %v1751 = vpop.permute.xlu0 %1750
        %1752 = vrot.lane.b32.xlu0 %v1157, 96
        %v1753 = vpop.permute.xlu0 %1752
        %1754 = vrot.lane.b32.xlu0 %v1158, 96
        %v1755 = vpop.permute.xlu0 %1754
        %1756 = vrot.lane.b32.xlu0 %v1159, 96
        %v1757 = vpop.permute.xlu0 %1756
        %1758 = vrot.lane.b32.xlu0 %v1160, 96
        %v1759 = vpop.permute.xlu0 %1758
        %1760 = vrot.lane.b32.xlu0 %v1161, 96
        %v1761 = vpop.permute.xlu0 %1760
        %1762 = vrot.lane.b32.xlu0 %v1162, 96
        %v1763 = vpop.permute.xlu0 %1762
        %1764 = vrot.lane.b32.xlu0 %v1163, 96
        %v1765 = vpop.permute.xlu0 %1764
        %1766 = vrot.lane.b32.xlu0 %v1164, 96
        %v1767 = vpop.permute.xlu0 %1766
        %1768 = vrot.lane.b32.xlu0 %v1165, 96
        %v1769 = vpop.permute.xlu0 %1768
        %1770 = vrot.lane.b32.xlu0 %v1166, 96
        %v1771 = vpop.permute.xlu0 %1770
        %1772 = vrot.lane.b32.xlu0 %v1167, 96
        %v1773 = vpop.permute.xlu0 %1772
        %1774 = vrot.lane.b32.xlu0 %v1168, 96
        %v1775 = vpop.permute.xlu0 %1774
        %1776 = vrot.lane.b32.xlu0 %v1169, 96
        %v1777 = vpop.permute.xlu0 %1776
        %1778 = vrot.lane.b32.xlu0 %v1170, 96
        %v1779 = vpop.permute.xlu0 %1778
        %1780 = vrot.lane.b32.xlu0 %v1171, 96
        %v1781 = vpop.permute.xlu0 %1780
        %1782 = vrot.lane.b32.xlu0 %v1172, 96
        %v1783 = vpop.permute.xlu0 %1782
        %v1784 = vsel %vm1189, %v1721, 0
        %v1786 = vsel %vm1189, %v1723, 0
        %v1788 = vsel %vm1189, %v1725, 0
        %v1790 = vsel %vm1189, %v1727, 0
        %v1792 = vsel %vm1189, %v1729, 0
        %v1794 = vsel %vm1189, %v1731, 0
        %v1796 = vsel %vm1189, %v1733, 0
        %v1798 = vsel %vm1189, %v1735, 0
        %v1800 = vsel %vm1189, %v1737, 0
        %v1802 = vsel %vm1189, %v1739, 0
        %v1804 = vsel %vm1189, %v1741, 0
        %v1806 = vsel %vm1189, %v1743, 0
        %v1808 = vsel %vm1189, %v1745, 0
        %v1810 = vsel %vm1189, %v1747, 0
        %v1812 = vsel %vm1189, %v1749, 0
        %v1814 = vsel %vm1189, %v1751, 0
        %v1816 = vsel %vm1189, %v1753, 0
        %v1818 = vsel %vm1189, %v1755, 0
        %v1820 = vsel %vm1189, %v1757, 0
        %v1822 = vsel %vm1189, %v1759, 0
        %v1824 = vsel %vm1189, %v1761, 0
        %v1826 = vsel %vm1189, %v1763, 0
        %v1828 = vsel %vm1189, %v1765, 0
        %v1830 = vsel %vm1189, %v1767, 0
        %v1832 = vsel %vm1189, %v1769, 0
        %v1834 = vsel %vm1189, %v1771, 0
        %v1836 = vsel %vm1189, %v1773, 0
        %v1838 = vsel %vm1189, %v1775, 0
        %v1840 = vsel %vm1189, %v1777, 0
        %v1842 = vsel %vm1189, %v1779, 0
        %v1844 = vsel %vm1189, %v1781, 0
        %v1846 = vsel %vm1189, %v1783, 0
        %1848 = vmatprep.subr.mxu0 0.0
        %1849 = vmatpush1.xpose.msra.mxu0 %v1846
        %1850 = vmatprep.subr.mxu0 0.0
        %1851 = vmatpush1.xpose.msra.mxu0 %v1844
        %1852 = vmatprep.subr.mxu0 0.0
        %1853 = vmatpush1.xpose.msra.mxu0 %v1842
        %1854 = vmatprep.subr.mxu0 0.0
        %1855 = vmatpush1.xpose.msra.mxu0 %v1840
        %1856 = vmatprep.subr.mxu0 0.0
        %1857 = vmatpush1.xpose.msra.mxu0 %v1838
        %1858 = vmatprep.subr.mxu0 0.0
        %1859 = vmatpush1.xpose.msra.mxu0 %v1836
        %1860 = vmatprep.subr.mxu0 0.0
        %1861 = vmatpush1.xpose.msra.mxu0 %v1834
        %1862 = vmatprep.subr.mxu0 0.0
        %1863 = vmatpush1.xpose.msra.mxu0 %v1832
        %1864 = vmatprep.subr.mxu0 0.0
        %1865 = vmatpush1.xpose.msra.mxu0 %v1830
        %1866 = vmatprep.subr.mxu0 0.0
        %1867 = vmatpush1.xpose.msra.mxu0 %v1828
        %1868 = vmatprep.subr.mxu0 0.0
        %1869 = vmatpush1.xpose.msra.mxu0 %v1826
        %1870 = vmatprep.subr.mxu0 0.0
        %1871 = vmatpush1.xpose.msra.mxu0 %v1824
        %1872 = vmatprep.subr.mxu0 0.0
        %1873 = vmatpush1.xpose.msra.mxu0 %v1822
        %1874 = vmatprep.subr.mxu0 0.0
        %1875 = vmatpush1.xpose.msra.mxu0 %v1820
        %1876 = vmatprep.subr.mxu0 0.0
        %1877 = vmatpush1.xpose.msra.mxu0 %v1818
        %1878 = vmatprep.subr.mxu0 0.0
        %1879 = vmatpush1.xpose.msra.mxu0 %v1816
        %1880 = vmatprep.subr.mxu0 0.0
        %1881 = vmatpush2.xpose.msra.mxu0 0.0
        %1882 = vmatprep.subr.mxu0 0.0
        %1883 = vmatpush2.xpose.msra.mxu0 0.0
        %1884 = vmatprep.subr.mxu0 0.0
        %1885 = vmatpush2.xpose.msra.mxu0 0.0
        %1886 = vmatprep.subr.mxu0 0.0
        %1887 = vmatpush2.xpose.msra.mxu0 0.0
        %1888 = vmatprep.subr.mxu0 0.0
        %1889 = vmatpush2.xpose.msra.mxu0 0.0
        %1890 = vmatprep.subr.mxu0 0.0
        %1891 = vmatpush2.xpose.msra.mxu0 0.0
        %1892 = vmatprep.subr.mxu0 0.0
        %1893 = vmatpush2.xpose.msra.mxu0 0.0
        %1894 = vmatprep.subr.mxu0 0.0
        %1895 = vmatpush2.xpose.msra.mxu0 0.0
        %1896 = vmatprep.subr.mxu0 0.0
        %1897 = vmatpush2.xpose.msra.mxu0 0.0
        %1898 = vmatprep.subr.mxu0 0.0
        %1899 = vmatpush2.xpose.msra.mxu0 0.0
        %1900 = vmatprep.subr.mxu0 0.0
        %1901 = vmatpush2.xpose.msra.mxu0 0.0
        %1902 = vmatprep.subr.mxu0 0.0
        %1903 = vmatpush2.xpose.msra.mxu0 0.0
        %1904 = vmatprep.subr.mxu0 0.0
        %1905 = vmatpush2.xpose.msra.mxu0 0.0
        %1906 = vmatprep.subr.mxu0 0.0
        %1907 = vmatpush2.xpose.msra.mxu0 0.0
        %1908 = vmatprep.subr.mxu0 0.0
        %1909 = vmatpush2.xpose.msra.mxu0 0.0
        %1910 = vmatprep.subr.mxu0 0.0
        %1911 = vmatpush2.xpose.msra.mxu0 0.0
        %1912 = vmatprep.mubr.f32.mxu0 0.0
        %1913 = vmatmul.mubr.f32.gmra.mxu0 %v1784
        %v1914 = vpop.f32.mrf.mxu0
        %v1915 = vadd.f32 0.0, %v1914
        %v1916 = vpop.f32.mrf.mxu0
        %1917 = vmatprep.mubr.f32.mxu0 0.0
        %1918 = vmatmul.mubr.f32.gmra.mxu0 %v1786
        %v1919 = vpop.f32.mrf.mxu0
        %v1920 = vadd.f32 0.0, %v1919
        %v1921 = vpop.f32.mrf.mxu0
        %1922 = vmatprep.mubr.f32.mxu0 0.0
        %1923 = vmatmul.mubr.f32.gmra.mxu0 %v1788
        %v1924 = vpop.f32.mrf.mxu0
        %v1925 = vadd.f32 0.0, %v1924
        %v1926 = vpop.f32.mrf.mxu0
        %1927 = vmatprep.mubr.f32.mxu0 0.0
        %1928 = vmatmul.mubr.f32.gmra.mxu0 %v1790
        %v1929 = vpop.f32.mrf.mxu0
        %v1930 = vadd.f32 0.0, %v1929
        %v1931 = vpop.f32.mrf.mxu0
        %1932 = vmatprep.mubr.f32.mxu0 0.0
        %1933 = vmatmul.mubr.f32.gmra.mxu0 %v1792
        %v1934 = vpop.f32.mrf.mxu0
        %v1935 = vadd.f32 0.0, %v1934
        %v1936 = vpop.f32.mrf.mxu0
        %1937 = vmatprep.mubr.f32.mxu0 0.0
        %1938 = vmatmul.mubr.f32.gmra.mxu0 %v1794
        %v1939 = vpop.f32.mrf.mxu0
        %v1940 = vadd.f32 0.0, %v1939
        %v1941 = vpop.f32.mrf.mxu0
        %1942 = vmatprep.mubr.f32.mxu0 0.0
        %1943 = vmatmul.mubr.f32.gmra.mxu0 %v1796
        %v1944 = vpop.f32.mrf.mxu0
        %v1945 = vadd.f32 0.0, %v1944
        %v1946 = vpop.f32.mrf.mxu0
        %1947 = vmatprep.mubr.f32.mxu0 0.0
        %1948 = vmatmul.mubr.f32.gmra.mxu0 %v1798
        %v1949 = vpop.f32.mrf.mxu0
        %v1950 = vadd.f32 0.0, %v1949
        %v1951 = vpop.f32.mrf.mxu0
        %1952 = vmatprep.mubr.f32.mxu0 0.0
        %1953 = vmatmul.mubr.f32.gmra.mxu0 %v1800
        %v1954 = vpop.f32.mrf.mxu0
        %v1955 = vadd.f32 0.0, %v1954
        %v1956 = vpop.f32.mrf.mxu0
        %1957 = vmatprep.mubr.f32.mxu0 0.0
        %1958 = vmatmul.mubr.f32.gmra.mxu0 %v1802
        %v1959 = vpop.f32.mrf.mxu0
        %v1960 = vadd.f32 0.0, %v1959
        %v1961 = vpop.f32.mrf.mxu0
        %1962 = vmatprep.mubr.f32.mxu0 0.0
        %1963 = vmatmul.mubr.f32.gmra.mxu0 %v1804
        %v1964 = vpop.f32.mrf.mxu0
        %v1965 = vadd.f32 0.0, %v1964
        %v1966 = vpop.f32.mrf.mxu0
        %1967 = vmatprep.mubr.f32.mxu0 0.0
        %1968 = vmatmul.mubr.f32.gmra.mxu0 %v1806
        %v1969 = vpop.f32.mrf.mxu0
        %v1970 = vadd.f32 0.0, %v1969
        %v1971 = vpop.f32.mrf.mxu0
        %1972 = vmatprep.mubr.f32.mxu0 0.0
        %1973 = vmatmul.mubr.f32.gmra.mxu0 %v1808
        %v1974 = vpop.f32.mrf.mxu0
        %v1975 = vadd.f32 0.0, %v1974
        %v1976 = vpop.f32.mrf.mxu0
        %1977 = vmatprep.mubr.f32.mxu0 0.0
        %1978 = vmatmul.mubr.f32.gmra.mxu0 %v1810
        %v1979 = vpop.f32.mrf.mxu0
        %v1980 = vadd.f32 0.0, %v1979
        %v1981 = vpop.f32.mrf.mxu0
        %1982 = vmatprep.mubr.f32.mxu0 0.0
        %1983 = vmatmul.mubr.f32.gmra.mxu0 %v1812
        %v1984 = vpop.f32.mrf.mxu0
        %v1985 = vadd.f32 0.0, %v1984
        %v1986 = vpop.f32.mrf.mxu0
        %1987 = vmatprep.mubr.f32.mxu0 0.0
        %1988 = vmatmul.mubr.f32.gmra.mxu0 %v1814
        %v1989 = vpop.f32.mrf.mxu0
        %v1990 = vadd.f32 0.0, %v1989
        %v1991 = vpop.f32.mrf.mxu0
        %1992 = vdwg.mxu0
        %1993 = vmax.xlane.f32.xlu0 %v1915
        %v1994 = vpop.xlane.xlu0 %1993
        %1995 = vmax.xlane.f32.xlu0 %v1920
        %v1996 = vpop.xlane.xlu0 %1995
        %1997 = vmax.xlane.f32.xlu0 %v1925
        %v1998 = vpop.xlane.xlu0 %1997
        %1999 = vmax.xlane.f32.xlu0 %v1930
        %v2000 = vpop.xlane.xlu0 %1999
        %2001 = vmax.xlane.f32.xlu0 %v1935
        %v2002 = vpop.xlane.xlu0 %2001
        %2003 = vmax.xlane.f32.xlu0 %v1940
        %v2004 = vpop.xlane.xlu0 %2003
        %2005 = vmax.xlane.f32.xlu0 %v1945
        %v2006 = vpop.xlane.xlu0 %2005
        %2007 = vmax.xlane.f32.xlu0 %v1950
        %v2008 = vpop.xlane.xlu0 %2007
        %2009 = vmax.xlane.f32.xlu0 %v1955
        %v2010 = vpop.xlane.xlu0 %2009
        %2011 = vmax.xlane.f32.xlu0 %v1960
        %v2012 = vpop.xlane.xlu0 %2011
        %2013 = vmax.xlane.f32.xlu0 %v1965
        %v2014 = vpop.xlane.xlu0 %2013
        %2015 = vmax.xlane.f32.xlu0 %v1970
        %v2016 = vpop.xlane.xlu0 %2015
        %2017 = vmax.xlane.f32.xlu0 %v1975
        %v2018 = vpop.xlane.xlu0 %2017
        %2019 = vmax.xlane.f32.xlu0 %v1980
        %v2020 = vpop.xlane.xlu0 %2019
        %2021 = vmax.xlane.f32.xlu0 %v1985
        %v2022 = vpop.xlane.xlu0 %2021
        %2023 = vmax.xlane.f32.xlu0 %v1990
        %v2024 = vpop.xlane.xlu0 %2023
        %v2025 = vsub.f32 %v1915, %v1994
        %v2026 = vsub.f32 %v1920, %v1996
        %v2027 = vsub.f32 %v1925, %v1998
        %v2028 = vsub.f32 %v1930, %v2000
        %v2029 = vsub.f32 %v1935, %v2002
        %v2030 = vsub.f32 %v1940, %v2004
        %v2031 = vsub.f32 %v1945, %v2006
        %v2032 = vsub.f32 %v1950, %v2008
        %v2033 = vsub.f32 %v1955, %v2010
        %v2034 = vsub.f32 %v1960, %v2012
        %v2035 = vsub.f32 %v1965, %v2014
        %v2036 = vsub.f32 %v1970, %v2016
        %v2037 = vsub.f32 %v1975, %v2018
        %v2038 = vsub.f32 %v1980, %v2020
        %v2039 = vsub.f32 %v1985, %v2022
        %v2040 = vsub.f32 %v1990, %v2024
        %v2041 = vmul.f32 %v2025, 1.442695
        %v2042 = vpow.pop %v2041
        %v2043 = vmul.f32 %v2026, 1.442695
        %v2044 = vpow.pop %v2043
        %v2045 = vmul.f32 %v2027, 1.442695
        %v2046 = vpow.pop %v2045
        %v2047 = vmul.f32 %v2028, 1.442695
        %v2048 = vpow.pop %v2047
        %v2049 = vmul.f32 %v2029, 1.442695
        %v2050 = vpow.pop %v2049
        %v2051 = vmul.f32 %v2030, 1.442695
        %v2052 = vpow.pop %v2051
        %v2053 = vmul.f32 %v2031, 1.442695
        %v2054 = vpow.pop %v2053
        %v2055 = vmul.f32 %v2032, 1.442695
        %v2056 = vpow.pop %v2055
        %v2057 = vmul.f32 %v2033, 1.442695
        %v2058 = vpow.pop %v2057
        %v2059 = vmul.f32 %v2034, 1.442695
        %v2060 = vpow.pop %v2059
        %v2061 = vmul.f32 %v2035, 1.442695
        %v2062 = vpow.pop %v2061
        %v2063 = vmul.f32 %v2036, 1.442695
        %v2064 = vpow.pop %v2063
        %v2065 = vmul.f32 %v2037, 1.442695
        %v2066 = vpow.pop %v2065
        %v2067 = vmul.f32 %v2038, 1.442695
        %v2068 = vpow.pop %v2067
        %v2069 = vmul.f32 %v2039, 1.442695
        %v2070 = vpow.pop %v2069
        %v2071 = vmul.f32 %v2040, 1.442695
        %v2072 = vpow.pop %v2071
        %2073 = vadd.xlane.f32.xlu0 %v2042
        %v2074 = vpop.xlane.xlu0 %2073
        %2075 = vadd.xlane.f32.xlu0 %v2044
        %v2076 = vpop.xlane.xlu0 %2075
        %2077 = vadd.xlane.f32.xlu0 %v2046
        %v2078 = vpop.xlane.xlu0 %2077
        %2079 = vadd.xlane.f32.xlu0 %v2048
        %v2080 = vpop.xlane.xlu0 %2079
        %2081 = vadd.xlane.f32.xlu0 %v2050
        %v2082 = vpop.xlane.xlu0 %2081
        %2083 = vadd.xlane.f32.xlu0 %v2052
        %v2084 = vpop.xlane.xlu0 %2083
        %2085 = vadd.xlane.f32.xlu0 %v2054
        %v2086 = vpop.xlane.xlu0 %2085
        %2087 = vadd.xlane.f32.xlu0 %v2056
        %v2088 = vpop.xlane.xlu0 %2087
        %2089 = vadd.xlane.f32.xlu0 %v2058
        %v2090 = vpop.xlane.xlu0 %2089
        %2091 = vadd.xlane.f32.xlu0 %v2060
        %v2092 = vpop.xlane.xlu0 %2091
        %2093 = vadd.xlane.f32.xlu0 %v2062
        %v2094 = vpop.xlane.xlu0 %2093
        %2095 = vadd.xlane.f32.xlu0 %v2064
        %v2096 = vpop.xlane.xlu0 %2095
        %2097 = vadd.xlane.f32.xlu0 %v2066
        %v2098 = vpop.xlane.xlu0 %2097
        %2099 = vadd.xlane.f32.xlu0 %v2068
        %v2100 = vpop.xlane.xlu0 %2099
        %2101 = vadd.xlane.f32.xlu0 %v2070
        %v2102 = vpop.xlane.xlu0 %2101
        %2103 = vadd.xlane.f32.xlu0 %v2072
        %v2104 = vpop.xlane.xlu0 %2103
        %v2105 = vrcp.pop %v2074
        %v2106 = vrcp.pop %v2076
        %v2107 = vrcp.pop %v2078
        %v2108 = vrcp.pop %v2080
        %v2109 = vrcp.pop %v2082
        %v2110 = vrcp.pop %v2084
        %v2111 = vrcp.pop %v2086
        %v2112 = vrcp.pop %v2088
        %v2113 = vrcp.pop %v2090
        %v2114 = vrcp.pop %v2092
        %v2115 = vrcp.pop %v2094
        %v2116 = vrcp.pop %v2096
        %v2117 = vrcp.pop %v2098
        %v2118 = vrcp.pop %v2100
        %v2119 = vrcp.pop %v2102
        %v2120 = vrcp.pop %v2104
        %v2121 = vmul.f32 %v2042, %v2105
        %v2122 = vmul.f32 %v2044, %v2106
        %v2123 = vmul.f32 %v2046, %v2107
        %v2124 = vmul.f32 %v2048, %v2108
        %v2125 = vmul.f32 %v2050, %v2109
        %v2126 = vmul.f32 %v2052, %v2110
        %v2127 = vmul.f32 %v2054, %v2111
        %v2128 = vmul.f32 %v2056, %v2112
        %v2129 = vmul.f32 %v2058, %v2113
        %v2130 = vmul.f32 %v2060, %v2114
        %v2131 = vmul.f32 %v2062, %v2115
        %v2132 = vmul.f32 %v2064, %v2116
        %v2133 = vmul.f32 %v2066, %v2117
        %v2134 = vmul.f32 %v2068, %v2118
        %v2135 = vmul.f32 %v2070, %v2119
        %v2136 = vmul.f32 %v2072, %v2120
        %2153 = vrot.lane.b32.xlu0 %v1173, 96
        %v2154 = vpop.permute.xlu0 %2153
        %2155 = vrot.lane.b32.xlu0 %v1174, 96
        %v2156 = vpop.permute.xlu0 %2155
        %2157 = vrot.lane.b32.xlu0 %v1175, 96
        %v2158 = vpop.permute.xlu0 %2157
        %2159 = vrot.lane.b32.xlu0 %v1176, 96
        %v2160 = vpop.permute.xlu0 %2159
        %2161 = vrot.lane.b32.xlu0 %v1177, 96
        %v2162 = vpop.permute.xlu0 %2161
        %2163 = vrot.lane.b32.xlu0 %v1178, 96
        %v2164 = vpop.permute.xlu0 %2163
        %2165 = vrot.lane.b32.xlu0 %v1179, 96
        %v2166 = vpop.permute.xlu0 %2165
        %2167 = vrot.lane.b32.xlu0 %v1180, 96
        %v2168 = vpop.permute.xlu0 %2167
        %2169 = vrot.lane.b32.xlu0 %v1181, 96
        %v2170 = vpop.permute.xlu0 %2169
        %2171 = vrot.lane.b32.xlu0 %v1182, 96
        %v2172 = vpop.permute.xlu0 %2171
        %2173 = vrot.lane.b32.xlu0 %v1183, 96
        %v2174 = vpop.permute.xlu0 %2173
        %2175 = vrot.lane.b32.xlu0 %v1184, 96
        %v2176 = vpop.permute.xlu0 %2175
        %2177 = vrot.lane.b32.xlu0 %v1185, 96
        %v2178 = vpop.permute.xlu0 %2177
        %2179 = vrot.lane.b32.xlu0 %v1186, 96
        %v2180 = vpop.permute.xlu0 %2179
        %2181 = vrot.lane.b32.xlu0 %v1187, 96
        %v2182 = vpop.permute.xlu0 %2181
        %2183 = vrot.lane.b32.xlu0 %v1188, 96
        %v2184 = vpop.permute.xlu0 %2183
        %2201 = vmatprep.subr.mxu0 0.0
        %2202 = vmatpush1.msra.mxu0 %v2184
        %2203 = vmatprep.subr.mxu0 0.0
        %2204 = vmatpush1.msra.mxu0 %v2182
        %2205 = vmatprep.subr.mxu0 0.0
        %2206 = vmatpush1.msra.mxu0 %v2180
        %2207 = vmatprep.subr.mxu0 0.0
        %2208 = vmatpush1.msra.mxu0 %v2178
        %2209 = vmatprep.subr.mxu0 0.0
        %2210 = vmatpush1.msra.mxu0 %v2176
        %2211 = vmatprep.subr.mxu0 0.0
        %2212 = vmatpush1.msra.mxu0 %v2174
        %2213 = vmatprep.subr.mxu0 0.0
        %2214 = vmatpush1.msra.mxu0 %v2172
        %2215 = vmatprep.subr.mxu0 0.0
        %2216 = vmatpush1.msra.mxu0 %v2170
        %2217 = vmatprep.subr.mxu0 0.0
        %2218 = vmatpush1.msra.mxu0 %v2168
        %2219 = vmatprep.subr.mxu0 0.0
        %2220 = vmatpush1.msra.mxu0 %v2166
        %2221 = vmatprep.subr.mxu0 0.0
        %2222 = vmatpush1.msra.mxu0 %v2164
        %2223 = vmatprep.subr.mxu0 0.0
        %2224 = vmatpush1.msra.mxu0 %v2162
        %2225 = vmatprep.subr.mxu0 0.0
        %2226 = vmatpush1.msra.mxu0 %v2160
        %2227 = vmatprep.subr.mxu0 0.0
        %2228 = vmatpush1.msra.mxu0 %v2158
        %2229 = vmatprep.subr.mxu0 0.0
        %2230 = vmatpush1.msra.mxu0 %v2156
        %2231 = vmatprep.subr.mxu0 0.0
        %2232 = vmatpush1.msra.mxu0 %v2154
        %2233 = vmatprep.subr.mxu0 0.0
        %2234 = vmatpush2.msra.mxu0 0.0
        %2235 = vmatprep.subr.mxu0 0.0
        %2236 = vmatpush2.msra.mxu0 0.0
        %2237 = vmatprep.subr.mxu0 0.0
        %2238 = vmatpush2.msra.mxu0 0.0
        %2239 = vmatprep.subr.mxu0 0.0
        %2240 = vmatpush2.msra.mxu0 0.0
        %2241 = vmatprep.subr.mxu0 0.0
        %2242 = vmatpush2.msra.mxu0 0.0
        %2243 = vmatprep.subr.mxu0 0.0
        %2244 = vmatpush2.msra.mxu0 0.0
        %2245 = vmatprep.subr.mxu0 0.0
        %2246 = vmatpush2.msra.mxu0 0.0
        %2247 = vmatprep.subr.mxu0 0.0
        %2248 = vmatpush2.msra.mxu0 0.0
        %2249 = vmatprep.subr.mxu0 0.0
        %2250 = vmatpush2.msra.mxu0 0.0
        %2251 = vmatprep.subr.mxu0 0.0
        %2252 = vmatpush2.msra.mxu0 0.0
        %2253 = vmatprep.subr.mxu0 0.0
        %2254 = vmatpush2.msra.mxu0 0.0
        %2255 = vmatprep.subr.mxu0 0.0
        %2256 = vmatpush2.msra.mxu0 0.0
        %2257 = vmatprep.subr.mxu0 0.0
        %2258 = vmatpush2.msra.mxu0 0.0
        %2259 = vmatprep.subr.mxu0 0.0
        %2260 = vmatpush2.msra.mxu0 0.0
        %2261 = vmatprep.subr.mxu0 0.0
        %2262 = vmatpush2.msra.mxu0 0.0
        %2263 = vmatprep.subr.mxu0 0.0
        %2264 = vmatpush2.msra.mxu0 0.0
        %2265 = vmatprep.mubr.f32.mxu0 0.0
        %2266 = vmatmul.mubr.f32.gmra.mxu0 %v2121
        %v2267 = vpop.f32.mrf.mxu0
        %v2268 = vadd.f32 0.0, %v2267
        %v2269 = vpop.f32.mrf.mxu0
        %2270 = vmatprep.mubr.f32.mxu0 0.0
        %2271 = vmatmul.mubr.f32.gmra.mxu0 %v2122
        %v2272 = vpop.f32.mrf.mxu0
        %v2273 = vadd.f32 0.0, %v2272
        %v2274 = vpop.f32.mrf.mxu0
        %2275 = vmatprep.mubr.f32.mxu0 0.0
        %2276 = vmatmul.mubr.f32.gmra.mxu0 %v2123
        %v2277 = vpop.f32.mrf.mxu0
        %v2278 = vadd.f32 0.0, %v2277
        %v2279 = vpop.f32.mrf.mxu0
        %2280 = vmatprep.mubr.f32.mxu0 0.0
        %2281 = vmatmul.mubr.f32.gmra.mxu0 %v2124
        %v2282 = vpop.f32.mrf.mxu0
        %v2283 = vadd.f32 0.0, %v2282
        %v2284 = vpop.f32.mrf.mxu0
        %2285 = vmatprep.mubr.f32.mxu0 0.0
        %2286 = vmatmul.mubr.f32.gmra.mxu0 %v2125
        %v2287 = vpop.f32.mrf.mxu0
        %v2288 = vadd.f32 0.0, %v2287
        %v2289 = vpop.f32.mrf.mxu0
        %2290 = vmatprep.mubr.f32.mxu0 0.0
        %2291 = vmatmul.mubr.f32.gmra.mxu0 %v2126
        %v2292 = vpop.f32.mrf.mxu0
        %v2293 = vadd.f32 0.0, %v2292
        %v2294 = vpop.f32.mrf.mxu0
        %2295 = vmatprep.mubr.f32.mxu0 0.0
        %2296 = vmatmul.mubr.f32.gmra.mxu0 %v2127
        %v2297 = vpop.f32.mrf.mxu0
        %v2298 = vadd.f32 0.0, %v2297
        %v2299 = vpop.f32.mrf.mxu0
        %2300 = vmatprep.mubr.f32.mxu0 0.0
        %2301 = vmatmul.mubr.f32.gmra.mxu0 %v2128
        %v2302 = vpop.f32.mrf.mxu0
        %v2303 = vadd.f32 0.0, %v2302
        %v2304 = vpop.f32.mrf.mxu0
        %2305 = vmatprep.mubr.f32.mxu0 0.0
        %2306 = vmatmul.mubr.f32.gmra.mxu0 %v2129
        %v2307 = vpop.f32.mrf.mxu0
        %v2308 = vadd.f32 0.0, %v2307
        %v2309 = vpop.f32.mrf.mxu0
        %2310 = vmatprep.mubr.f32.mxu0 0.0
        %2311 = vmatmul.mubr.f32.gmra.mxu0 %v2130
        %v2312 = vpop.f32.mrf.mxu0
        %v2313 = vadd.f32 0.0, %v2312
        %v2314 = vpop.f32.mrf.mxu0
        %2315 = vmatprep.mubr.f32.mxu0 0.0
        %2316 = vmatmul.mubr.f32.gmra.mxu0 %v2131
        %v2317 = vpop.f32.mrf.mxu0
        %v2318 = vadd.f32 0.0, %v2317
        %v2319 = vpop.f32.mrf.mxu0
        %2320 = vmatprep.mubr.f32.mxu0 0.0
        %2321 = vmatmul.mubr.f32.gmra.mxu0 %v2132
        %v2322 = vpop.f32.mrf.mxu0
        %v2323 = vadd.f32 0.0, %v2322
        %v2324 = vpop.f32.mrf.mxu0
        %2325 = vmatprep.mubr.f32.mxu0 0.0
        %2326 = vmatmul.mubr.f32.gmra.mxu0 %v2133
        %v2327 = vpop.f32.mrf.mxu0
        %v2328 = vadd.f32 0.0, %v2327
        %v2329 = vpop.f32.mrf.mxu0
        %2330 = vmatprep.mubr.f32.mxu0 0.0
        %2331 = vmatmul.mubr.f32.gmra.mxu0 %v2134
        %v2332 = vpop.f32.mrf.mxu0
        %v2333 = vadd.f32 0.0, %v2332
        %v2334 = vpop.f32.mrf.mxu0
        %2335 = vmatprep.mubr.f32.mxu0 0.0
        %2336 = vmatmul.mubr.f32.gmra.mxu0 %v2135
        %v2337 = vpop.f32.mrf.mxu0
        %v2338 = vadd.f32 0.0, %v2337
        %v2339 = vpop.f32.mrf.mxu0
        %2340 = vmatprep.mubr.f32.mxu0 0.0
        %2341 = vmatmul.mubr.f32.gmra.mxu0 %v2136
        %v2342 = vpop.f32.mrf.mxu0
        %v2343 = vadd.f32 0.0, %v2342
        %v2344 = vpop.f32.mrf.mxu0
        %2345 = vdwg.mxu0
        %2346 = vrot.lane.b32.xlu0 %v1141, 64
        %v2347 = vpop.permute.xlu0 %2346
        %2348 = vrot.lane.b32.xlu0 %v1142, 64
        %v2349 = vpop.permute.xlu0 %2348
        %2350 = vrot.lane.b32.xlu0 %v1143, 64
        %v2351 = vpop.permute.xlu0 %2350
        %2352 = vrot.lane.b32.xlu0 %v1144, 64
        %v2353 = vpop.permute.xlu0 %2352
        %2354 = vrot.lane.b32.xlu0 %v1145, 64
        %v2355 = vpop.permute.xlu0 %2354
        %2356 = vrot.lane.b32.xlu0 %v1146, 64
        %v2357 = vpop.permute.xlu0 %2356
        %2358 = vrot.lane.b32.xlu0 %v1147, 64
        %v2359 = vpop.permute.xlu0 %2358
        %2360 = vrot.lane.b32.xlu0 %v1148, 64
        %v2361 = vpop.permute.xlu0 %2360
        %2362 = vrot.lane.b32.xlu0 %v1149, 64
        %v2363 = vpop.permute.xlu0 %2362
        %2364 = vrot.lane.b32.xlu0 %v1150, 64
        %v2365 = vpop.permute.xlu0 %2364
        %2366 = vrot.lane.b32.xlu0 %v1151, 64
        %v2367 = vpop.permute.xlu0 %2366
        %2368 = vrot.lane.b32.xlu0 %v1152, 64
        %v2369 = vpop.permute.xlu0 %2368
        %2370 = vrot.lane.b32.xlu0 %v1153, 64
        %v2371 = vpop.permute.xlu0 %2370
        %2372 = vrot.lane.b32.xlu0 %v1154, 64
        %v2373 = vpop.permute.xlu0 %2372
        %2374 = vrot.lane.b32.xlu0 %v1155, 64
        %v2375 = vpop.permute.xlu0 %2374
        %2376 = vrot.lane.b32.xlu0 %v1156, 64
        %v2377 = vpop.permute.xlu0 %2376
        %2378 = vrot.lane.b32.xlu0 %v1157, 64
        %v2379 = vpop.permute.xlu0 %2378
        %2380 = vrot.lane.b32.xlu0 %v1158, 64
        %v2381 = vpop.permute.xlu0 %2380
        %2382 = vrot.lane.b32.xlu0 %v1159, 64
        %v2383 = vpop.permute.xlu0 %2382
        %2384 = vrot.lane.b32.xlu0 %v1160, 64
        %v2385 = vpop.permute.xlu0 %2384
        %2386 = vrot.lane.b32.xlu0 %v1161, 64
        %v2387 = vpop.permute.xlu0 %2386
        %2388 = vrot.lane.b32.xlu0 %v1162, 64
        %v2389 = vpop.permute.xlu0 %2388
        %2390 = vrot.lane.b32.xlu0 %v1163, 64
        %v2391 = vpop.permute.xlu0 %2390
        %2392 = vrot.lane.b32.xlu0 %v1164, 64
        %v2393 = vpop.permute.xlu0 %2392
        %2394 = vrot.lane.b32.xlu0 %v1165, 64
        %v2395 = vpop.permute.xlu0 %2394
        %2396 = vrot.lane.b32.xlu0 %v1166, 64
        %v2397 = vpop.permute.xlu0 %2396
        %2398 = vrot.lane.b32.xlu0 %v1167, 64
        %v2399 = vpop.permute.xlu0 %2398
        %2400 = vrot.lane.b32.xlu0 %v1168, 64
        %v2401 = vpop.permute.xlu0 %2400
        %2402 = vrot.lane.b32.xlu0 %v1169, 64
        %v2403 = vpop.permute.xlu0 %2402
        %2404 = vrot.lane.b32.xlu0 %v1170, 64
        %v2405 = vpop.permute.xlu0 %2404
        %2406 = vrot.lane.b32.xlu0 %v1171, 64
        %v2407 = vpop.permute.xlu0 %2406
        %2408 = vrot.lane.b32.xlu0 %v1172, 64
        %v2409 = vpop.permute.xlu0 %2408
        %v2410 = vsel %vm1189, %v2347, 0
        %v2412 = vsel %vm1189, %v2349, 0
        %v2414 = vsel %vm1189, %v2351, 0
        %v2416 = vsel %vm1189, %v2353, 0
        %v2418 = vsel %vm1189, %v2355, 0
        %v2420 = vsel %vm1189, %v2357, 0
        %v2422 = vsel %vm1189, %v2359, 0
        %v2424 = vsel %vm1189, %v2361, 0
        %v2426 = vsel %vm1189, %v2363, 0
        %v2428 = vsel %vm1189, %v2365, 0
        %v2430 = vsel %vm1189, %v2367, 0
        %v2432 = vsel %vm1189, %v2369, 0
        %v2434 = vsel %vm1189, %v2371, 0
        %v2436 = vsel %vm1189, %v2373, 0
        %v2438 = vsel %vm1189, %v2375, 0
        %v2440 = vsel %vm1189, %v2377, 0
        %v2442 = vsel %vm1189, %v2379, 0
        %v2444 = vsel %vm1189, %v2381, 0
        %v2446 = vsel %vm1189, %v2383, 0
        %v2448 = vsel %vm1189, %v2385, 0
        %v2450 = vsel %vm1189, %v2387, 0
        %v2452 = vsel %vm1189, %v2389, 0
        %v2454 = vsel %vm1189, %v2391, 0
        %v2456 = vsel %vm1189, %v2393, 0
        %v2458 = vsel %vm1189, %v2395, 0
        %v2460 = vsel %vm1189, %v2397, 0
        %v2462 = vsel %vm1189, %v2399, 0
        %v2464 = vsel %vm1189, %v2401, 0
        %v2466 = vsel %vm1189, %v2403, 0
        %v2468 = vsel %vm1189, %v2405, 0
        %v2470 = vsel %vm1189, %v2407, 0
        %v2472 = vsel %vm1189, %v2409, 0
        %2474 = vmatprep.subr.mxu0 0.0
        %2475 = vmatpush1.xpose.msra.mxu0 %v2472
        %2476 = vmatprep.subr.mxu0 0.0
        %2477 = vmatpush1.xpose.msra.mxu0 %v2470
        %2478 = vmatprep.subr.mxu0 0.0
        %2479 = vmatpush1.xpose.msra.mxu0 %v2468
        %2480 = vmatprep.subr.mxu0 0.0
        %2481 = vmatpush1.xpose.msra.mxu0 %v2466
        %2482 = vmatprep.subr.mxu0 0.0
        %2483 = vmatpush1.xpose.msra.mxu0 %v2464
        %2484 = vmatprep.subr.mxu0 0.0
        %2485 = vmatpush1.xpose.msra.mxu0 %v2462
        %2486 = vmatprep.subr.mxu0 0.0
        %2487 = vmatpush1.xpose.msra.mxu0 %v2460
        %2488 = vmatprep.subr.mxu0 0.0
        %2489 = vmatpush1.xpose.msra.mxu0 %v2458
        %2490 = vmatprep.subr.mxu0 0.0
        %2491 = vmatpush1.xpose.msra.mxu0 %v2456
        %2492 = vmatprep.subr.mxu0 0.0
        %2493 = vmatpush1.xpose.msra.mxu0 %v2454
        %2494 = vmatprep.subr.mxu0 0.0
        %2495 = vmatpush1.xpose.msra.mxu0 %v2452
        %2496 = vmatprep.subr.mxu0 0.0
        %2497 = vmatpush1.xpose.msra.mxu0 %v2450
        %2498 = vmatprep.subr.mxu0 0.0
        %2499 = vmatpush1.xpose.msra.mxu0 %v2448
        %2500 = vmatprep.subr.mxu0 0.0
        %2501 = vmatpush1.xpose.msra.mxu0 %v2446
        %2502 = vmatprep.subr.mxu0 0.0
        %2503 = vmatpush1.xpose.msra.mxu0 %v2444
        %2504 = vmatprep.subr.mxu0 0.0
        %2505 = vmatpush1.xpose.msra.mxu0 %v2442
        %2506 = vmatprep.subr.mxu0 0.0
        %2507 = vmatpush2.xpose.msra.mxu0 0.0
        %2508 = vmatprep.subr.mxu0 0.0
        %2509 = vmatpush2.xpose.msra.mxu0 0.0
        %2510 = vmatprep.subr.mxu0 0.0
        %2511 = vmatpush2.xpose.msra.mxu0 0.0
        %2512 = vmatprep.subr.mxu0 0.0
        %2513 = vmatpush2.xpose.msra.mxu0 0.0
        %2514 = vmatprep.subr.mxu0 0.0
        %2515 = vmatpush2.xpose.msra.mxu0 0.0
        %2516 = vmatprep.subr.mxu0 0.0
        %2517 = vmatpush2.xpose.msra.mxu0 0.0
        %2518 = vmatprep.subr.mxu0 0.0
        %2519 = vmatpush2.xpose.msra.mxu0 0.0
        %2520 = vmatprep.subr.mxu0 0.0
        %2521 = vmatpush2.xpose.msra.mxu0 0.0
        %2522 = vmatprep.subr.mxu0 0.0
        %2523 = vmatpush2.xpose.msra.mxu0 0.0
        %2524 = vmatprep.subr.mxu0 0.0
        %2525 = vmatpush2.xpose.msra.mxu0 0.0
        %2526 = vmatprep.subr.mxu0 0.0
        %2527 = vmatpush2.xpose.msra.mxu0 0.0
        %2528 = vmatprep.subr.mxu0 0.0
        %2529 = vmatpush2.xpose.msra.mxu0 0.0
        %2530 = vmatprep.subr.mxu0 0.0
        %2531 = vmatpush2.xpose.msra.mxu0 0.0
        %2532 = vmatprep.subr.mxu0 0.0
        %2533 = vmatpush2.xpose.msra.mxu0 0.0
        %2534 = vmatprep.subr.mxu0 0.0
        %2535 = vmatpush2.xpose.msra.mxu0 0.0
        %2536 = vmatprep.subr.mxu0 0.0
        %2537 = vmatpush2.xpose.msra.mxu0 0.0
        %2538 = vmatprep.mubr.f32.mxu0 0.0
        %2539 = vmatmul.mubr.f32.gmra.mxu0 %v2410
        %v2540 = vpop.f32.mrf.mxu0
        %v2541 = vadd.f32 0.0, %v2540
        %v2542 = vpop.f32.mrf.mxu0
        %2543 = vmatprep.mubr.f32.mxu0 0.0
        %2544 = vmatmul.mubr.f32.gmra.mxu0 %v2412
        %v2545 = vpop.f32.mrf.mxu0
        %v2546 = vadd.f32 0.0, %v2545
        %v2547 = vpop.f32.mrf.mxu0
        %2548 = vmatprep.mubr.f32.mxu0 0.0
        %2549 = vmatmul.mubr.f32.gmra.mxu0 %v2414
        %v2550 = vpop.f32.mrf.mxu0
        %v2551 = vadd.f32 0.0, %v2550
        %v2552 = vpop.f32.mrf.mxu0
        %2553 = vmatprep.mubr.f32.mxu0 0.0
        %2554 = vmatmul.mubr.f32.gmra.mxu0 %v2416
        %v2555 = vpop.f32.mrf.mxu0
        %v2556 = vadd.f32 0.0, %v2555
        %v2557 = vpop.f32.mrf.mxu0
        %2558 = vmatprep.mubr.f32.mxu0 0.0
        %2559 = vmatmul.mubr.f32.gmra.mxu0 %v2418
        %v2560 = vpop.f32.mrf.mxu0
        %v2561 = vadd.f32 0.0, %v2560
        %v2562 = vpop.f32.mrf.mxu0
        %2563 = vmatprep.mubr.f32.mxu0 0.0
        %2564 = vmatmul.mubr.f32.gmra.mxu0 %v2420
        %v2565 = vpop.f32.mrf.mxu0
        %v2566 = vadd.f32 0.0, %v2565
        %v2567 = vpop.f32.mrf.mxu0
        %2568 = vmatprep.mubr.f32.mxu0 0.0
        %2569 = vmatmul.mubr.f32.gmra.mxu0 %v2422
        %v2570 = vpop.f32.mrf.mxu0
        %v2571 = vadd.f32 0.0, %v2570
        %v2572 = vpop.f32.mrf.mxu0
        %2573 = vmatprep.mubr.f32.mxu0 0.0
        %2574 = vmatmul.mubr.f32.gmra.mxu0 %v2424
        %v2575 = vpop.f32.mrf.mxu0
        %v2576 = vadd.f32 0.0, %v2575
        %v2577 = vpop.f32.mrf.mxu0
        %2578 = vmatprep.mubr.f32.mxu0 0.0
        %2579 = vmatmul.mubr.f32.gmra.mxu0 %v2426
        %v2580 = vpop.f32.mrf.mxu0
        %v2581 = vadd.f32 0.0, %v2580
        %v2582 = vpop.f32.mrf.mxu0
        %2583 = vmatprep.mubr.f32.mxu0 0.0
        %2584 = vmatmul.mubr.f32.gmra.mxu0 %v2428
        %v2585 = vpop.f32.mrf.mxu0
        %v2586 = vadd.f32 0.0, %v2585
        %v2587 = vpop.f32.mrf.mxu0
        %2588 = vmatprep.mubr.f32.mxu0 0.0
        %2589 = vmatmul.mubr.f32.gmra.mxu0 %v2430
        %v2590 = vpop.f32.mrf.mxu0
        %v2591 = vadd.f32 0.0, %v2590
        %v2592 = vpop.f32.mrf.mxu0
        %2593 = vmatprep.mubr.f32.mxu0 0.0
        %2594 = vmatmul.mubr.f32.gmra.mxu0 %v2432
        %v2595 = vpop.f32.mrf.mxu0
        %v2596 = vadd.f32 0.0, %v2595
        %v2597 = vpop.f32.mrf.mxu0
        %2598 = vmatprep.mubr.f32.mxu0 0.0
        %2599 = vmatmul.mubr.f32.gmra.mxu0 %v2434
        %v2600 = vpop.f32.mrf.mxu0
        %v2601 = vadd.f32 0.0, %v2600
        %v2602 = vpop.f32.mrf.mxu0
        %2603 = vmatprep.mubr.f32.mxu0 0.0
        %2604 = vmatmul.mubr.f32.gmra.mxu0 %v2436
        %v2605 = vpop.f32.mrf.mxu0
        %v2606 = vadd.f32 0.0, %v2605
        %v2607 = vpop.f32.mrf.mxu0
        %2608 = vmatprep.mubr.f32.mxu0 0.0
        %2609 = vmatmul.mubr.f32.gmra.mxu0 %v2438
        %v2610 = vpop.f32.mrf.mxu0
        %v2611 = vadd.f32 0.0, %v2610
        %v2612 = vpop.f32.mrf.mxu0
        %2613 = vmatprep.mubr.f32.mxu0 0.0
        %2614 = vmatmul.mubr.f32.gmra.mxu0 %v2440
        %v2615 = vpop.f32.mrf.mxu0
        %v2616 = vadd.f32 0.0, %v2615
        %v2617 = vpop.f32.mrf.mxu0
        %2618 = vdwg.mxu0
        %2619 = vmax.xlane.f32.xlu0 %v2541
        %v2620 = vpop.xlane.xlu0 %2619
        %2621 = vmax.xlane.f32.xlu0 %v2546
        %v2622 = vpop.xlane.xlu0 %2621
        %2623 = vmax.xlane.f32.xlu0 %v2551
        %v2624 = vpop.xlane.xlu0 %2623
        %2625 = vmax.xlane.f32.xlu0 %v2556
        %v2626 = vpop.xlane.xlu0 %2625
        %2627 = vmax.xlane.f32.xlu0 %v2561
        %v2628 = vpop.xlane.xlu0 %2627
        %2629 = vmax.xlane.f32.xlu0 %v2566
        %v2630 = vpop.xlane.xlu0 %2629
        %2631 = vmax.xlane.f32.xlu0 %v2571
        %v2632 = vpop.xlane.xlu0 %2631
        %2633 = vmax.xlane.f32.xlu0 %v2576
        %v2634 = vpop.xlane.xlu0 %2633
        %2635 = vmax.xlane.f32.xlu0 %v2581
        %v2636 = vpop.xlane.xlu0 %2635
        %2637 = vmax.xlane.f32.xlu0 %v2586
        %v2638 = vpop.xlane.xlu0 %2637
        %2639 = vmax.xlane.f32.xlu0 %v2591
        %v2640 = vpop.xlane.xlu0 %2639
        %2641 = vmax.xlane.f32.xlu0 %v2596
        %v2642 = vpop.xlane.xlu0 %2641
        %2643 = vmax.xlane.f32.xlu0 %v2601
        %v2644 = vpop.xlane.xlu0 %2643
        %2645 = vmax.xlane.f32.xlu0 %v2606
        %v2646 = vpop.xlane.xlu0 %2645
        %2647 = vmax.xlane.f32.xlu0 %v2611
        %v2648 = vpop.xlane.xlu0 %2647
        %2649 = vmax.xlane.f32.xlu0 %v2616
        %v2650 = vpop.xlane.xlu0 %2649
        %v2651 = vsub.f32 %v2541, %v2620
        %v2652 = vsub.f32 %v2546, %v2622
        %v2653 = vsub.f32 %v2551, %v2624
        %v2654 = vsub.f32 %v2556, %v2626
        %v2655 = vsub.f32 %v2561, %v2628
        %v2656 = vsub.f32 %v2566, %v2630
        %v2657 = vsub.f32 %v2571, %v2632
        %v2658 = vsub.f32 %v2576, %v2634
        %v2659 = vsub.f32 %v2581, %v2636
        %v2660 = vsub.f32 %v2586, %v2638
        %v2661 = vsub.f32 %v2591, %v2640
        %v2662 = vsub.f32 %v2596, %v2642
        %v2663 = vsub.f32 %v2601, %v2644
        %v2664 = vsub.f32 %v2606, %v2646
        %v2665 = vsub.f32 %v2611, %v2648
        %v2666 = vsub.f32 %v2616, %v2650
        %v2667 = vmul.f32 %v2651, 1.442695
        %v2668 = vpow.pop %v2667
        %v2669 = vmul.f32 %v2652, 1.442695
        %v2670 = vpow.pop %v2669
        %v2671 = vmul.f32 %v2653, 1.442695
        %v2672 = vpow.pop %v2671
        %v2673 = vmul.f32 %v2654, 1.442695
        %v2674 = vpow.pop %v2673
        %v2675 = vmul.f32 %v2655, 1.442695
        %v2676 = vpow.pop %v2675
        %v2677 = vmul.f32 %v2656, 1.442695
        %v2678 = vpow.pop %v2677
        %v2679 = vmul.f32 %v2657, 1.442695
        %v2680 = vpow.pop %v2679
        %v2681 = vmul.f32 %v2658, 1.442695
        %v2682 = vpow.pop %v2681
        %v2683 = vmul.f32 %v2659, 1.442695
        %v2684 = vpow.pop %v2683
        %v2685 = vmul.f32 %v2660, 1.442695
        %v2686 = vpow.pop %v2685
        %v2687 = vmul.f32 %v2661, 1.442695
        %v2688 = vpow.pop %v2687
        %v2689 = vmul.f32 %v2662, 1.442695
        %v2690 = vpow.pop %v2689
        %v2691 = vmul.f32 %v2663, 1.442695
        %v2692 = vpow.pop %v2691
        %v2693 = vmul.f32 %v2664, 1.442695
        %v2694 = vpow.pop %v2693
        %v2695 = vmul.f32 %v2665, 1.442695
        %v2696 = vpow.pop %v2695
        %v2697 = vmul.f32 %v2666, 1.442695
        %v2698 = vpow.pop %v2697
        %2699 = vadd.xlane.f32.xlu0 %v2668
        %v2700 = vpop.xlane.xlu0 %2699
        %2701 = vadd.xlane.f32.xlu0 %v2670
        %v2702 = vpop.xlane.xlu0 %2701
        %2703 = vadd.xlane.f32.xlu0 %v2672
        %v2704 = vpop.xlane.xlu0 %2703
        %2705 = vadd.xlane.f32.xlu0 %v2674
        %v2706 = vpop.xlane.xlu0 %2705
        %2707 = vadd.xlane.f32.xlu0 %v2676
        %v2708 = vpop.xlane.xlu0 %2707
        %2709 = vadd.xlane.f32.xlu0 %v2678
        %v2710 = vpop.xlane.xlu0 %2709
        %2711 = vadd.xlane.f32.xlu0 %v2680
        %v2712 = vpop.xlane.xlu0 %2711
        %2713 = vadd.xlane.f32.xlu0 %v2682
        %v2714 = vpop.xlane.xlu0 %2713
        %2715 = vadd.xlane.f32.xlu0 %v2684
        %v2716 = vpop.xlane.xlu0 %2715
        %2717 = vadd.xlane.f32.xlu0 %v2686
        %v2718 = vpop.xlane.xlu0 %2717
        %2719 = vadd.xlane.f32.xlu0 %v2688
        %v2720 = vpop.xlane.xlu0 %2719
        %2721 = vadd.xlane.f32.xlu0 %v2690
        %v2722 = vpop.xlane.xlu0 %2721
        %2723 = vadd.xlane.f32.xlu0 %v2692
        %v2724 = vpop.xlane.xlu0 %2723
        %2725 = vadd.xlane.f32.xlu0 %v2694
        %v2726 = vpop.xlane.xlu0 %2725
        %2727 = vadd.xlane.f32.xlu0 %v2696
        %v2728 = vpop.xlane.xlu0 %2727
        %2729 = vadd.xlane.f32.xlu0 %v2698
        %v2730 = vpop.xlane.xlu0 %2729
        %v2731 = vrcp.pop %v2700
        %v2732 = vrcp.pop %v2702
        %v2733 = vrcp.pop %v2704
        %v2734 = vrcp.pop %v2706
        %v2735 = vrcp.pop %v2708
        %v2736 = vrcp.pop %v2710
        %v2737 = vrcp.pop %v2712
        %v2738 = vrcp.pop %v2714
        %v2739 = vrcp.pop %v2716
        %v2740 = vrcp.pop %v2718
        %v2741 = vrcp.pop %v2720
        %v2742 = vrcp.pop %v2722
        %v2743 = vrcp.pop %v2724
        %v2744 = vrcp.pop %v2726
        %v2745 = vrcp.pop %v2728
        %v2746 = vrcp.pop %v2730
        %v2747 = vmul.f32 %v2668, %v2731
        %v2748 = vmul.f32 %v2670, %v2732
        %v2749 = vmul.f32 %v2672, %v2733
        %v2750 = vmul.f32 %v2674, %v2734
        %v2751 = vmul.f32 %v2676, %v2735
        %v2752 = vmul.f32 %v2678, %v2736
        %v2753 = vmul.f32 %v2680, %v2737
        %v2754 = vmul.f32 %v2682, %v2738
        %v2755 = vmul.f32 %v2684, %v2739
        %v2756 = vmul.f32 %v2686, %v2740
        %v2757 = vmul.f32 %v2688, %v2741
        %v2758 = vmul.f32 %v2690, %v2742
        %v2759 = vmul.f32 %v2692, %v2743
        %v2760 = vmul.f32 %v2694, %v2744
        %v2761 = vmul.f32 %v2696, %v2745
        %v2762 = vmul.f32 %v2698, %v2746
        %2763 = vrot.lane.b32.xlu0 %v1173, 64
        %v2764 = vpop.permute.xlu0 %2763
        %2765 = vrot.lane.b32.xlu0 %v1174, 64
        %v2766 = vpop.permute.xlu0 %2765
        %2767 = vrot.lane.b32.xlu0 %v1175, 64
        %v2768 = vpop.permute.xlu0 %2767
        %2769 = vrot.lane.b32.xlu0 %v1176, 64
        %v2770 = vpop.permute.xlu0 %2769
        %2771 = vrot.lane.b32.xlu0 %v1177, 64
        %v2772 = vpop.permute.xlu0 %2771
        %2773 = vrot.lane.b32.xlu0 %v1178, 64
        %v2774 = vpop.permute.xlu0 %2773
        %2775 = vrot.lane.b32.xlu0 %v1179, 64
        %v2776 = vpop.permute.xlu0 %2775
        %2777 = vrot.lane.b32.xlu0 %v1180, 64
        %v2778 = vpop.permute.xlu0 %2777
        %2779 = vrot.lane.b32.xlu0 %v1181, 64
        %v2780 = vpop.permute.xlu0 %2779
        %2781 = vrot.lane.b32.xlu0 %v1182, 64
        %v2782 = vpop.permute.xlu0 %2781
        %2783 = vrot.lane.b32.xlu0 %v1183, 64
        %v2784 = vpop.permute.xlu0 %2783
        %2785 = vrot.lane.b32.xlu0 %v1184, 64
        %v2786 = vpop.permute.xlu0 %2785
        %2787 = vrot.lane.b32.xlu0 %v1185, 64
        %v2788 = vpop.permute.xlu0 %2787
        %2789 = vrot.lane.b32.xlu0 %v1186, 64
        %v2790 = vpop.permute.xlu0 %2789
        %2791 = vrot.lane.b32.xlu0 %v1187, 64
        %v2792 = vpop.permute.xlu0 %2791
        %2793 = vrot.lane.b32.xlu0 %v1188, 64
        %v2794 = vpop.permute.xlu0 %2793
        %2811 = vmatprep.subr.mxu0 0.0
        %2812 = vmatpush1.msra.mxu0 %v2794
        %2813 = vmatprep.subr.mxu0 0.0
        %2814 = vmatpush1.msra.mxu0 %v2792
        %2815 = vmatprep.subr.mxu0 0.0
        %2816 = vmatpush1.msra.mxu0 %v2790
        %2817 = vmatprep.subr.mxu0 0.0
        %2818 = vmatpush1.msra.mxu0 %v2788
        %2819 = vmatprep.subr.mxu0 0.0
        %2820 = vmatpush1.msra.mxu0 %v2786
        %2821 = vmatprep.subr.mxu0 0.0
        %2822 = vmatpush1.msra.mxu0 %v2784
        %2823 = vmatprep.subr.mxu0 0.0
        %2824 = vmatpush1.msra.mxu0 %v2782
        %2825 = vmatprep.subr.mxu0 0.0
        %2826 = vmatpush1.msra.mxu0 %v2780
        %2827 = vmatprep.subr.mxu0 0.0
        %2828 = vmatpush1.msra.mxu0 %v2778
        %2829 = vmatprep.subr.mxu0 0.0
        %2830 = vmatpush1.msra.mxu0 %v2776
        %2831 = vmatprep.subr.mxu0 0.0
        %2832 = vmatpush1.msra.mxu0 %v2774
        %2833 = vmatprep.subr.mxu0 0.0
        %2834 = vmatpush1.msra.mxu0 %v2772
        %2835 = vmatprep.subr.mxu0 0.0
        %2836 = vmatpush1.msra.mxu0 %v2770
        %2837 = vmatprep.subr.mxu0 0.0
        %2838 = vmatpush1.msra.mxu0 %v2768
        %2839 = vmatprep.subr.mxu0 0.0
        %2840 = vmatpush1.msra.mxu0 %v2766
        %2841 = vmatprep.subr.mxu0 0.0
        %2842 = vmatpush1.msra.mxu0 %v2764
        %2843 = vmatprep.subr.mxu0 0.0
        %2844 = vmatpush2.msra.mxu0 0.0
        %2845 = vmatprep.subr.mxu0 0.0
        %2846 = vmatpush2.msra.mxu0 0.0
        %2847 = vmatprep.subr.mxu0 0.0
        %2848 = vmatpush2.msra.mxu0 0.0
        %2849 = vmatprep.subr.mxu0 0.0
        %2850 = vmatpush2.msra.mxu0 0.0
        %2851 = vmatprep.subr.mxu0 0.0
        %2852 = vmatpush2.msra.mxu0 0.0
        %2853 = vmatprep.subr.mxu0 0.0
        %2854 = vmatpush2.msra.mxu0 0.0
        %2855 = vmatprep.subr.mxu0 0.0
        %2856 = vmatpush2.msra.mxu0 0.0
        %2857 = vmatprep.subr.mxu0 0.0
        %2858 = vmatpush2.msra.mxu0 0.0
        %2859 = vmatprep.subr.mxu0 0.0
        %2860 = vmatpush2.msra.mxu0 0.0
        %2861 = vmatprep.subr.mxu0 0.0
        %2862 = vmatpush2.msra.mxu0 0.0
        %2863 = vmatprep.subr.mxu0 0.0
        %2864 = vmatpush2.msra.mxu0 0.0
        %2865 = vmatprep.subr.mxu0 0.0
        %2866 = vmatpush2.msra.mxu0 0.0
        %2867 = vmatprep.subr.mxu0 0.0
        %2868 = vmatpush2.msra.mxu0 0.0
        %2869 = vmatprep.subr.mxu0 0.0
        %2870 = vmatpush2.msra.mxu0 0.0
        %2871 = vmatprep.subr.mxu0 0.0
        %2872 = vmatpush2.msra.mxu0 0.0
        %2873 = vmatprep.subr.mxu0 0.0
        %2874 = vmatpush2.msra.mxu0 0.0
        %2875 = vmatprep.mubr.f32.mxu0 0.0
        %2876 = vmatmul.mubr.f32.gmra.mxu0 %v2747
        %v2877 = vpop.f32.mrf.mxu0
        %v2878 = vadd.f32 0.0, %v2877
        %v2879 = vpop.f32.mrf.mxu0
        %2880 = vmatprep.mubr.f32.mxu0 0.0
        %2881 = vmatmul.mubr.f32.gmra.mxu0 %v2748
        %v2882 = vpop.f32.mrf.mxu0
        %v2883 = vadd.f32 0.0, %v2882
        %v2884 = vpop.f32.mrf.mxu0
        %2885 = vmatprep.mubr.f32.mxu0 0.0
        %2886 = vmatmul.mubr.f32.gmra.mxu0 %v2749
        %v2887 = vpop.f32.mrf.mxu0
        %v2888 = vadd.f32 0.0, %v2887
        %v2889 = vpop.f32.mrf.mxu0
        %2890 = vmatprep.mubr.f32.mxu0 0.0
        %2891 = vmatmul.mubr.f32.gmra.mxu0 %v2750
        %v2892 = vpop.f32.mrf.mxu0
        %v2893 = vadd.f32 0.0, %v2892
        %v2894 = vpop.f32.mrf.mxu0
        %2895 = vmatprep.mubr.f32.mxu0 0.0
        %2896 = vmatmul.mubr.f32.gmra.mxu0 %v2751
        %v2897 = vpop.f32.mrf.mxu0
        %v2898 = vadd.f32 0.0, %v2897
        %v2899 = vpop.f32.mrf.mxu0
        %2900 = vmatprep.mubr.f32.mxu0 0.0
        %2901 = vmatmul.mubr.f32.gmra.mxu0 %v2752
        %v2902 = vpop.f32.mrf.mxu0
        %v2903 = vadd.f32 0.0, %v2902
        %v2904 = vpop.f32.mrf.mxu0
        %2905 = vmatprep.mubr.f32.mxu0 0.0
        %2906 = vmatmul.mubr.f32.gmra.mxu0 %v2753
        %v2907 = vpop.f32.mrf.mxu0
        %v2908 = vadd.f32 0.0, %v2907
        %v2909 = vpop.f32.mrf.mxu0
        %2910 = vmatprep.mubr.f32.mxu0 0.0
        %2911 = vmatmul.mubr.f32.gmra.mxu0 %v2754
        %v2912 = vpop.f32.mrf.mxu0
        %v2913 = vadd.f32 0.0, %v2912
        %v2914 = vpop.f32.mrf.mxu0
        %2915 = vmatprep.mubr.f32.mxu0 0.0
        %2916 = vmatmul.mubr.f32.gmra.mxu0 %v2755
        %v2917 = vpop.f32.mrf.mxu0
        %v2918 = vadd.f32 0.0, %v2917
        %v2919 = vpop.f32.mrf.mxu0
        %2920 = vmatprep.mubr.f32.mxu0 0.0
        %2921 = vmatmul.mubr.f32.gmra.mxu0 %v2756
        %v2922 = vpop.f32.mrf.mxu0
        %v2923 = vadd.f32 0.0, %v2922
        %v2924 = vpop.f32.mrf.mxu0
        %2925 = vmatprep.mubr.f32.mxu0 0.0
        %2926 = vmatmul.mubr.f32.gmra.mxu0 %v2757
        %v2927 = vpop.f32.mrf.mxu0
        %v2928 = vadd.f32 0.0, %v2927
        %v2929 = vpop.f32.mrf.mxu0
        %2930 = vmatprep.mubr.f32.mxu0 0.0
        %2931 = vmatmul.mubr.f32.gmra.mxu0 %v2758
        %v2932 = vpop.f32.mrf.mxu0
        %v2933 = vadd.f32 0.0, %v2932
        %v2934 = vpop.f32.mrf.mxu0
        %2935 = vmatprep.mubr.f32.mxu0 0.0
        %2936 = vmatmul.mubr.f32.gmra.mxu0 %v2759
        %v2937 = vpop.f32.mrf.mxu0
        %v2938 = vadd.f32 0.0, %v2937
        %v2939 = vpop.f32.mrf.mxu0
        %2940 = vmatprep.mubr.f32.mxu0 0.0
        %2941 = vmatmul.mubr.f32.gmra.mxu0 %v2760
        %v2942 = vpop.f32.mrf.mxu0
        %v2943 = vadd.f32 0.0, %v2942
        %v2944 = vpop.f32.mrf.mxu0
        %2945 = vmatprep.mubr.f32.mxu0 0.0
        %2946 = vmatmul.mubr.f32.gmra.mxu0 %v2761
        %v2947 = vpop.f32.mrf.mxu0
        %v2948 = vadd.f32 0.0, %v2947
        %v2949 = vpop.f32.mrf.mxu0
        %2950 = vmatprep.mubr.f32.mxu0 0.0
        %2951 = vmatmul.mubr.f32.gmra.mxu0 %v2762
        %v2952 = vpop.f32.mrf.mxu0
        %v2953 = vadd.f32 0.0, %v2952
        %v2954 = vpop.f32.mrf.mxu0
        %2955 = vdwg.mxu0
        %2956 = vrot.lane.b32.xlu0 %v1141, 32
        %v2957 = vpop.permute.xlu0 %2956
        %2958 = vrot.lane.b32.xlu0 %v1142, 32
        %v2959 = vpop.permute.xlu0 %2958
        %2960 = vrot.lane.b32.xlu0 %v1143, 32
        %v2961 = vpop.permute.xlu0 %2960
        %2962 = vrot.lane.b32.xlu0 %v1144, 32
        %v2963 = vpop.permute.xlu0 %2962
        %2964 = vrot.lane.b32.xlu0 %v1145, 32
        %v2965 = vpop.permute.xlu0 %2964
        %2966 = vrot.lane.b32.xlu0 %v1146, 32
        %v2967 = vpop.permute.xlu0 %2966
        %2968 = vrot.lane.b32.xlu0 %v1147, 32
        %v2969 = vpop.permute.xlu0 %2968
        %2970 = vrot.lane.b32.xlu0 %v1148, 32
        %v2971 = vpop.permute.xlu0 %2970
        %2972 = vrot.lane.b32.xlu0 %v1149, 32
        %v2973 = vpop.permute.xlu0 %2972
        %2974 = vrot.lane.b32.xlu0 %v1150, 32
        %v2975 = vpop.permute.xlu0 %2974
        %2976 = vrot.lane.b32.xlu0 %v1151, 32
        %v2977 = vpop.permute.xlu0 %2976
        %2978 = vrot.lane.b32.xlu0 %v1152, 32
        %v2979 = vpop.permute.xlu0 %2978
        %2980 = vrot.lane.b32.xlu0 %v1153, 32
        %v2981 = vpop.permute.xlu0 %2980
        %2982 = vrot.lane.b32.xlu0 %v1154, 32
        %v2983 = vpop.permute.xlu0 %2982
        %2984 = vrot.lane.b32.xlu0 %v1155, 32
        %v2985 = vpop.permute.xlu0 %2984
        %2986 = vrot.lane.b32.xlu0 %v1156, 32
        %v2987 = vpop.permute.xlu0 %2986
        %2988 = vrot.lane.b32.xlu0 %v1157, 32
        %v2989 = vpop.permute.xlu0 %2988
        %2990 = vrot.lane.b32.xlu0 %v1158, 32
        %v2991 = vpop.permute.xlu0 %2990
        %2992 = vrot.lane.b32.xlu0 %v1159, 32
        %v2993 = vpop.permute.xlu0 %2992
        %2994 = vrot.lane.b32.xlu0 %v1160, 32
        %v2995 = vpop.permute.xlu0 %2994
        %2996 = vrot.lane.b32.xlu0 %v1161, 32
        %v2997 = vpop.permute.xlu0 %2996
        %2998 = vrot.lane.b32.xlu0 %v1162, 32
        %v2999 = vpop.permute.xlu0 %2998
        %3000 = vrot.lane.b32.xlu0 %v1163, 32
        %v3001 = vpop.permute.xlu0 %3000
        %3002 = vrot.lane.b32.xlu0 %v1164, 32
        %v3003 = vpop.permute.xlu0 %3002
        %3004 = vrot.lane.b32.xlu0 %v1165, 32
        %v3005 = vpop.permute.xlu0 %3004
        %3006 = vrot.lane.b32.xlu0 %v1166, 32
        %v3007 = vpop.permute.xlu0 %3006
        %3008 = vrot.lane.b32.xlu0 %v1167, 32
        %v3009 = vpop.permute.xlu0 %3008
        %3010 = vrot.lane.b32.xlu0 %v1168, 32
        %v3011 = vpop.permute.xlu0 %3010
        %3012 = vrot.lane.b32.xlu0 %v1169, 32
        %v3013 = vpop.permute.xlu0 %3012
        %3014 = vrot.lane.b32.xlu0 %v1170, 32
        %v3015 = vpop.permute.xlu0 %3014
        %3016 = vrot.lane.b32.xlu0 %v1171, 32
        %v3017 = vpop.permute.xlu0 %3016
        %3018 = vrot.lane.b32.xlu0 %v1172, 32
        %v3019 = vpop.permute.xlu0 %3018
        %v3020 = vsel %vm1189, %v2957, 0
        %v3022 = vsel %vm1189, %v2959, 0
        %v3024 = vsel %vm1189, %v2961, 0
        %v3026 = vsel %vm1189, %v2963, 0
        %v3028 = vsel %vm1189, %v2965, 0
        %v3030 = vsel %vm1189, %v2967, 0
        %v3032 = vsel %vm1189, %v2969, 0
        %v3034 = vsel %vm1189, %v2971, 0
        %v3036 = vsel %vm1189, %v2973, 0
        %v3038 = vsel %vm1189, %v2975, 0
        %v3040 = vsel %vm1189, %v2977, 0
        %v3042 = vsel %vm1189, %v2979, 0
        %v3044 = vsel %vm1189, %v2981, 0
        %v3046 = vsel %vm1189, %v2983, 0
        %v3048 = vsel %vm1189, %v2985, 0
        %v3050 = vsel %vm1189, %v2987, 0
        %v3052 = vsel %vm1189, %v2989, 0
        %v3054 = vsel %vm1189, %v2991, 0
        %v3056 = vsel %vm1189, %v2993, 0
        %v3058 = vsel %vm1189, %v2995, 0
        %v3060 = vsel %vm1189, %v2997, 0
        %v3062 = vsel %vm1189, %v2999, 0
        %v3064 = vsel %vm1189, %v3001, 0
        %v3066 = vsel %vm1189, %v3003, 0
        %v3068 = vsel %vm1189, %v3005, 0
        %v3070 = vsel %vm1189, %v3007, 0
        %v3072 = vsel %vm1189, %v3009, 0
        %v3074 = vsel %vm1189, %v3011, 0
        %v3076 = vsel %vm1189, %v3013, 0
        %v3078 = vsel %vm1189, %v3015, 0
        %v3080 = vsel %vm1189, %v3017, 0
        %v3082 = vsel %vm1189, %v3019, 0
        %3084 = vmatprep.subr.mxu0 0.0
        %3085 = vmatpush1.xpose.msra.mxu0 %v3082
        %3086 = vmatprep.subr.mxu0 0.0
        %3087 = vmatpush1.xpose.msra.mxu0 %v3080
        %3088 = vmatprep.subr.mxu0 0.0
        %3089 = vmatpush1.xpose.msra.mxu0 %v3078
        %3090 = vmatprep.subr.mxu0 0.0
        %3091 = vmatpush1.xpose.msra.mxu0 %v3076
        %3092 = vmatprep.subr.mxu0 0.0
        %3093 = vmatpush1.xpose.msra.mxu0 %v3074
        %3094 = vmatprep.subr.mxu0 0.0
        %3095 = vmatpush1.xpose.msra.mxu0 %v3072
        %3096 = vmatprep.subr.mxu0 0.0
        %3097 = vmatpush1.xpose.msra.mxu0 %v3070
        %3098 = vmatprep.subr.mxu0 0.0
        %3099 = vmatpush1.xpose.msra.mxu0 %v3068
        %3100 = vmatprep.subr.mxu0 0.0
        %3101 = vmatpush1.xpose.msra.mxu0 %v3066
        %3102 = vmatprep.subr.mxu0 0.0
        %3103 = vmatpush1.xpose.msra.mxu0 %v3064
        %3104 = vmatprep.subr.mxu0 0.0
        %3105 = vmatpush1.xpose.msra.mxu0 %v3062
        %3106 = vmatprep.subr.mxu0 0.0
        %3107 = vmatpush1.xpose.msra.mxu0 %v3060
        %3108 = vmatprep.subr.mxu0 0.0
        %3109 = vmatpush1.xpose.msra.mxu0 %v3058
        %3110 = vmatprep.subr.mxu0 0.0
        %3111 = vmatpush1.xpose.msra.mxu0 %v3056
        %3112 = vmatprep.subr.mxu0 0.0
        %3113 = vmatpush1.xpose.msra.mxu0 %v3054
        %3114 = vmatprep.subr.mxu0 0.0
        %3115 = vmatpush1.xpose.msra.mxu0 %v3052
        %3116 = vmatprep.subr.mxu0 0.0
        %3117 = vmatpush2.xpose.msra.mxu0 0.0
        %3118 = vmatprep.subr.mxu0 0.0
        %3119 = vmatpush2.xpose.msra.mxu0 0.0
        %3120 = vmatprep.subr.mxu0 0.0
        %3121 = vmatpush2.xpose.msra.mxu0 0.0
        %3122 = vmatprep.subr.mxu0 0.0
        %3123 = vmatpush2.xpose.msra.mxu0 0.0
        %3124 = vmatprep.subr.mxu0 0.0
        %3125 = vmatpush2.xpose.msra.mxu0 0.0
        %3126 = vmatprep.subr.mxu0 0.0
        %3127 = vmatpush2.xpose.msra.mxu0 0.0
        %3128 = vmatprep.subr.mxu0 0.0
        %3129 = vmatpush2.xpose.msra.mxu0 0.0
        %3130 = vmatprep.subr.mxu0 0.0
        %3131 = vmatpush2.xpose.msra.mxu0 0.0
        %3132 = vmatprep.subr.mxu0 0.0
        %3133 = vmatpush2.xpose.msra.mxu0 0.0
        %3134 = vmatprep.subr.mxu0 0.0
        %3135 = vmatpush2.xpose.msra.mxu0 0.0
        %3136 = vmatprep.subr.mxu0 0.0
        %3137 = vmatpush2.xpose.msra.mxu0 0.0
        %3138 = vmatprep.subr.mxu0 0.0
        %3139 = vmatpush2.xpose.msra.mxu0 0.0
        %3140 = vmatprep.subr.mxu0 0.0
        %3141 = vmatpush2.xpose.msra.mxu0 0.0
        %3142 = vmatprep.subr.mxu0 0.0
        %3143 = vmatpush2.xpose.msra.mxu0 0.0
        %3144 = vmatprep.subr.mxu0 0.0
        %3145 = vmatpush2.xpose.msra.mxu0 0.0
        %3146 = vmatprep.subr.mxu0 0.0
        %3147 = vmatpush2.xpose.msra.mxu0 0.0
        %3148 = vmatprep.mubr.f32.mxu0 0.0
        %3149 = vmatmul.mubr.f32.gmra.mxu0 %v3020
        %v3150 = vpop.f32.mrf.mxu0
        %v3151 = vadd.f32 0.0, %v3150
        %v3152 = vpop.f32.mrf.mxu0
        %3153 = vmatprep.mubr.f32.mxu0 0.0
        %3154 = vmatmul.mubr.f32.gmra.mxu0 %v3022
        %v3155 = vpop.f32.mrf.mxu0
        %v3156 = vadd.f32 0.0, %v3155
        %v3157 = vpop.f32.mrf.mxu0
        %3158 = vmatprep.mubr.f32.mxu0 0.0
        %3159 = vmatmul.mubr.f32.gmra.mxu0 %v3024
        %v3160 = vpop.f32.mrf.mxu0
        %v3161 = vadd.f32 0.0, %v3160
        %v3162 = vpop.f32.mrf.mxu0
        %3163 = vmatprep.mubr.f32.mxu0 0.0
        %3164 = vmatmul.mubr.f32.gmra.mxu0 %v3026
        %v3165 = vpop.f32.mrf.mxu0
        %v3166 = vadd.f32 0.0, %v3165
        %v3167 = vpop.f32.mrf.mxu0
        %3168 = vmatprep.mubr.f32.mxu0 0.0
        %3169 = vmatmul.mubr.f32.gmra.mxu0 %v3028
        %v3170 = vpop.f32.mrf.mxu0
        %v3171 = vadd.f32 0.0, %v3170
        %v3172 = vpop.f32.mrf.mxu0
        %3173 = vmatprep.mubr.f32.mxu0 0.0
        %3174 = vmatmul.mubr.f32.gmra.mxu0 %v3030
        %v3175 = vpop.f32.mrf.mxu0
        %v3176 = vadd.f32 0.0, %v3175
        %v3177 = vpop.f32.mrf.mxu0
        %3178 = vmatprep.mubr.f32.mxu0 0.0
        %3179 = vmatmul.mubr.f32.gmra.mxu0 %v3032
        %v3180 = vpop.f32.mrf.mxu0
        %v3181 = vadd.f32 0.0, %v3180
        %v3182 = vpop.f32.mrf.mxu0
        %3183 = vmatprep.mubr.f32.mxu0 0.0
        %3184 = vmatmul.mubr.f32.gmra.mxu0 %v3034
        %v3185 = vpop.f32.mrf.mxu0
        %v3186 = vadd.f32 0.0, %v3185
        %v3187 = vpop.f32.mrf.mxu0
        %3188 = vmatprep.mubr.f32.mxu0 0.0
        %3189 = vmatmul.mubr.f32.gmra.mxu0 %v3036
        %v3190 = vpop.f32.mrf.mxu0
        %v3191 = vadd.f32 0.0, %v3190
        %v3192 = vpop.f32.mrf.mxu0
        %3193 = vmatprep.mubr.f32.mxu0 0.0
        %3194 = vmatmul.mubr.f32.gmra.mxu0 %v3038
        %v3195 = vpop.f32.mrf.mxu0
        %v3196 = vadd.f32 0.0, %v3195
        %v3197 = vpop.f32.mrf.mxu0
        %3198 = vmatprep.mubr.f32.mxu0 0.0
        %3199 = vmatmul.mubr.f32.gmra.mxu0 %v3040
        %v3200 = vpop.f32.mrf.mxu0
        %v3201 = vadd.f32 0.0, %v3200
        %v3202 = vpop.f32.mrf.mxu0
        %3203 = vmatprep.mubr.f32.mxu0 0.0
        %3204 = vmatmul.mubr.f32.gmra.mxu0 %v3042
        %v3205 = vpop.f32.mrf.mxu0
        %v3206 = vadd.f32 0.0, %v3205
        %v3207 = vpop.f32.mrf.mxu0
        %3208 = vmatprep.mubr.f32.mxu0 0.0
        %3209 = vmatmul.mubr.f32.gmra.mxu0 %v3044
        %v3210 = vpop.f32.mrf.mxu0
        %v3211 = vadd.f32 0.0, %v3210
        %v3212 = vpop.f32.mrf.mxu0
        %3213 = vmatprep.mubr.f32.mxu0 0.0
        %3214 = vmatmul.mubr.f32.gmra.mxu0 %v3046
        %v3215 = vpop.f32.mrf.mxu0
        %v3216 = vadd.f32 0.0, %v3215
        %v3217 = vpop.f32.mrf.mxu0
        %3218 = vmatprep.mubr.f32.mxu0 0.0
        %3219 = vmatmul.mubr.f32.gmra.mxu0 %v3048
        %v3220 = vpop.f32.mrf.mxu0
        %v3221 = vadd.f32 0.0, %v3220
        %v3222 = vpop.f32.mrf.mxu0
        %3223 = vmatprep.mubr.f32.mxu0 0.0
        %3224 = vmatmul.mubr.f32.gmra.mxu0 %v3050
        %v3225 = vpop.f32.mrf.mxu0
        %v3226 = vadd.f32 0.0, %v3225
        %v3227 = vpop.f32.mrf.mxu0
        %3228 = vdwg.mxu0
        %3229 = vmax.xlane.f32.xlu0 %v3151
        %v3230 = vpop.xlane.xlu0 %3229
        %3231 = vmax.xlane.f32.xlu0 %v3156
        %v3232 = vpop.xlane.xlu0 %3231
        %3233 = vmax.xlane.f32.xlu0 %v3161
        %v3234 = vpop.xlane.xlu0 %3233
        %3235 = vmax.xlane.f32.xlu0 %v3166
        %v3236 = vpop.xlane.xlu0 %3235
        %3237 = vmax.xlane.f32.xlu0 %v3171
        %v3238 = vpop.xlane.xlu0 %3237
        %3239 = vmax.xlane.f32.xlu0 %v3176
        %v3240 = vpop.xlane.xlu0 %3239
        %3241 = vmax.xlane.f32.xlu0 %v3181
        %v3242 = vpop.xlane.xlu0 %3241
        %3243 = vmax.xlane.f32.xlu0 %v3186
        %v3244 = vpop.xlane.xlu0 %3243
        %3245 = vmax.xlane.f32.xlu0 %v3191
        %v3246 = vpop.xlane.xlu0 %3245
        %3247 = vmax.xlane.f32.xlu0 %v3196
        %v3248 = vpop.xlane.xlu0 %3247
        %3249 = vmax.xlane.f32.xlu0 %v3201
        %v3250 = vpop.xlane.xlu0 %3249
        %3251 = vmax.xlane.f32.xlu0 %v3206
        %v3252 = vpop.xlane.xlu0 %3251
        %3253 = vmax.xlane.f32.xlu0 %v3211
        %v3254 = vpop.xlane.xlu0 %3253
        %3255 = vmax.xlane.f32.xlu0 %v3216
        %v3256 = vpop.xlane.xlu0 %3255
        %3257 = vmax.xlane.f32.xlu0 %v3221
        %v3258 = vpop.xlane.xlu0 %3257
        %3259 = vmax.xlane.f32.xlu0 %v3226
        %v3260 = vpop.xlane.xlu0 %3259
        %v3261 = vsub.f32 %v3151, %v3230
        %v3262 = vsub.f32 %v3156, %v3232
        %v3263 = vsub.f32 %v3161, %v3234
        %v3264 = vsub.f32 %v3166, %v3236
        %v3265 = vsub.f32 %v3171, %v3238
        %v3266 = vsub.f32 %v3176, %v3240
        %v3267 = vsub.f32 %v3181, %v3242
        %v3268 = vsub.f32 %v3186, %v3244
        %v3269 = vsub.f32 %v3191, %v3246
        %v3270 = vsub.f32 %v3196, %v3248
        %v3271 = vsub.f32 %v3201, %v3250
        %v3272 = vsub.f32 %v3206, %v3252
        %v3273 = vsub.f32 %v3211, %v3254
        %v3274 = vsub.f32 %v3216, %v3256
        %v3275 = vsub.f32 %v3221, %v3258
        %v3276 = vsub.f32 %v3226, %v3260
        %v3277 = vmul.f32 %v3261, 1.442695
        %v3278 = vpow.pop %v3277
        %v3279 = vmul.f32 %v3262, 1.442695
        %v3280 = vpow.pop %v3279
        %v3281 = vmul.f32 %v3263, 1.442695
        %v3282 = vpow.pop %v3281
        %v3283 = vmul.f32 %v3264, 1.442695
        %v3284 = vpow.pop %v3283
        %v3285 = vmul.f32 %v3265, 1.442695
        %v3286 = vpow.pop %v3285
        %v3287 = vmul.f32 %v3266, 1.442695
        %v3288 = vpow.pop %v3287
        %v3289 = vmul.f32 %v3267, 1.442695
        %v3290 = vpow.pop %v3289
        %v3291 = vmul.f32 %v3268, 1.442695
        %v3292 = vpow.pop %v3291
        %v3293 = vmul.f32 %v3269, 1.442695
        %v3294 = vpow.pop %v3293
        %v3295 = vmul.f32 %v3270, 1.442695
        %v3296 = vpow.pop %v3295
        %v3297 = vmul.f32 %v3271, 1.442695
        %v3298 = vpow.pop %v3297
        %v3299 = vmul.f32 %v3272, 1.442695
        %v3300 = vpow.pop %v3299
        %v3301 = vmul.f32 %v3273, 1.442695
        %v3302 = vpow.pop %v3301
        %v3303 = vmul.f32 %v3274, 1.442695
        %v3304 = vpow.pop %v3303
        %v3305 = vmul.f32 %v3275, 1.442695
        %v3306 = vpow.pop %v3305
        %v3307 = vmul.f32 %v3276, 1.442695
        %v3308 = vpow.pop %v3307
        %3309 = vadd.xlane.f32.xlu0 %v3278
        %v3310 = vpop.xlane.xlu0 %3309
        %3311 = vadd.xlane.f32.xlu0 %v3280
        %v3312 = vpop.xlane.xlu0 %3311
        %3313 = vadd.xlane.f32.xlu0 %v3282
        %v3314 = vpop.xlane.xlu0 %3313
        %3315 = vadd.xlane.f32.xlu0 %v3284
        %v3316 = vpop.xlane.xlu0 %3315
        %3317 = vadd.xlane.f32.xlu0 %v3286
        %v3318 = vpop.xlane.xlu0 %3317
        %3319 = vadd.xlane.f32.xlu0 %v3288
        %v3320 = vpop.xlane.xlu0 %3319
        %3321 = vadd.xlane.f32.xlu0 %v3290
        %v3322 = vpop.xlane.xlu0 %3321
        %3323 = vadd.xlane.f32.xlu0 %v3292
        %v3324 = vpop.xlane.xlu0 %3323
        %3325 = vadd.xlane.f32.xlu0 %v3294
        %v3326 = vpop.xlane.xlu0 %3325
        %3327 = vadd.xlane.f32.xlu0 %v3296
        %v3328 = vpop.xlane.xlu0 %3327
        %3329 = vadd.xlane.f32.xlu0 %v3298
        %v3330 = vpop.xlane.xlu0 %3329
        %3331 = vadd.xlane.f32.xlu0 %v3300
        %v3332 = vpop.xlane.xlu0 %3331
        %3333 = vadd.xlane.f32.xlu0 %v3302
        %v3334 = vpop.xlane.xlu0 %3333
        %3335 = vadd.xlane.f32.xlu0 %v3304
        %v3336 = vpop.xlane.xlu0 %3335
        %3337 = vadd.xlane.f32.xlu0 %v3306
        %v3338 = vpop.xlane.xlu0 %3337
        %3339 = vadd.xlane.f32.xlu0 %v3308
        %v3340 = vpop.xlane.xlu0 %3339
        %v3341 = vrcp.pop %v3310
        %v3342 = vrcp.pop %v3312
        %v3343 = vrcp.pop %v3314
        %v3344 = vrcp.pop %v3316
        %v3345 = vrcp.pop %v3318
        %v3346 = vrcp.pop %v3320
        %v3347 = vrcp.pop %v3322
        %v3348 = vrcp.pop %v3324
        %v3349 = vrcp.pop %v3326
        %v3350 = vrcp.pop %v3328
        %v3351 = vrcp.pop %v3330
        %v3352 = vrcp.pop %v3332
        %v3353 = vrcp.pop %v3334
        %v3354 = vrcp.pop %v3336
        %v3355 = vrcp.pop %v3338
        %v3356 = vrcp.pop %v3340
        %v3357 = vmul.f32 %v3278, %v3341
        %v3358 = vmul.f32 %v3280, %v3342
        %v3359 = vmul.f32 %v3282, %v3343
        %v3360 = vmul.f32 %v3284, %v3344
        %v3361 = vmul.f32 %v3286, %v3345
        %v3362 = vmul.f32 %v3288, %v3346
        %v3363 = vmul.f32 %v3290, %v3347
        %v3364 = vmul.f32 %v3292, %v3348
        %v3365 = vmul.f32 %v3294, %v3349
        %v3366 = vmul.f32 %v3296, %v3350
        %v3367 = vmul.f32 %v3298, %v3351
        %v3368 = vmul.f32 %v3300, %v3352
        %v3369 = vmul.f32 %v3302, %v3353
        %v3370 = vmul.f32 %v3304, %v3354
        %v3371 = vmul.f32 %v3306, %v3355
        %v3372 = vmul.f32 %v3308, %v3356
        %3373 = vrot.lane.b32.xlu0 %v1173, 32
        %v3374 = vpop.permute.xlu0 %3373
        %3375 = vrot.lane.b32.xlu0 %v1174, 32
        %v3376 = vpop.permute.xlu0 %3375
        %3377 = vrot.lane.b32.xlu0 %v1175, 32
        %v3378 = vpop.permute.xlu0 %3377
        %3379 = vrot.lane.b32.xlu0 %v1176, 32
        %v3380 = vpop.permute.xlu0 %3379
        %3381 = vrot.lane.b32.xlu0 %v1177, 32
        %v3382 = vpop.permute.xlu0 %3381
        %3383 = vrot.lane.b32.xlu0 %v1178, 32
        %v3384 = vpop.permute.xlu0 %3383
        %3385 = vrot.lane.b32.xlu0 %v1179, 32
        %v3386 = vpop.permute.xlu0 %3385
        %3387 = vrot.lane.b32.xlu0 %v1180, 32
        %v3388 = vpop.permute.xlu0 %3387
        %3389 = vrot.lane.b32.xlu0 %v1181, 32
        %v3390 = vpop.permute.xlu0 %3389
        %3391 = vrot.lane.b32.xlu0 %v1182, 32
        %v3392 = vpop.permute.xlu0 %3391
        %3393 = vrot.lane.b32.xlu0 %v1183, 32
        %v3394 = vpop.permute.xlu0 %3393
        %3395 = vrot.lane.b32.xlu0 %v1184, 32
        %v3396 = vpop.permute.xlu0 %3395
        %3397 = vrot.lane.b32.xlu0 %v1185, 32
        %v3398 = vpop.permute.xlu0 %3397
        %3399 = vrot.lane.b32.xlu0 %v1186, 32
        %v3400 = vpop.permute.xlu0 %3399
        %3401 = vrot.lane.b32.xlu0 %v1187, 32
        %v3402 = vpop.permute.xlu0 %3401
        %3403 = vrot.lane.b32.xlu0 %v1188, 32
        %v3404 = vpop.permute.xlu0 %3403
        %3421 = vmatprep.subr.mxu0 0.0
        %3422 = vmatpush1.msra.mxu0 %v3404
        %3423 = vmatprep.subr.mxu0 0.0
        %3424 = vmatpush1.msra.mxu0 %v3402
        %3425 = vmatprep.subr.mxu0 0.0
        %3426 = vmatpush1.msra.mxu0 %v3400
        %3427 = vmatprep.subr.mxu0 0.0
        %3428 = vmatpush1.msra.mxu0 %v3398
        %3429 = vmatprep.subr.mxu0 0.0
        %3430 = vmatpush1.msra.mxu0 %v3396
        %3431 = vmatprep.subr.mxu0 0.0
        %3432 = vmatpush1.msra.mxu0 %v3394
        %3433 = vmatprep.subr.mxu0 0.0
        %3434 = vmatpush1.msra.mxu0 %v3392
        %3435 = vmatprep.subr.mxu0 0.0
        %3436 = vmatpush1.msra.mxu0 %v3390
        %3437 = vmatprep.subr.mxu0 0.0
        %3438 = vmatpush1.msra.mxu0 %v3388
        %3439 = vmatprep.subr.mxu0 0.0
        %3440 = vmatpush1.msra.mxu0 %v3386
        %3441 = vmatprep.subr.mxu0 0.0
        %3442 = vmatpush1.msra.mxu0 %v3384
        %3443 = vmatprep.subr.mxu0 0.0
        %3444 = vmatpush1.msra.mxu0 %v3382
        %3445 = vmatprep.subr.mxu0 0.0
        %3446 = vmatpush1.msra.mxu0 %v3380
        %3447 = vmatprep.subr.mxu0 0.0
        %3448 = vmatpush1.msra.mxu0 %v3378
        %3449 = vmatprep.subr.mxu0 0.0
        %3450 = vmatpush1.msra.mxu0 %v3376
        %3451 = vmatprep.subr.mxu0 0.0
        %3452 = vmatpush1.msra.mxu0 %v3374
        %3453 = vmatprep.subr.mxu0 0.0
        %3454 = vmatpush2.msra.mxu0 0.0
        %3455 = vmatprep.subr.mxu0 0.0
        %3456 = vmatpush2.msra.mxu0 0.0
        %3457 = vmatprep.subr.mxu0 0.0
        %3458 = vmatpush2.msra.mxu0 0.0
        %3459 = vmatprep.subr.mxu0 0.0
        %3460 = vmatpush2.msra.mxu0 0.0
        %3461 = vmatprep.subr.mxu0 0.0
        %3462 = vmatpush2.msra.mxu0 0.0
        %3463 = vmatprep.subr.mxu0 0.0
        %3464 = vmatpush2.msra.mxu0 0.0
        %3465 = vmatprep.subr.mxu0 0.0
        %3466 = vmatpush2.msra.mxu0 0.0
        %3467 = vmatprep.subr.mxu0 0.0
        %3468 = vmatpush2.msra.mxu0 0.0
        %3469 = vmatprep.subr.mxu0 0.0
        %3470 = vmatpush2.msra.mxu0 0.0
        %3471 = vmatprep.subr.mxu0 0.0
        %3472 = vmatpush2.msra.mxu0 0.0
        %3473 = vmatprep.subr.mxu0 0.0
        %3474 = vmatpush2.msra.mxu0 0.0
        %3475 = vmatprep.subr.mxu0 0.0
        %3476 = vmatpush2.msra.mxu0 0.0
        %3477 = vmatprep.subr.mxu0 0.0
        %3478 = vmatpush2.msra.mxu0 0.0
        %3479 = vmatprep.subr.mxu0 0.0
        %3480 = vmatpush2.msra.mxu0 0.0
        %3481 = vmatprep.subr.mxu0 0.0
        %3482 = vmatpush2.msra.mxu0 0.0
        %3483 = vmatprep.subr.mxu0 0.0
        %3484 = vmatpush2.msra.mxu0 0.0
        %3485 = vmatprep.mubr.f32.mxu0 0.0
        %3486 = vmatmul.mubr.f32.gmra.mxu0 %v3357
        %v3487 = vpop.f32.mrf.mxu0
        %v3488 = vadd.f32 0.0, %v3487
        %v3489 = vpop.f32.mrf.mxu0
        %3490 = vmatprep.mubr.f32.mxu0 0.0
        %3491 = vmatmul.mubr.f32.gmra.mxu0 %v3358
        %v3492 = vpop.f32.mrf.mxu0
        %v3493 = vadd.f32 0.0, %v3492
        %v3494 = vpop.f32.mrf.mxu0
        %3495 = vmatprep.mubr.f32.mxu0 0.0
        %3496 = vmatmul.mubr.f32.gmra.mxu0 %v3359
        %v3497 = vpop.f32.mrf.mxu0
        %v3498 = vadd.f32 0.0, %v3497
        %v3499 = vpop.f32.mrf.mxu0
        %3500 = vmatprep.mubr.f32.mxu0 0.0
        %3501 = vmatmul.mubr.f32.gmra.mxu0 %v3360
        %v3502 = vpop.f32.mrf.mxu0
        %v3503 = vadd.f32 0.0, %v3502
        %v3504 = vpop.f32.mrf.mxu0
        %3505 = vmatprep.mubr.f32.mxu0 0.0
        %3506 = vmatmul.mubr.f32.gmra.mxu0 %v3361
        %v3507 = vpop.f32.mrf.mxu0
        %v3508 = vadd.f32 0.0, %v3507
        %v3509 = vpop.f32.mrf.mxu0
        %3510 = vmatprep.mubr.f32.mxu0 0.0
        %3511 = vmatmul.mubr.f32.gmra.mxu0 %v3362
        %v3512 = vpop.f32.mrf.mxu0
        %v3513 = vadd.f32 0.0, %v3512
        %v3514 = vpop.f32.mrf.mxu0
        %3515 = vmatprep.mubr.f32.mxu0 0.0
        %3516 = vmatmul.mubr.f32.gmra.mxu0 %v3363
        %v3517 = vpop.f32.mrf.mxu0
        %v3518 = vadd.f32 0.0, %v3517
        %v3519 = vpop.f32.mrf.mxu0
        %3520 = vmatprep.mubr.f32.mxu0 0.0
        %3521 = vmatmul.mubr.f32.gmra.mxu0 %v3364
        %v3522 = vpop.f32.mrf.mxu0
        %v3523 = vadd.f32 0.0, %v3522
        %v3524 = vpop.f32.mrf.mxu0
        %3525 = vmatprep.mubr.f32.mxu0 0.0
        %3526 = vmatmul.mubr.f32.gmra.mxu0 %v3365
        %v3527 = vpop.f32.mrf.mxu0
        %v3528 = vadd.f32 0.0, %v3527
        %v3529 = vpop.f32.mrf.mxu0
        %3530 = vmatprep.mubr.f32.mxu0 0.0
        %3531 = vmatmul.mubr.f32.gmra.mxu0 %v3366
        %v3532 = vpop.f32.mrf.mxu0
        %v3533 = vadd.f32 0.0, %v3532
        %v3534 = vpop.f32.mrf.mxu0
        %3535 = vmatprep.mubr.f32.mxu0 0.0
        %3536 = vmatmul.mubr.f32.gmra.mxu0 %v3367
        %v3537 = vpop.f32.mrf.mxu0
        %v3538 = vadd.f32 0.0, %v3537
        %v3539 = vpop.f32.mrf.mxu0
        %3540 = vmatprep.mubr.f32.mxu0 0.0
        %3541 = vmatmul.mubr.f32.gmra.mxu0 %v3368
        %v3542 = vpop.f32.mrf.mxu0
        %v3543 = vadd.f32 0.0, %v3542
        %v3544 = vpop.f32.mrf.mxu0
        %3545 = vmatprep.mubr.f32.mxu0 0.0
        %3546 = vmatmul.mubr.f32.gmra.mxu0 %v3369
        %v3547 = vpop.f32.mrf.mxu0
        %v3548 = vadd.f32 0.0, %v3547
        %v3549 = vpop.f32.mrf.mxu0
        %3550 = vmatprep.mubr.f32.mxu0 0.0
        %3551 = vmatmul.mubr.f32.gmra.mxu0 %v3370
        %v3552 = vpop.f32.mrf.mxu0
        %v3553 = vadd.f32 0.0, %v3552
        %v3554 = vpop.f32.mrf.mxu0
        %3555 = vmatprep.mubr.f32.mxu0 0.0
        %3556 = vmatmul.mubr.f32.gmra.mxu0 %v3371
        %v3557 = vpop.f32.mrf.mxu0
        %v3558 = vadd.f32 0.0, %v3557
        %v3559 = vpop.f32.mrf.mxu0
        %3560 = vmatprep.mubr.f32.mxu0 0.0
        %3561 = vmatmul.mubr.f32.gmra.mxu0 %v3372
        %v3562 = vpop.f32.mrf.mxu0
        %v3563 = vadd.f32 0.0, %v3562
        %v3564 = vpop.f32.mrf.mxu0
        %3565 = vdwg.mxu0
        %3582 = vrot.lane.b32.xlu0 %v2268, 32
        %v3583 = vpop.permute.xlu0 %3582
        %3584 = vrot.lane.b32.xlu0 %v2273, 32
        %v3585 = vpop.permute.xlu0 %3584
        %3586 = vrot.lane.b32.xlu0 %v2278, 32
        %v3587 = vpop.permute.xlu0 %3586
        %3588 = vrot.lane.b32.xlu0 %v2283, 32
        %v3589 = vpop.permute.xlu0 %3588
        %3590 = vrot.lane.b32.xlu0 %v2288, 32
        %v3591 = vpop.permute.xlu0 %3590
        %3592 = vrot.lane.b32.xlu0 %v2293, 32
        %v3593 = vpop.permute.xlu0 %3592
        %3594 = vrot.lane.b32.xlu0 %v2298, 32
        %v3595 = vpop.permute.xlu0 %3594
        %3596 = vrot.lane.b32.xlu0 %v2303, 32
        %v3597 = vpop.permute.xlu0 %3596
        %3598 = vrot.lane.b32.xlu0 %v2308, 32
        %v3599 = vpop.permute.xlu0 %3598
        %3600 = vrot.lane.b32.xlu0 %v2313, 32
        %v3601 = vpop.permute.xlu0 %3600
        %3602 = vrot.lane.b32.xlu0 %v2318, 32
        %v3603 = vpop.permute.xlu0 %3602
        %3604 = vrot.lane.b32.xlu0 %v2323, 32
        %v3605 = vpop.permute.xlu0 %3604
        %3606 = vrot.lane.b32.xlu0 %v2328, 32
        %v3607 = vpop.permute.xlu0 %3606
        %3608 = vrot.lane.b32.xlu0 %v2333, 32
        %v3609 = vpop.permute.xlu0 %3608
        %3610 = vrot.lane.b32.xlu0 %v2338, 32
        %v3611 = vpop.permute.xlu0 %3610
        %3612 = vrot.lane.b32.xlu0 %v2343, 32
        %v3613 = vpop.permute.xlu0 %3612
        %3646 = vrot.lane.b32.xlu0 %v2878, 64
        %v3647 = vpop.permute.xlu0 %3646
        %3648 = vrot.lane.b32.xlu0 %v2883, 64
        %v3649 = vpop.permute.xlu0 %3648
        %3650 = vrot.lane.b32.xlu0 %v2888, 64
        %v3651 = vpop.permute.xlu0 %3650
        %3652 = vrot.lane.b32.xlu0 %v2893, 64
        %v3653 = vpop.permute.xlu0 %3652
        %3654 = vrot.lane.b32.xlu0 %v2898, 64
        %v3655 = vpop.permute.xlu0 %3654
        %3656 = vrot.lane.b32.xlu0 %v2903, 64
        %v3657 = vpop.permute.xlu0 %3656
        %3658 = vrot.lane.b32.xlu0 %v2908, 64
        %v3659 = vpop.permute.xlu0 %3658
        %3660 = vrot.lane.b32.xlu0 %v2913, 64
        %v3661 = vpop.permute.xlu0 %3660
        %3662 = vrot.lane.b32.xlu0 %v2918, 64
        %v3663 = vpop.permute.xlu0 %3662
        %3664 = vrot.lane.b32.xlu0 %v2923, 64
        %v3665 = vpop.permute.xlu0 %3664
        %3666 = vrot.lane.b32.xlu0 %v2928, 64
        %v3667 = vpop.permute.xlu0 %3666
        %3668 = vrot.lane.b32.xlu0 %v2933, 64
        %v3669 = vpop.permute.xlu0 %3668
        %3670 = vrot.lane.b32.xlu0 %v2938, 64
        %v3671 = vpop.permute.xlu0 %3670
        %3672 = vrot.lane.b32.xlu0 %v2943, 64
        %v3673 = vpop.permute.xlu0 %3672
        %3674 = vrot.lane.b32.xlu0 %v2948, 64
        %v3675 = vpop.permute.xlu0 %3674
        %3676 = vrot.lane.b32.xlu0 %v2953, 64
        %v3677 = vpop.permute.xlu0 %3676
        %3710 = vrot.lane.b32.xlu0 %v3488, 96
        %v3711 = vpop.permute.xlu0 %3710
        %3712 = vrot.lane.b32.xlu0 %v3493, 96
        %v3713 = vpop.permute.xlu0 %3712
        %3714 = vrot.lane.b32.xlu0 %v3498, 96
        %v3715 = vpop.permute.xlu0 %3714
        %3716 = vrot.lane.b32.xlu0 %v3503, 96
        %v3717 = vpop.permute.xlu0 %3716
        %3718 = vrot.lane.b32.xlu0 %v3508, 96
        %v3719 = vpop.permute.xlu0 %3718
        %3720 = vrot.lane.b32.xlu0 %v3513, 96
        %v3721 = vpop.permute.xlu0 %3720
        %3722 = vrot.lane.b32.xlu0 %v3518, 96
        %v3723 = vpop.permute.xlu0 %3722
        %3724 = vrot.lane.b32.xlu0 %v3523, 96
        %v3725 = vpop.permute.xlu0 %3724
        %3726 = vrot.lane.b32.xlu0 %v3528, 96
        %v3727 = vpop.permute.xlu0 %3726
        %3728 = vrot.lane.b32.xlu0 %v3533, 96
        %v3729 = vpop.permute.xlu0 %3728
        %3730 = vrot.lane.b32.xlu0 %v3538, 96
        %v3731 = vpop.permute.xlu0 %3730
        %3732 = vrot.lane.b32.xlu0 %v3543, 96
        %v3733 = vpop.permute.xlu0 %3732
        %3734 = vrot.lane.b32.xlu0 %v3548, 96
        %v3735 = vpop.permute.xlu0 %3734
        %3736 = vrot.lane.b32.xlu0 %v3553, 96
        %v3737 = vpop.permute.xlu0 %3736
        %3738 = vrot.lane.b32.xlu0 %v3558, 96
        %v3739 = vpop.permute.xlu0 %3738
        %3740 = vrot.lane.b32.xlu0 %v3563, 96
        %v3741 = vpop.permute.xlu0 %3740
        %v3758 = vsel %vm1189, %v1642, %v3583
        %v3759 = vsel %vm1189, %v1647, %v3585
        %v3760 = vsel %vm1189, %v1652, %v3587
        %v3761 = vsel %vm1189, %v1657, %v3589
        %v3762 = vsel %vm1189, %v1662, %v3591
        %v3763 = vsel %vm1189, %v1667, %v3593
        %v3764 = vsel %vm1189, %v1672, %v3595
        %v3765 = vsel %vm1189, %v1677, %v3597
        %v3766 = vsel %vm1189, %v1682, %v3599
        %v3767 = vsel %vm1189, %v1687, %v3601
        %v3768 = vsel %vm1189, %v1692, %v3603
        %v3769 = vsel %vm1189, %v1697, %v3605
        %v3770 = vsel %vm1189, %v1702, %v3607
        %v3771 = vsel %vm1189, %v1707, %v3609
        %v3772 = vsel %vm1189, %v1712, %v3611
        %v3773 = vsel %vm1189, %v1717, %v3613
        %vm3774 = vcmask 523264
        %v3775 = vsel %vm3774, %v3758, %v3647
        %v3776 = vsel %vm3774, %v3759, %v3649
        %v3777 = vsel %vm3774, %v3760, %v3651
        %v3778 = vsel %vm3774, %v3761, %v3653
        %v3779 = vsel %vm3774, %v3762, %v3655
        %v3780 = vsel %vm3774, %v3763, %v3657
        %v3781 = vsel %vm3774, %v3764, %v3659
        %v3782 = vsel %vm3774, %v3765, %v3661
        %v3783 = vsel %vm3774, %v3766, %v3663
        %v3784 = vsel %vm3774, %v3767, %v3665
        %v3785 = vsel %vm3774, %v3768, %v3667
        %v3786 = vsel %vm3774, %v3769, %v3669
        %v3787 = vsel %vm3774, %v3770, %v3671
        %v3788 = vsel %vm3774, %v3771, %v3673
        %v3789 = vsel %vm3774, %v3772, %v3675
        %v3790 = vsel %vm3774, %v3773, %v3677
        %vm3791 = vcmask 785408
        %v3792 = vsel %vm3791, %v3775, %v3711
        %v3793 = vsel %vm3791, %v3776, %v3713
        %v3794 = vsel %vm3791, %v3777, %v3715
        %v3795 = vsel %vm3791, %v3778, %v3717
        %v3796 = vsel %vm3791, %v3779, %v3719
        %v3797 = vsel %vm3791, %v3780, %v3721
        %v3798 = vsel %vm3791, %v3781, %v3723
        %v3799 = vsel %vm3791, %v3782, %v3725
        %v3800 = vsel %vm3791, %v3783, %v3727
        %v3801 = vsel %vm3791, %v3784, %v3729
        %v3802 = vsel %vm3791, %v3785, %v3731
        %v3803 = vsel %vm3791, %v3786, %v3733
        %v3804 = vsel %vm3791, %v3787, %v3735
        %v3805 = vsel %vm3791, %v3788, %v3737
        %v3806 = vsel %vm3791, %v3789, %v3739
        %v3807 = vsel %vm3791, %v3790, %v3741
        %v3808 = vld [vmem:[#allocation12] sm:$0xff]
        %v3809 = vld [vmem:[#allocation12 + $0x8] sm:$0xff]
        %v3810 = vld [vmem:[#allocation12 + $0x10] sm:$0xff]
        %v3811 = vld [vmem:[#allocation12 + $0x18] sm:$0xff]
        %v3812 = vld [vmem:[#allocation12 + $0x20] sm:$0xff]
        %v3813 = vld [vmem:[#allocation12 + $0x28] sm:$0xff]
        %v3814 = vld [vmem:[#allocation12 + $0x30] sm:$0xff]
        %v3815 = vld [vmem:[#allocation12 + $0x38] sm:$0xff]
        %v3816 = vld [vmem:[#allocation12 + $0x40] sm:$0xff]
        %v3817 = vld [vmem:[#allocation12 + $0x48] sm:$0xff]
        %v3818 = vld [vmem:[#allocation12 + $0x50] sm:$0xff]
        %v3819 = vld [vmem:[#allocation12 + $0x58] sm:$0xff]
        %v3820 = vld [vmem:[#allocation12 + $0x60] sm:$0xff]
        %v3821 = vld [vmem:[#allocation12 + $0x68] sm:$0xff]
        %v3822 = vld [vmem:[#allocation12 + $0x70] sm:$0xff]
        %v3823 = vld [vmem:[#allocation12 + $0x78] sm:$0xff]
        %v3824 = vld [vmem:[%s5] sm:$0x1]
        %v3826 = vlaneseq
        %v3827 = vshrl.u32 %v3826, 7
        %v3828 = vsub.s32 0, %v3827
        %v3829 = vrot.slane %v3824, %v3828
        %3831 = vmatprep.subr.mxu0 0.0
        %3832 = vmatpush1.msra.mxu0 %v3823
        %3833 = vmatprep.subr.mxu0 0.0
        %3834 = vmatpush1.msra.mxu0 %v3822
        %3835 = vmatprep.subr.mxu0 0.0
        %3836 = vmatpush1.msra.mxu0 %v3821
        %3837 = vmatprep.subr.mxu0 0.0
        %3838 = vmatpush1.msra.mxu0 %v3820
        %3839 = vmatprep.subr.mxu0 0.0
        %3840 = vmatpush1.msra.mxu0 %v3819
        %3841 = vmatprep.subr.mxu0 0.0
        %3842 = vmatpush1.msra.mxu0 %v3818
        %3843 = vmatprep.subr.mxu0 0.0
        %3844 = vmatpush1.msra.mxu0 %v3817
        %3845 = vmatprep.subr.mxu0 0.0
        %3846 = vmatpush1.msra.mxu0 %v3816
        %3847 = vmatprep.subr.mxu0 0.0
        %3848 = vmatpush1.msra.mxu0 %v3815
        %3849 = vmatprep.subr.mxu0 0.0
        %3850 = vmatpush1.msra.mxu0 %v3814
        %3851 = vmatprep.subr.mxu0 0.0
        %3852 = vmatpush1.msra.mxu0 %v3813
        %3853 = vmatprep.subr.mxu0 0.0
        %3854 = vmatpush1.msra.mxu0 %v3812
        %3855 = vmatprep.subr.mxu0 0.0
        %3856 = vmatpush1.msra.mxu0 %v3811
        %3857 = vmatprep.subr.mxu0 0.0
        %3858 = vmatpush1.msra.mxu0 %v3810
        %3859 = vmatprep.subr.mxu0 0.0
        %3860 = vmatpush1.msra.mxu0 %v3809
        %3861 = vmatprep.subr.mxu0 0.0
        %3862 = vmatpush1.msra.mxu0 %v3808
        %3863 = vmatprep.subr.mxu0 0.0
        %3864 = vmatpush2.msra.mxu0 0.0
        %3865 = vmatprep.subr.mxu0 0.0
        %3866 = vmatpush2.msra.mxu0 0.0
        %3867 = vmatprep.subr.mxu0 0.0
        %3868 = vmatpush2.msra.mxu0 0.0
        %3869 = vmatprep.subr.mxu0 0.0
        %3870 = vmatpush2.msra.mxu0 0.0
        %3871 = vmatprep.subr.mxu0 0.0
        %3872 = vmatpush2.msra.mxu0 0.0
        %3873 = vmatprep.subr.mxu0 0.0
        %3874 = vmatpush2.msra.mxu0 0.0
        %3875 = vmatprep.subr.mxu0 0.0
        %3876 = vmatpush2.msra.mxu0 0.0
        %3877 = vmatprep.subr.mxu0 0.0
        %3878 = vmatpush2.msra.mxu0 0.0
        %3879 = vmatprep.subr.mxu0 0.0
        %3880 = vmatpush2.msra.mxu0 0.0
        %3881 = vmatprep.subr.mxu0 0.0
        %3882 = vmatpush2.msra.mxu0 0.0
        %3883 = vmatprep.subr.mxu0 0.0
        %3884 = vmatpush2.msra.mxu0 0.0
        %3885 = vmatprep.subr.mxu0 0.0
        %3886 = vmatpush2.msra.mxu0 0.0
        %3887 = vmatprep.subr.mxu0 0.0
        %3888 = vmatpush2.msra.mxu0 0.0
        %3889 = vmatprep.subr.mxu0 0.0
        %3890 = vmatpush2.msra.mxu0 0.0
        %3891 = vmatprep.subr.mxu0 0.0
        %3892 = vmatpush2.msra.mxu0 0.0
        %3893 = vmatprep.subr.mxu0 0.0
        %3894 = vmatpush2.msra.mxu0 0.0
        %3895 = vmatprep.mubr.f32.mxu0 0.0
        %3896 = vmatmul.mubr.f32.gmra.mxu0 %v3792
        %v3897 = vpop.f32.mrf.mxu0
        %v3898 = vadd.f32 %v3829, %v3897
        %v3899 = vpop.f32.mrf.mxu0
        %3900 = vmatprep.mubr.f32.mxu0 0.0
        %3901 = vmatmul.mubr.f32.gmra.mxu0 %v3793
        %v3902 = vpop.f32.mrf.mxu0
        %v3903 = vadd.f32 %v3829, %v3902
        %v3904 = vpop.f32.mrf.mxu0
        %3905 = vmatprep.mubr.f32.mxu0 0.0
        %3906 = vmatmul.mubr.f32.gmra.mxu0 %v3794
        %v3907 = vpop.f32.mrf.mxu0
        %v3908 = vadd.f32 %v3829, %v3907
        %v3909 = vpop.f32.mrf.mxu0
        %3910 = vmatprep.mubr.f32.mxu0 0.0
        %3911 = vmatmul.mubr.f32.gmra.mxu0 %v3795
        %v3912 = vpop.f32.mrf.mxu0
        %v3913 = vadd.f32 %v3829, %v3912
        %v3914 = vpop.f32.mrf.mxu0
        %3915 = vmatprep.mubr.f32.mxu0 0.0
        %3916 = vmatmul.mubr.f32.gmra.mxu0 %v3796
        %v3917 = vpop.f32.mrf.mxu0
        %v3918 = vadd.f32 %v3829, %v3917
        %v3919 = vpop.f32.mrf.mxu0
        %3920 = vmatprep.mubr.f32.mxu0 0.0
        %3921 = vmatmul.mubr.f32.gmra.mxu0 %v3797
        %v3922 = vpop.f32.mrf.mxu0
        %v3923 = vadd.f32 %v3829, %v3922
        %v3924 = vpop.f32.mrf.mxu0
        %3925 = vmatprep.mubr.f32.mxu0 0.0
        %3926 = vmatmul.mubr.f32.gmra.mxu0 %v3798
        %v3927 = vpop.f32.mrf.mxu0
        %v3928 = vadd.f32 %v3829, %v3927
        %v3929 = vpop.f32.mrf.mxu0
        %3930 = vmatprep.mubr.f32.mxu0 0.0
        %3931 = vmatmul.mubr.f32.gmra.mxu0 %v3799
        %v3932 = vpop.f32.mrf.mxu0
        %v3933 = vadd.f32 %v3829, %v3932
        %v3934 = vpop.f32.mrf.mxu0
        %3935 = vmatprep.mubr.f32.mxu0 0.0
        %3936 = vmatmul.mubr.f32.gmra.mxu0 %v3800
        %v3937 = vpop.f32.mrf.mxu0
        %v3938 = vadd.f32 %v3829, %v3937
        %v3939 = vpop.f32.mrf.mxu0
        %3940 = vmatprep.mubr.f32.mxu0 0.0
        %3941 = vmatmul.mubr.f32.gmra.mxu0 %v3801
        %v3942 = vpop.f32.mrf.mxu0
        %v3943 = vadd.f32 %v3829, %v3942
        %v3944 = vpop.f32.mrf.mxu0
        %3945 = vmatprep.mubr.f32.mxu0 0.0
        %3946 = vmatmul.mubr.f32.gmra.mxu0 %v3802
        %v3947 = vpop.f32.mrf.mxu0
        %v3948 = vadd.f32 %v3829, %v3947
        %v3949 = vpop.f32.mrf.mxu0
        %3950 = vmatprep.mubr.f32.mxu0 0.0
        %3951 = vmatmul.mubr.f32.gmra.mxu0 %v3803
        %v3952 = vpop.f32.mrf.mxu0
        %v3953 = vadd.f32 %v3829, %v3952
        %v3954 = vpop.f32.mrf.mxu0
        %3955 = vmatprep.mubr.f32.mxu0 0.0
        %3956 = vmatmul.mubr.f32.gmra.mxu0 %v3804
        %v3957 = vpop.f32.mrf.mxu0
        %v3958 = vadd.f32 %v3829, %v3957
        %v3959 = vpop.f32.mrf.mxu0
        %3960 = vmatprep.mubr.f32.mxu0 0.0
        %3961 = vmatmul.mubr.f32.gmra.mxu0 %v3805
        %v3962 = vpop.f32.mrf.mxu0
        %v3963 = vadd.f32 %v3829, %v3962
        %v3964 = vpop.f32.mrf.mxu0
        %3965 = vmatprep.mubr.f32.mxu0 0.0
        %3966 = vmatmul.mubr.f32.gmra.mxu0 %v3806
        %v3967 = vpop.f32.mrf.mxu0
        %v3968 = vadd.f32 %v3829, %v3967
        %v3969 = vpop.f32.mrf.mxu0
        %3970 = vmatprep.mubr.f32.mxu0 0.0
        %3971 = vmatmul.mubr.f32.gmra.mxu0 %v3807
        %v3972 = vpop.f32.mrf.mxu0
        %v3973 = vadd.f32 %v3829, %v3972
        %v3974 = vpop.f32.mrf.mxu0
        %3975 = vdwg.mxu0
        %v3976 = vadd.f32 %v964, %v3898
        %v3977 = vadd.f32 %v965, %v3903
        %v3978 = vadd.f32 %v966, %v3908
        %v3979 = vadd.f32 %v967, %v3913
        %v3980 = vadd.f32 %v968, %v3918
        %v3981 = vadd.f32 %v969, %v3923
        %v3982 = vadd.f32 %v970, %v3928
        %v3983 = vadd.f32 %v971, %v3933
        %v3984 = vadd.f32 %v972, %v3938
        %v3985 = vadd.f32 %v973, %v3943
        %v3986 = vadd.f32 %v974, %v3948
        %v3987 = vadd.f32 %v975, %v3953
        %v3988 = vadd.f32 %v976, %v3958
        %v3989 = vadd.f32 %v977, %v3963
        %v3990 = vadd.f32 %v978, %v3968
        %v3991 = vadd.f32 %v979, %v3973
        %3992 = vadd.xlane.f32.xlu0 %v3976
        %v3993 = vpop.xlane.xlu0 %3992
        %3994 = vadd.xlane.f32.xlu0 %v3977
        %v3995 = vpop.xlane.xlu0 %3994
        %3996 = vadd.xlane.f32.xlu0 %v3978
        %v3997 = vpop.xlane.xlu0 %3996
        %3998 = vadd.xlane.f32.xlu0 %v3979
        %v3999 = vpop.xlane.xlu0 %3998
        %4000 = vadd.xlane.f32.xlu0 %v3980
        %v4001 = vpop.xlane.xlu0 %4000
        %4002 = vadd.xlane.f32.xlu0 %v3981
        %v4003 = vpop.xlane.xlu0 %4002
        %4004 = vadd.xlane.f32.xlu0 %v3982
        %v4005 = vpop.xlane.xlu0 %4004
        %4006 = vadd.xlane.f32.xlu0 %v3983
        %v4007 = vpop.xlane.xlu0 %4006
        %4008 = vadd.xlane.f32.xlu0 %v3984
        %v4009 = vpop.xlane.xlu0 %4008
        %4010 = vadd.xlane.f32.xlu0 %v3985
        %v4011 = vpop.xlane.xlu0 %4010
        %4012 = vadd.xlane.f32.xlu0 %v3986
        %v4013 = vpop.xlane.xlu0 %4012
        %4014 = vadd.xlane.f32.xlu0 %v3987
        %v4015 = vpop.xlane.xlu0 %4014
        %4016 = vadd.xlane.f32.xlu0 %v3988
        %v4017 = vpop.xlane.xlu0 %4016
        %4018 = vadd.xlane.f32.xlu0 %v3989
        %v4019 = vpop.xlane.xlu0 %4018
        %4020 = vadd.xlane.f32.xlu0 %v3990
        %v4021 = vpop.xlane.xlu0 %4020
        %4022 = vadd.xlane.f32.xlu0 %v3991
        %v4023 = vpop.xlane.xlu0 %4022
        %v4024 = vrcp.pop 128.0
        %v4025 = vmul.f32 %v3993, %v4024
        %v4026 = vmul.f32 %v3995, %v4024
        %v4027 = vmul.f32 %v3997, %v4024
        %v4028 = vmul.f32 %v3999, %v4024
        %v4029 = vmul.f32 %v4001, %v4024
        %v4030 = vmul.f32 %v4003, %v4024
        %v4031 = vmul.f32 %v4005, %v4024
        %v4032 = vmul.f32 %v4007, %v4024
        %v4033 = vmul.f32 %v4009, %v4024
        %v4034 = vmul.f32 %v4011, %v4024
        %v4035 = vmul.f32 %v4013, %v4024
        %v4036 = vmul.f32 %v4015, %v4024
        %v4037 = vmul.f32 %v4017, %v4024
        %v4038 = vmul.f32 %v4019, %v4024
        %v4039 = vmul.f32 %v4021, %v4024
        %v4040 = vmul.f32 %v4023, %v4024
        %v4041 = vsub.f32 %v3976, %v4025
        %v4042 = vsub.f32 %v3977, %v4026
        %v4043 = vsub.f32 %v3978, %v4027
        %v4044 = vsub.f32 %v3979, %v4028
        %v4045 = vsub.f32 %v3980, %v4029
        %v4046 = vsub.f32 %v3981, %v4030
        %v4047 = vsub.f32 %v3982, %v4031
        %v4048 = vsub.f32 %v3983, %v4032
        %v4049 = vsub.f32 %v3984, %v4033
        %v4050 = vsub.f32 %v3985, %v4034
        %v4051 = vsub.f32 %v3986, %v4035
        %v4052 = vsub.f32 %v3987, %v4036
        %v4053 = vsub.f32 %v3988, %v4037
        %v4054 = vsub.f32 %v3989, %v4038
        %v4055 = vsub.f32 %v3990, %v4039
        %v4056 = vsub.f32 %v3991, %v4040
        %v4057 = vmul.f32 %v4041, %v4041
        %v4058 = vmul.f32 %v4042, %v4042
        %v4059 = vmul.f32 %v4043, %v4043
        %v4060 = vmul.f32 %v4044, %v4044
        %v4061 = vmul.f32 %v4045, %v4045
        %v4062 = vmul.f32 %v4046, %v4046
        %v4063 = vmul.f32 %v4047, %v4047
        %v4064 = vmul.f32 %v4048, %v4048
        %v4065 = vmul.f32 %v4049, %v4049
        %v4066 = vmul.f32 %v4050, %v4050
        %v4067 = vmul.f32 %v4051, %v4051
        %v4068 = vmul.f32 %v4052, %v4052
        %v4069 = vmul.f32 %v4053, %v4053
        %v4070 = vmul.f32 %v4054, %v4054
        %v4071 = vmul.f32 %v4055, %v4055
        %v4072 = vmul.f32 %v4056, %v4056
        %4073 = vadd.xlane.f32.xlu0 %v4057
        %v4074 = vpop.xlane.xlu0 %4073
        %4075 = vadd.xlane.f32.xlu0 %v4058
        %v4076 = vpop.xlane.xlu0 %4075
        %4077 = vadd.xlane.f32.xlu0 %v4059
        %v4078 = vpop.xlane.xlu0 %4077
        %4079 = vadd.xlane.f32.xlu0 %v4060
        %v4080 = vpop.xlane.xlu0 %4079
        %4081 = vadd.xlane.f32.xlu0 %v4061
        %v4082 = vpop.xlane.xlu0 %4081
        %4083 = vadd.xlane.f32.xlu0 %v4062
        %v4084 = vpop.xlane.xlu0 %4083
        %4085 = vadd.xlane.f32.xlu0 %v4063
        %v4086 = vpop.xlane.xlu0 %4085
        %4087 = vadd.xlane.f32.xlu0 %v4064
        %v4088 = vpop.xlane.xlu0 %4087
        %4089 = vadd.xlane.f32.xlu0 %v4065
        %v4090 = vpop.xlane.xlu0 %4089
        %4091 = vadd.xlane.f32.xlu0 %v4066
        %v4092 = vpop.xlane.xlu0 %4091
        %4093 = vadd.xlane.f32.xlu0 %v4067
        %v4094 = vpop.xlane.xlu0 %4093
        %4095 = vadd.xlane.f32.xlu0 %v4068
        %v4096 = vpop.xlane.xlu0 %4095
        %4097 = vadd.xlane.f32.xlu0 %v4069
        %v4098 = vpop.xlane.xlu0 %4097
        %4099 = vadd.xlane.f32.xlu0 %v4070
        %v4100 = vpop.xlane.xlu0 %4099
        %4101 = vadd.xlane.f32.xlu0 %v4071
        %v4102 = vpop.xlane.xlu0 %4101
        %4103 = vadd.xlane.f32.xlu0 %v4072
        %v4104 = vpop.xlane.xlu0 %4103
        %v4105 = vmul.f32 %v4074, %v4024
        %v4106 = vmul.f32 %v4076, %v4024
        %v4107 = vmul.f32 %v4078, %v4024
        %v4108 = vmul.f32 %v4080, %v4024
        %v4109 = vmul.f32 %v4082, %v4024
        %v4110 = vmul.f32 %v4084, %v4024
        %v4111 = vmul.f32 %v4086, %v4024
        %v4112 = vmul.f32 %v4088, %v4024
        %v4113 = vmul.f32 %v4090, %v4024
        %v4114 = vmul.f32 %v4092, %v4024
        %v4115 = vmul.f32 %v4094, %v4024
        %v4116 = vmul.f32 %v4096, %v4024
        %v4117 = vmul.f32 %v4098, %v4024
        %v4118 = vmul.f32 %v4100, %v4024
        %v4119 = vmul.f32 %v4102, %v4024
        %v4120 = vmul.f32 %v4104, %v4024
        %v4121 = vadd.f32 %v4105, 1e-05
        %v4122 = vadd.f32 %v4106, 1e-05
        %v4123 = vadd.f32 %v4107, 1e-05
        %v4124 = vadd.f32 %v4108, 1e-05
        %v4125 = vadd.f32 %v4109, 1e-05
        %v4126 = vadd.f32 %v4110, 1e-05
        %v4127 = vadd.f32 %v4111, 1e-05
        %v4128 = vadd.f32 %v4112, 1e-05
        %v4129 = vadd.f32 %v4113, 1e-05
        %v4130 = vadd.f32 %v4114, 1e-05
        %v4131 = vadd.f32 %v4115, 1e-05
        %v4132 = vadd.f32 %v4116, 1e-05
        %v4133 = vadd.f32 %v4117, 1e-05
        %v4134 = vadd.f32 %v4118, 1e-05
        %v4135 = vadd.f32 %v4119, 1e-05
        %v4136 = vadd.f32 %v4120, 1e-05
        %v4137 = vrsqrt.pop %v4121
        %v4138 = vrsqrt.pop %v4122
        %v4139 = vrsqrt.pop %v4123
        %v4140 = vrsqrt.pop %v4124
        %v4141 = vrsqrt.pop %v4125
        %v4142 = vrsqrt.pop %v4126
        %v4143 = vrsqrt.pop %v4127
        %v4144 = vrsqrt.pop %v4128
        %v4145 = vrsqrt.pop %v4129
        %v4146 = vrsqrt.pop %v4130
        %v4147 = vrsqrt.pop %v4131
        %v4148 = vrsqrt.pop %v4132
        %v4149 = vrsqrt.pop %v4133
        %v4150 = vrsqrt.pop %v4134
        %v4151 = vrsqrt.pop %v4135
        %v4152 = vrsqrt.pop %v4136
        %v4153 = vmul.f32 %v4041, %v4137
        %v4154 = vmul.f32 %v4042, %v4138
        %v4155 = vmul.f32 %v4043, %v4139
        %v4156 = vmul.f32 %v4044, %v4140
        %v4157 = vmul.f32 %v4045, %v4141
        %v4158 = vmul.f32 %v4046, %v4142
        %v4159 = vmul.f32 %v4047, %v4143
        %v4160 = vmul.f32 %v4048, %v4144
        %v4161 = vmul.f32 %v4049, %v4145
        %v4162 = vmul.f32 %v4050, %v4146
        %v4163 = vmul.f32 %v4051, %v4147
        %v4164 = vmul.f32 %v4052, %v4148
        %v4165 = vmul.f32 %v4053, %v4149
        %v4166 = vmul.f32 %v4054, %v4150
        %v4167 = vmul.f32 %v4055, %v4151
        %v4168 = vmul.f32 %v4056, %v4152
        %v4169 = vld [vmem:[%s10] sm:$0x1]
        %v4171 = vlaneseq
        %v4172 = vshrl.u32 %v4171, 7
        %v4173 = vsub.s32 0, %v4172
        %v4174 = vrot.slane %v4169, %v4173
        %v4176 = vmul.f32 %v4153, %v4174
        %v4177 = vmul.f32 %v4154, %v4174
        %v4178 = vmul.f32 %v4155, %v4174
        %v4179 = vmul.f32 %v4156, %v4174
        %v4180 = vmul.f32 %v4157, %v4174
        %v4181 = vmul.f32 %v4158, %v4174
        %v4182 = vmul.f32 %v4159, %v4174
        %v4183 = vmul.f32 %v4160, %v4174
        %v4184 = vmul.f32 %v4161, %v4174
        %v4185 = vmul.f32 %v4162, %v4174
        %v4186 = vmul.f32 %v4163, %v4174
        %v4187 = vmul.f32 %v4164, %v4174
        %v4188 = vmul.f32 %v4165, %v4174
        %v4189 = vmul.f32 %v4166, %v4174
        %v4190 = vmul.f32 %v4167, %v4174
        %v4191 = vmul.f32 %v4168, %v4174
        %v4192 = vld [vmem:[%s11] sm:$0x1]
        %v4194 = vlaneseq
        %v4195 = vshrl.u32 %v4194, 7
        %v4196 = vsub.s32 0, %v4195
        %v4197 = vrot.slane %v4192, %v4196
        %v4199 = vadd.f32 %v4176, %v4197
        %v4200 = vadd.f32 %v4177, %v4197
        %v4201 = vadd.f32 %v4178, %v4197
        %v4202 = vadd.f32 %v4179, %v4197
        %v4203 = vadd.f32 %v4180, %v4197
        %v4204 = vadd.f32 %v4181, %v4197
        %v4205 = vadd.f32 %v4182, %v4197
        %v4206 = vadd.f32 %v4183, %v4197
        %v4207 = vadd.f32 %v4184, %v4197
        %v4208 = vadd.f32 %v4185, %v4197
        %v4209 = vadd.f32 %v4186, %v4197
        %v4210 = vadd.f32 %v4187, %v4197
        %v4211 = vadd.f32 %v4188, %v4197
        %v4212 = vadd.f32 %v4189, %v4197
        %v4213 = vadd.f32 %v4190, %v4197
        %v4214 = vadd.f32 %v4191, %v4197
        %v4215 = vld [vmem:[#allocation13] sm:$0xff]
        %v4216 = vld [vmem:[#allocation13 + $0x8] sm:$0xff]
        %v4217 = vld [vmem:[#allocation13 + $0x10] sm:$0xff]
        %v4218 = vld [vmem:[#allocation13 + $0x18] sm:$0xff]
        %v4219 = vld [vmem:[#allocation13 + $0x20] sm:$0xff]
        %v4220 = vld [vmem:[#allocation13 + $0x28] sm:$0xff]
        %v4221 = vld [vmem:[#allocation13 + $0x30] sm:$0xff]
        %v4222 = vld [vmem:[#allocation13 + $0x38] sm:$0xff]
        %v4223 = vld [vmem:[#allocation13 + $0x40] sm:$0xff]
        %v4224 = vld [vmem:[#allocation13 + $0x48] sm:$0xff]
        %v4225 = vld [vmem:[#allocation13 + $0x50] sm:$0xff]
        %v4226 = vld [vmem:[#allocation13 + $0x58] sm:$0xff]
        %v4227 = vld [vmem:[#allocation13 + $0x60] sm:$0xff]
        %v4228 = vld [vmem:[#allocation13 + $0x68] sm:$0xff]
        %v4229 = vld [vmem:[#allocation13 + $0x70] sm:$0xff]
        %v4230 = vld [vmem:[#allocation13 + $0x78] sm:$0xff]
        %v4231 = vld [vmem:[#allocation13 + $0x80] sm:$0xff]
        %v4232 = vld [vmem:[#allocation13 + $0x88] sm:$0xff]
        %v4233 = vld [vmem:[#allocation13 + $0x90] sm:$0xff]
        %v4234 = vld [vmem:[#allocation13 + $0x98] sm:$0xff]
        %v4235 = vld [vmem:[#allocation13 + $0xa0] sm:$0xff]
        %v4236 = vld [vmem:[#allocation13 + $0xa8] sm:$0xff]
        %v4237 = vld [vmem:[#allocation13 + $0xb0] sm:$0xff]
        %v4238 = vld [vmem:[#allocation13 + $0xb8] sm:$0xff]
        %v4239 = vld [vmem:[#allocation13 + $0xc0] sm:$0xff]
        %v4240 = vld [vmem:[#allocation13 + $0xc8] sm:$0xff]
        %v4241 = vld [vmem:[#allocation13 + $0xd0] sm:$0xff]
        %v4242 = vld [vmem:[#allocation13 + $0xd8] sm:$0xff]
        %v4243 = vld [vmem:[#allocation13 + $0xe0] sm:$0xff]
        %v4244 = vld [vmem:[#allocation13 + $0xe8] sm:$0xff]
        %v4245 = vld [vmem:[#allocation13 + $0xf0] sm:$0xff]
        %v4246 = vld [vmem:[#allocation13 + $0xf8] sm:$0xff]
        %v4247 = vld [vmem:[%s7] sm:$0x3]
        %v4249 = vlaneseq
        %v4250 = vshrl.u32 %v4249, 7
        %v4251 = vsub.s32 0, %v4250
        %v4252 = vrot.slane %v4247, %v4251
        %v4253 = vlaneseq
        %v4254 = vshrl.u32 %v4253, 7
        %v4255 = vsub.s32 1, %v4254
        %v4256 = vrot.slane %v4247, %v4255
        %4259 = vmatprep.subr.mxu0 %v4246
        %4260 = vmatpush1.msra.mxu0 %v4245
        %4261 = vmatprep.subr.mxu0 %v4244
        %4262 = vmatpush1.msra.mxu0 %v4243
        %4263 = vmatprep.subr.mxu0 %v4242
        %4264 = vmatpush1.msra.mxu0 %v4241
        %4265 = vmatprep.subr.mxu0 %v4240
        %4266 = vmatpush1.msra.mxu0 %v4239
        %4267 = vmatprep.subr.mxu0 %v4238
        %4268 = vmatpush1.msra.mxu0 %v4237
        %4269 = vmatprep.subr.mxu0 %v4236
        %4270 = vmatpush1.msra.mxu0 %v4235
        %4271 = vmatprep.subr.mxu0 %v4234
        %4272 = vmatpush1.msra.mxu0 %v4233
        %4273 = vmatprep.subr.mxu0 %v4232
        %4274 = vmatpush1.msra.mxu0 %v4231
        %4275 = vmatprep.subr.mxu0 %v4230
        %4276 = vmatpush1.msra.mxu0 %v4229
        %4277 = vmatprep.subr.mxu0 %v4228
        %4278 = vmatpush1.msra.mxu0 %v4227
        %4279 = vmatprep.subr.mxu0 %v4226
        %4280 = vmatpush1.msra.mxu0 %v4225
        %4281 = vmatprep.subr.mxu0 %v4224
        %4282 = vmatpush1.msra.mxu0 %v4223
        %4283 = vmatprep.subr.mxu0 %v4222
        %4284 = vmatpush1.msra.mxu0 %v4221
        %4285 = vmatprep.subr.mxu0 %v4220
        %4286 = vmatpush1.msra.mxu0 %v4219
        %4287 = vmatprep.subr.mxu0 %v4218
        %4288 = vmatpush1.msra.mxu0 %v4217
        %4289 = vmatprep.subr.mxu0 %v4216
        %4290 = vmatpush1.msra.mxu0 %v4215
        %4291 = vmatprep.subr.mxu0 0.0
        %4292 = vmatpush2.msra.mxu0 0.0
        %4293 = vmatprep.subr.mxu0 0.0
        %4294 = vmatpush2.msra.mxu0 0.0
        %4295 = vmatprep.subr.mxu0 0.0
        %4296 = vmatpush2.msra.mxu0 0.0
        %4297 = vmatprep.subr.mxu0 0.0
        %4298 = vmatpush2.msra.mxu0 0.0
        %4299 = vmatprep.subr.mxu0 0.0
        %4300 = vmatpush2.msra.mxu0 0.0
        %4301 = vmatprep.subr.mxu0 0.0
        %4302 = vmatpush2.msra.mxu0 0.0
        %4303 = vmatprep.subr.mxu0 0.0
        %4304 = vmatpush2.msra.mxu0 0.0
        %4305 = vmatprep.subr.mxu0 0.0
        %4306 = vmatpush2.msra.mxu0 0.0
        %4307 = vmatprep.subr.mxu0 0.0
        %4308 = vmatpush2.msra.mxu0 0.0
        %4309 = vmatprep.subr.mxu0 0.0
        %4310 = vmatpush2.msra.mxu0 0.0
        %4311 = vmatprep.subr.mxu0 0.0
        %4312 = vmatpush2.msra.mxu0 0.0
        %4313 = vmatprep.subr.mxu0 0.0
        %4314 = vmatpush2.msra.mxu0 0.0
        %4315 = vmatprep.subr.mxu0 0.0
        %4316 = vmatpush2.msra.mxu0 0.0
        %4317 = vmatprep.subr.mxu0 0.0
        %4318 = vmatpush2.msra.mxu0 0.0
        %4319 = vmatprep.subr.mxu0 0.0
        %4320 = vmatpush2.msra.mxu0 0.0
        %4321 = vmatprep.subr.mxu0 0.0
        %4322 = vmatpush2.msra.mxu0 0.0
        %4323 = vmatprep.mubr.f32.mxu0 0.0
        %4324 = vmatmul.mubr.f32.gmra.mxu0 %v4199
        %v4325 = vpop.f32.mrf.mxu0
        %v4326 = vadd.f32 %v4252, %v4325
        %v4327 = vpop.f32.mrf.mxu0
        %v4328 = vadd.f32 %v4256, %v4327
        %4329 = vmatprep.mubr.f32.mxu0 0.0
        %4330 = vmatmul.mubr.f32.gmra.mxu0 %v4200
        %v4331 = vpop.f32.mrf.mxu0
        %v4332 = vadd.f32 %v4252, %v4331
        %v4333 = vpop.f32.mrf.mxu0
        %v4334 = vadd.f32 %v4256, %v4333
        %4335 = vmatprep.mubr.f32.mxu0 0.0
        %4336 = vmatmul.mubr.f32.gmra.mxu0 %v4201
        %v4337 = vpop.f32.mrf.mxu0
        %v4338 = vadd.f32 %v4252, %v4337
        %v4339 = vpop.f32.mrf.mxu0
        %v4340 = vadd.f32 %v4256, %v4339
        %4341 = vmatprep.mubr.f32.mxu0 0.0
        %4342 = vmatmul.mubr.f32.gmra.mxu0 %v4202
        %v4343 = vpop.f32.mrf.mxu0
        %v4344 = vadd.f32 %v4252, %v4343
        %v4345 = vpop.f32.mrf.mxu0
        %v4346 = vadd.f32 %v4256, %v4345
        %4347 = vmatprep.mubr.f32.mxu0 0.0
        %4348 = vmatmul.mubr.f32.gmra.mxu0 %v4203
        %v4349 = vpop.f32.mrf.mxu0
        %v4350 = vadd.f32 %v4252, %v4349
        %v4351 = vpop.f32.mrf.mxu0
        %v4352 = vadd.f32 %v4256, %v4351
        %4353 = vmatprep.mubr.f32.mxu0 0.0
        %4354 = vmatmul.mubr.f32.gmra.mxu0 %v4204
        %v4355 = vpop.f32.mrf.mxu0
        %v4356 = vadd.f32 %v4252, %v4355
        %v4357 = vpop.f32.mrf.mxu0
        %v4358 = vadd.f32 %v4256, %v4357
        %4359 = vmatprep.mubr.f32.mxu0 0.0
        %4360 = vmatmul.mubr.f32.gmra.mxu0 %v4205
        %v4361 = vpop.f32.mrf.mxu0
        %v4362 = vadd.f32 %v4252, %v4361
        %v4363 = vpop.f32.mrf.mxu0
        %v4364 = vadd.f32 %v4256, %v4363
        %4365 = vmatprep.mubr.f32.mxu0 0.0
        %4366 = vmatmul.mubr.f32.gmra.mxu0 %v4206
        %v4367 = vpop.f32.mrf.mxu0
        %v4368 = vadd.f32 %v4252, %v4367
        %v4369 = vpop.f32.mrf.mxu0
        %v4370 = vadd.f32 %v4256, %v4369
        %4371 = vmatprep.mubr.f32.mxu0 0.0
        %4372 = vmatmul.mubr.f32.gmra.mxu0 %v4207
        %v4373 = vpop.f32.mrf.mxu0
        %v4374 = vadd.f32 %v4252, %v4373
        %v4375 = vpop.f32.mrf.mxu0
        %v4376 = vadd.f32 %v4256, %v4375
        %4377 = vmatprep.mubr.f32.mxu0 0.0
        %4378 = vmatmul.mubr.f32.gmra.mxu0 %v4208
        %v4379 = vpop.f32.mrf.mxu0
        %v4380 = vadd.f32 %v4252, %v4379
        %v4381 = vpop.f32.mrf.mxu0
        %v4382 = vadd.f32 %v4256, %v4381
        %4383 = vmatprep.mubr.f32.mxu0 0.0
        %4384 = vmatmul.mubr.f32.gmra.mxu0 %v4209
        %v4385 = vpop.f32.mrf.mxu0
        %v4386 = vadd.f32 %v4252, %v4385
        %v4387 = vpop.f32.mrf.mxu0
        %v4388 = vadd.f32 %v4256, %v4387
        %4389 = vmatprep.mubr.f32.mxu0 0.0
        %4390 = vmatmul.mubr.f32.gmra.mxu0 %v4210
        %v4391 = vpop.f32.mrf.mxu0
        %v4392 = vadd.f32 %v4252, %v4391
        %v4393 = vpop.f32.mrf.mxu0
        %v4394 = vadd.f32 %v4256, %v4393
        %4395 = vmatprep.mubr.f32.mxu0 0.0
        %4396 = vmatmul.mubr.f32.gmra.mxu0 %v4211
        %v4397 = vpop.f32.mrf.mxu0
        %v4398 = vadd.f32 %v4252, %v4397
        %v4399 = vpop.f32.mrf.mxu0
        %v4400 = vadd.f32 %v4256, %v4399
        %4401 = vmatprep.mubr.f32.mxu0 0.0
        %4402 = vmatmul.mubr.f32.gmra.mxu0 %v4212
        %v4403 = vpop.f32.mrf.mxu0
        %v4404 = vadd.f32 %v4252, %v4403
        %v4405 = vpop.f32.mrf.mxu0
        %v4406 = vadd.f32 %v4256, %v4405
        %4407 = vmatprep.mubr.f32.mxu0 0.0
        %4408 = vmatmul.mubr.f32.gmra.mxu0 %v4213
        %v4409 = vpop.f32.mrf.mxu0
        %v4410 = vadd.f32 %v4252, %v4409
        %v4411 = vpop.f32.mrf.mxu0
        %v4412 = vadd.f32 %v4256, %v4411
        %4413 = vmatprep.mubr.f32.mxu0 0.0
        %4414 = vmatmul.mubr.f32.gmra.mxu0 %v4214
        %v4415 = vpop.f32.mrf.mxu0
        %v4416 = vadd.f32 %v4252, %v4415
        %v4417 = vpop.f32.mrf.mxu0
        %v4418 = vadd.f32 %v4256, %v4417
        %4419 = vdwg.mxu0
        %v4420 = vmax.f32 %v4326, 0.0
        %v4421 = vmax.f32 %v4328, 0.0
        %v4422 = vmax.f32 %v4332, 0.0
        %v4423 = vmax.f32 %v4334, 0.0
        %v4424 = vmax.f32 %v4338, 0.0
        %v4425 = vmax.f32 %v4340, 0.0
        %v4426 = vmax.f32 %v4344, 0.0
        %v4427 = vmax.f32 %v4346, 0.0
        %v4428 = vmax.f32 %v4350, 0.0
        %v4429 = vmax.f32 %v4352, 0.0
        %v4430 = vmax.f32 %v4356, 0.0
        %v4431 = vmax.f32 %v4358, 0.0
        %v4432 = vmax.f32 %v4362, 0.0
        %v4433 = vmax.f32 %v4364, 0.0
        %v4434 = vmax.f32 %v4368, 0.0
        %v4435 = vmax.f32 %v4370, 0.0
        %v4436 = vmax.f32 %v4374, 0.0
        %v4437 = vmax.f32 %v4376, 0.0
        %v4438 = vmax.f32 %v4380, 0.0
        %v4439 = vmax.f32 %v4382, 0.0
        %v4440 = vmax.f32 %v4386, 0.0
        %v4441 = vmax.f32 %v4388, 0.0
        %v4442 = vmax.f32 %v4392, 0.0
        %v4443 = vmax.f32 %v4394, 0.0
        %v4444 = vmax.f32 %v4398, 0.0
        %v4445 = vmax.f32 %v4400, 0.0
        %v4446 = vmax.f32 %v4404, 0.0
        %v4447 = vmax.f32 %v4406, 0.0
        %v4448 = vmax.f32 %v4410, 0.0
        %v4449 = vmax.f32 %v4412, 0.0
        %v4450 = vmax.f32 %v4416, 0.0
        %v4451 = vmax.f32 %v4418, 0.0
        %v4452 = vld [vmem:[#allocation15] sm:$0xff]
        %v4453 = vld [vmem:[#allocation15 + $0x8] sm:$0xff]
        %v4454 = vld [vmem:[#allocation15 + $0x10] sm:$0xff]
        %v4455 = vld [vmem:[#allocation15 + $0x18] sm:$0xff]
        %v4456 = vld [vmem:[#allocation15 + $0x20] sm:$0xff]
        %v4457 = vld [vmem:[#allocation15 + $0x28] sm:$0xff]
        %v4458 = vld [vmem:[#allocation15 + $0x30] sm:$0xff]
        %v4459 = vld [vmem:[#allocation15 + $0x38] sm:$0xff]
        %v4460 = vld [vmem:[#allocation15 + $0x40] sm:$0xff]
        %v4461 = vld [vmem:[#allocation15 + $0x48] sm:$0xff]
        %v4462 = vld [vmem:[#allocation15 + $0x50] sm:$0xff]
        %v4463 = vld [vmem:[#allocation15 + $0x58] sm:$0xff]
        %v4464 = vld [vmem:[#allocation15 + $0x60] sm:$0xff]
        %v4465 = vld [vmem:[#allocation15 + $0x68] sm:$0xff]
        %v4466 = vld [vmem:[#allocation15 + $0x70] sm:$0xff]
        %v4467 = vld [vmem:[#allocation15 + $0x78] sm:$0xff]
        %v4468 = vld [vmem:[#allocation15 + $0x80] sm:$0xff]
        %v4469 = vld [vmem:[#allocation15 + $0x88] sm:$0xff]
        %v4470 = vld [vmem:[#allocation15 + $0x90] sm:$0xff]
        %v4471 = vld [vmem:[#allocation15 + $0x98] sm:$0xff]
        %v4472 = vld [vmem:[#allocation15 + $0xa0] sm:$0xff]
        %v4473 = vld [vmem:[#allocation15 + $0xa8] sm:$0xff]
        %v4474 = vld [vmem:[#allocation15 + $0xb0] sm:$0xff]
        %v4475 = vld [vmem:[#allocation15 + $0xb8] sm:$0xff]
        %v4476 = vld [vmem:[#allocation15 + $0xc0] sm:$0xff]
        %v4477 = vld [vmem:[#allocation15 + $0xc8] sm:$0xff]
        %v4478 = vld [vmem:[#allocation15 + $0xd0] sm:$0xff]
        %v4479 = vld [vmem:[#allocation15 + $0xd8] sm:$0xff]
        %v4480 = vld [vmem:[#allocation15 + $0xe0] sm:$0xff]
        %v4481 = vld [vmem:[#allocation15 + $0xe8] sm:$0xff]
        %v4482 = vld [vmem:[#allocation15 + $0xf0] sm:$0xff]
        %v4483 = vld [vmem:[#allocation15 + $0xf8] sm:$0xff]
        %v4484 = vld [vmem:[%s9] sm:$0x1]
        %v4486 = vlaneseq
        %v4487 = vshrl.u32 %v4486, 7
        %v4488 = vsub.s32 0, %v4487
        %v4489 = vrot.slane %v4484, %v4488
        %4491 = vmatprep.subr.mxu0 0.0
        %4492 = vmatpush1.msra.mxu0 %v4467
        %4493 = vmatprep.subr.mxu0 0.0
        %4494 = vmatpush1.msra.mxu0 %v4466
        %4495 = vmatprep.subr.mxu0 0.0
        %4496 = vmatpush1.msra.mxu0 %v4465
        %4497 = vmatprep.subr.mxu0 0.0
        %4498 = vmatpush1.msra.mxu0 %v4464
        %4499 = vmatprep.subr.mxu0 0.0
        %4500 = vmatpush1.msra.mxu0 %v4463
        %4501 = vmatprep.subr.mxu0 0.0
        %4502 = vmatpush1.msra.mxu0 %v4462
        %4503 = vmatprep.subr.mxu0 0.0
        %4504 = vmatpush1.msra.mxu0 %v4461
        %4505 = vmatprep.subr.mxu0 0.0
        %4506 = vmatpush1.msra.mxu0 %v4460
        %4507 = vmatprep.subr.mxu0 0.0
        %4508 = vmatpush1.msra.mxu0 %v4459
        %4509 = vmatprep.subr.mxu0 0.0
        %4510 = vmatpush1.msra.mxu0 %v4458
        %4511 = vmatprep.subr.mxu0 0.0
        %4512 = vmatpush1.msra.mxu0 %v4457
        %4513 = vmatprep.subr.mxu0 0.0
        %4514 = vmatpush1.msra.mxu0 %v4456
        %4515 = vmatprep.subr.mxu0 0.0
        %4516 = vmatpush1.msra.mxu0 %v4455
        %4517 = vmatprep.subr.mxu0 0.0
        %4518 = vmatpush1.msra.mxu0 %v4454
        %4519 = vmatprep.subr.mxu0 0.0
        %4520 = vmatpush1.msra.mxu0 %v4453
        %4521 = vmatprep.subr.mxu0 0.0
        %4522 = vmatpush1.msra.mxu0 %v4452
        %4523 = vmatprep.subr.mxu0 0.0
        %4524 = vmatpush2.msra.mxu0 %v4483
        %4525 = vmatprep.subr.mxu0 0.0
        %4526 = vmatpush2.msra.mxu0 %v4482
        %4527 = vmatprep.subr.mxu0 0.0
        %4528 = vmatpush2.msra.mxu0 %v4481
        %4529 = vmatprep.subr.mxu0 0.0
        %4530 = vmatpush2.msra.mxu0 %v4480
        %4531 = vmatprep.subr.mxu0 0.0
        %4532 = vmatpush2.msra.mxu0 %v4479
        %4533 = vmatprep.subr.mxu0 0.0
        %4534 = vmatpush2.msra.mxu0 %v4478
        %4535 = vmatprep.subr.mxu0 0.0
        %4536 = vmatpush2.msra.mxu0 %v4477
        %4537 = vmatprep.subr.mxu0 0.0
        %4538 = vmatpush2.msra.mxu0 %v4476
        %4539 = vmatprep.subr.mxu0 0.0
        %4540 = vmatpush2.msra.mxu0 %v4475
        %4541 = vmatprep.subr.mxu0 0.0
        %4542 = vmatpush2.msra.mxu0 %v4474
        %4543 = vmatprep.subr.mxu0 0.0
        %4544 = vmatpush2.msra.mxu0 %v4473
        %4545 = vmatprep.subr.mxu0 0.0
        %4546 = vmatpush2.msra.mxu0 %v4472
        %4547 = vmatprep.subr.mxu0 0.0
        %4548 = vmatpush2.msra.mxu0 %v4471
        %4549 = vmatprep.subr.mxu0 0.0
        %4550 = vmatpush2.msra.mxu0 %v4470
        %4551 = vmatprep.subr.mxu0 0.0
        %4552 = vmatpush2.msra.mxu0 %v4469
        %4553 = vmatprep.subr.mxu0 0.0
        %4554 = vmatpush2.msra.mxu0 %v4468
        %4555 = vmatprep.mubr.f32.mxu0 %v4421
        %4556 = vmatmul.mubr.f32.gmra.mxu0 %v4420
        %v4557 = vpop.f32.mrf.mxu0
        %v4558 = vadd.f32 %v4489, %v4557
        %v4559 = vpop.f32.mrf.mxu0
        %4560 = vmatprep.mubr.f32.mxu0 %v4423
        %4561 = vmatmul.mubr.f32.gmra.mxu0 %v4422
        %v4562 = vpop.f32.mrf.mxu0
        %v4563 = vadd.f32 %v4489, %v4562
        %v4564 = vpop.f32.mrf.mxu0
        %4565 = vmatprep.mubr.f32.mxu0 %v4425
        %4566 = vmatmul.mubr.f32.gmra.mxu0 %v4424
        %v4567 = vpop.f32.mrf.mxu0
        %v4568 = vadd.f32 %v4489, %v4567
        %v4569 = vpop.f32.mrf.mxu0
        %4570 = vmatprep.mubr.f32.mxu0 %v4427
        %4571 = vmatmul.mubr.f32.gmra.mxu0 %v4426
        %v4572 = vpop.f32.mrf.mxu0
        %v4573 = vadd.f32 %v4489, %v4572
        %v4574 = vpop.f32.mrf.mxu0
        %4575 = vmatprep.mubr.f32.mxu0 %v4429
        %4576 = vmatmul.mubr.f32.gmra.mxu0 %v4428
        %v4577 = vpop.f32.mrf.mxu0
        %v4578 = vadd.f32 %v4489, %v4577
        %v4579 = vpop.f32.mrf.mxu0
        %4580 = vmatprep.mubr.f32.mxu0 %v4431
        %4581 = vmatmul.mubr.f32.gmra.mxu0 %v4430
        %v4582 = vpop.f32.mrf.mxu0
        %v4583 = vadd.f32 %v4489, %v4582
        %v4584 = vpop.f32.mrf.mxu0
        %4585 = vmatprep.mubr.f32.mxu0 %v4433
        %4586 = vmatmul.mubr.f32.gmra.mxu0 %v4432
        %v4587 = vpop.f32.mrf.mxu0
        %v4588 = vadd.f32 %v4489, %v4587
        %v4589 = vpop.f32.mrf.mxu0
        %4590 = vmatprep.mubr.f32.mxu0 %v4435
        %4591 = vmatmul.mubr.f32.gmra.mxu0 %v4434
        %v4592 = vpop.f32.mrf.mxu0
        %v4593 = vadd.f32 %v4489, %v4592
        %v4594 = vpop.f32.mrf.mxu0
        %4595 = vmatprep.mubr.f32.mxu0 %v4437
        %4596 = vmatmul.mubr.f32.gmra.mxu0 %v4436
        %v4597 = vpop.f32.mrf.mxu0
        %v4598 = vadd.f32 %v4489, %v4597
        %v4599 = vpop.f32.mrf.mxu0
        %4600 = vmatprep.mubr.f32.mxu0 %v4439
        %4601 = vmatmul.mubr.f32.gmra.mxu0 %v4438
        %v4602 = vpop.f32.mrf.mxu0
        %v4603 = vadd.f32 %v4489, %v4602
        %v4604 = vpop.f32.mrf.mxu0
        %4605 = vmatprep.mubr.f32.mxu0 %v4441
        %4606 = vmatmul.mubr.f32.gmra.mxu0 %v4440
        %v4607 = vpop.f32.mrf.mxu0
        %v4608 = vadd.f32 %v4489, %v4607
        %v4609 = vpop.f32.mrf.mxu0
        %4610 = vmatprep.mubr.f32.mxu0 %v4443
        %4611 = vmatmul.mubr.f32.gmra.mxu0 %v4442
        %v4612 = vpop.f32.mrf.mxu0
        %v4613 = vadd.f32 %v4489, %v4612
        %v4614 = vpop.f32.mrf.mxu0
        %4615 = vmatprep.mubr.f32.mxu0 %v4445
        %4616 = vmatmul.mubr.f32.gmra.mxu0 %v4444
        %v4617 = vpop.f32.mrf.mxu0
        %v4618 = vadd.f32 %v4489, %v4617
        %v4619 = vpop.f32.mrf.mxu0
        %4620 = vmatprep.mubr.f32.mxu0 %v4447
        %4621 = vmatmul.mubr.f32.gmra.mxu0 %v4446
        %v4622 = vpop.f32.mrf.mxu0
        %v4623 = vadd.f32 %v4489, %v4622
        %v4624 = vpop.f32.mrf.mxu0
        %4625 = vmatprep.mubr.f32.mxu0 %v4449
        %4626 = vmatmul.mubr.f32.gmra.mxu0 %v4448
        %v4627 = vpop.f32.mrf.mxu0
        %v4628 = vadd.f32 %v4489, %v4627
        %v4629 = vpop.f32.mrf.mxu0
        %4630 = vmatprep.mubr.f32.mxu0 %v4451
        %4631 = vmatmul.mubr.f32.gmra.mxu0 %v4450
        %v4632 = vpop.f32.mrf.mxu0
        %v4633 = vadd.f32 %v4489, %v4632
        %v4634 = vpop.f32.mrf.mxu0
        %4635 = vdwg.mxu0
        %v4636 = vadd.f32 %v4199, %v4558
        %v4637 = vadd.f32 %v4200, %v4563
        %v4638 = vadd.f32 %v4201, %v4568
        %v4639 = vadd.f32 %v4202, %v4573
        %v4640 = vadd.f32 %v4203, %v4578
        %v4641 = vadd.f32 %v4204, %v4583
        %v4642 = vadd.f32 %v4205, %v4588
        %v4643 = vadd.f32 %v4206, %v4593
        %v4644 = vadd.f32 %v4207, %v4598
        %v4645 = vadd.f32 %v4208, %v4603
        %v4646 = vadd.f32 %v4209, %v4608
        %v4647 = vadd.f32 %v4210, %v4613
        %v4648 = vadd.f32 %v4211, %v4618
        %v4649 = vadd.f32 %v4212, %v4623
        %v4650 = vadd.f32 %v4213, %v4628
        %v4651 = vadd.f32 %v4214, %v4633
        %4652 = vadd.xlane.f32.xlu0 %v4636
        %v4653 = vpop.xlane.xlu0 %4652
        %4654 = vadd.xlane.f32.xlu0 %v4637
        %v4655 = vpop.xlane.xlu0 %4654
        %4656 = vadd.xlane.f32.xlu0 %v4638
        %v4657 = vpop.xlane.xlu0 %4656
        %4658 = vadd.xlane.f32.xlu0 %v4639
        %v4659 = vpop.xlane.xlu0 %4658
        %4660 = vadd.xlane.f32.xlu0 %v4640
        %v4661 = vpop.xlane.xlu0 %4660
        %4662 = vadd.xlane.f32.xlu0 %v4641
        %v4663 = vpop.xlane.xlu0 %4662
        %4664 = vadd.xlane.f32.xlu0 %v4642
        %v4665 = vpop.xlane.xlu0 %4664
        %4666 = vadd.xlane.f32.xlu0 %v4643
        %v4667 = vpop.xlane.xlu0 %4666
        %4668 = vadd.xlane.f32.xlu0 %v4644
        %v4669 = vpop.xlane.xlu0 %4668
        %4670 = vadd.xlane.f32.xlu0 %v4645
        %v4671 = vpop.xlane.xlu0 %4670
        %4672 = vadd.xlane.f32.xlu0 %v4646
        %v4673 = vpop.xlane.xlu0 %4672
        %4674 = vadd.xlane.f32.xlu0 %v4647
        %v4675 = vpop.xlane.xlu0 %4674
        %4676 = vadd.xlane.f32.xlu0 %v4648
        %v4677 = vpop.xlane.xlu0 %4676
        %4678 = vadd.xlane.f32.xlu0 %v4649
        %v4679 = vpop.xlane.xlu0 %4678
        %4680 = vadd.xlane.f32.xlu0 %v4650
        %v4681 = vpop.xlane.xlu0 %4680
        %4682 = vadd.xlane.f32.xlu0 %v4651
        %v4683 = vpop.xlane.xlu0 %4682
        %v4684 = vmul.f32 %v4653, %v4024
        %v4685 = vmul.f32 %v4655, %v4024
        %v4686 = vmul.f32 %v4657, %v4024
        %v4687 = vmul.f32 %v4659, %v4024
        %v4688 = vmul.f32 %v4661, %v4024
        %v4689 = vmul.f32 %v4663, %v4024
        %v4690 = vmul.f32 %v4665, %v4024
        %v4691 = vmul.f32 %v4667, %v4024
        %v4692 = vmul.f32 %v4669, %v4024
        %v4693 = vmul.f32 %v4671, %v4024
        %v4694 = vmul.f32 %v4673, %v4024
        %v4695 = vmul.f32 %v4675, %v4024
        %v4696 = vmul.f32 %v4677, %v4024
        %v4697 = vmul.f32 %v4679, %v4024
        %v4698 = vmul.f32 %v4681, %v4024
        %v4699 = vmul.f32 %v4683, %v4024
        %v4700 = vsub.f32 %v4636, %v4684
        %v4701 = vsub.f32 %v4637, %v4685
        %v4702 = vsub.f32 %v4638, %v4686
        %v4703 = vsub.f32 %v4639, %v4687
        %v4704 = vsub.f32 %v4640, %v4688
        %v4705 = vsub.f32 %v4641, %v4689
        %v4706 = vsub.f32 %v4642, %v4690
        %v4707 = vsub.f32 %v4643, %v4691
        %v4708 = vsub.f32 %v4644, %v4692
        %v4709 = vsub.f32 %v4645, %v4693
        %v4710 = vsub.f32 %v4646, %v4694
        %v4711 = vsub.f32 %v4647, %v4695
        %v4712 = vsub.f32 %v4648, %v4696
        %v4713 = vsub.f32 %v4649, %v4697
        %v4714 = vsub.f32 %v4650, %v4698
        %v4715 = vsub.f32 %v4651, %v4699
        %v4716 = vmul.f32 %v4700, %v4700
        %v4717 = vmul.f32 %v4701, %v4701
        %v4718 = vmul.f32 %v4702, %v4702
        %v4719 = vmul.f32 %v4703, %v4703
        %v4720 = vmul.f32 %v4704, %v4704
        %v4721 = vmul.f32 %v4705, %v4705
        %v4722 = vmul.f32 %v4706, %v4706
        %v4723 = vmul.f32 %v4707, %v4707
        %v4724 = vmul.f32 %v4708, %v4708
        %v4725 = vmul.f32 %v4709, %v4709
        %v4726 = vmul.f32 %v4710, %v4710
        %v4727 = vmul.f32 %v4711, %v4711
        %v4728 = vmul.f32 %v4712, %v4712
        %v4729 = vmul.f32 %v4713, %v4713
        %v4730 = vmul.f32 %v4714, %v4714
        %v4731 = vmul.f32 %v4715, %v4715
        %4732 = vadd.xlane.f32.xlu0 %v4716
        %v4733 = vpop.xlane.xlu0 %4732
        %4734 = vadd.xlane.f32.xlu0 %v4717
        %v4735 = vpop.xlane.xlu0 %4734
        %4736 = vadd.xlane.f32.xlu0 %v4718
        %v4737 = vpop.xlane.xlu0 %4736
        %4738 = vadd.xlane.f32.xlu0 %v4719
        %v4739 = vpop.xlane.xlu0 %4738
        %4740 = vadd.xlane.f32.xlu0 %v4720
        %v4741 = vpop.xlane.xlu0 %4740
        %4742 = vadd.xlane.f32.xlu0 %v4721
        %v4743 = vpop.xlane.xlu0 %4742
        %4744 = vadd.xlane.f32.xlu0 %v4722
        %v4745 = vpop.xlane.xlu0 %4744
        %4746 = vadd.xlane.f32.xlu0 %v4723
        %v4747 = vpop.xlane.xlu0 %4746
        %4748 = vadd.xlane.f32.xlu0 %v4724
        %v4749 = vpop.xlane.xlu0 %4748
        %4750 = vadd.xlane.f32.xlu0 %v4725
        %v4751 = vpop.xlane.xlu0 %4750
        %4752 = vadd.xlane.f32.xlu0 %v4726
        %v4753 = vpop.xlane.xlu0 %4752
        %4754 = vadd.xlane.f32.xlu0 %v4727
        %v4755 = vpop.xlane.xlu0 %4754
        %4756 = vadd.xlane.f32.xlu0 %v4728
        %v4757 = vpop.xlane.xlu0 %4756
        %4758 = vadd.xlane.f32.xlu0 %v4729
        %v4759 = vpop.xlane.xlu0 %4758
        %4760 = vadd.xlane.f32.xlu0 %v4730
        %v4761 = vpop.xlane.xlu0 %4760
        %4762 = vadd.xlane.f32.xlu0 %v4731
        %v4763 = vpop.xlane.xlu0 %4762
        %v4764 = vmul.f32 %v4733, %v4024
        %v4765 = vmul.f32 %v4735, %v4024
        %v4766 = vmul.f32 %v4737, %v4024
        %v4767 = vmul.f32 %v4739, %v4024
        %v4768 = vmul.f32 %v4741, %v4024
        %v4769 = vmul.f32 %v4743, %v4024
        %v4770 = vmul.f32 %v4745, %v4024
        %v4771 = vmul.f32 %v4747, %v4024
        %v4772 = vmul.f32 %v4749, %v4024
        %v4773 = vmul.f32 %v4751, %v4024
        %v4774 = vmul.f32 %v4753, %v4024
        %v4775 = vmul.f32 %v4755, %v4024
        %v4776 = vmul.f32 %v4757, %v4024
        %v4777 = vmul.f32 %v4759, %v4024
        %v4778 = vmul.f32 %v4761, %v4024
        %v4779 = vmul.f32 %v4763, %v4024
        %v4780 = vadd.f32 %v4764, 1e-05
        %v4781 = vadd.f32 %v4765, 1e-05
        %v4782 = vadd.f32 %v4766, 1e-05
        %v4783 = vadd.f32 %v4767, 1e-05
        %v4784 = vadd.f32 %v4768, 1e-05
        %v4785 = vadd.f32 %v4769, 1e-05
        %v4786 = vadd.f32 %v4770, 1e-05
        %v4787 = vadd.f32 %v4771, 1e-05
        %v4788 = vadd.f32 %v4772, 1e-05
        %v4789 = vadd.f32 %v4773, 1e-05
        %v4790 = vadd.f32 %v4774, 1e-05
        %v4791 = vadd.f32 %v4775, 1e-05
        %v4792 = vadd.f32 %v4776, 1e-05
        %v4793 = vadd.f32 %v4777, 1e-05
        %v4794 = vadd.f32 %v4778, 1e-05
        %v4795 = vadd.f32 %v4779, 1e-05
        %v4796 = vrsqrt.pop %v4780
        %v4797 = vrsqrt.pop %v4781
        %v4798 = vrsqrt.pop %v4782
        %v4799 = vrsqrt.pop %v4783
        %v4800 = vrsqrt.pop %v4784
        %v4801 = vrsqrt.pop %v4785
        %v4802 = vrsqrt.pop %v4786
        %v4803 = vrsqrt.pop %v4787
        %v4804 = vrsqrt.pop %v4788
        %v4805 = vrsqrt.pop %v4789
        %v4806 = vrsqrt.pop %v4790
        %v4807 = vrsqrt.pop %v4791
        %v4808 = vrsqrt.pop %v4792
        %v4809 = vrsqrt.pop %v4793
        %v4810 = vrsqrt.pop %v4794
        %v4811 = vrsqrt.pop %v4795
        %v4812 = vmul.f32 %v4700, %v4796
        %v4813 = vmul.f32 %v4701, %v4797
        %v4814 = vmul.f32 %v4702, %v4798
        %v4815 = vmul.f32 %v4703, %v4799
        %v4816 = vmul.f32 %v4704, %v4800
        %v4817 = vmul.f32 %v4705, %v4801
        %v4818 = vmul.f32 %v4706, %v4802
        %v4819 = vmul.f32 %v4707, %v4803
        %v4820 = vmul.f32 %v4708, %v4804
        %v4821 = vmul.f32 %v4709, %v4805
        %v4822 = vmul.f32 %v4710, %v4806
        %v4823 = vmul.f32 %v4711, %v4807
        %v4824 = vmul.f32 %v4712, %v4808
        %v4825 = vmul.f32 %v4713, %v4809
        %v4826 = vmul.f32 %v4714, %v4810
        %v4827 = vmul.f32 %v4715, %v4811
        %v4828 = vld [vmem:[%s12] sm:$0x1]
        %v4830 = vlaneseq
        %v4831 = vshrl.u32 %v4830, 7
        %v4832 = vsub.s32 0, %v4831
        %v4833 = vrot.slane %v4828, %v4832
        %v4835 = vmul.f32 %v4812, %v4833
        %v4836 = vmul.f32 %v4813, %v4833
        %v4837 = vmul.f32 %v4814, %v4833
        %v4838 = vmul.f32 %v4815, %v4833
        %v4839 = vmul.f32 %v4816, %v4833
        %v4840 = vmul.f32 %v4817, %v4833
        %v4841 = vmul.f32 %v4818, %v4833
        %v4842 = vmul.f32 %v4819, %v4833
        %v4843 = vmul.f32 %v4820, %v4833
        %v4844 = vmul.f32 %v4821, %v4833
        %v4845 = vmul.f32 %v4822, %v4833
        %v4846 = vmul.f32 %v4823, %v4833
        %v4847 = vmul.f32 %v4824, %v4833
        %v4848 = vmul.f32 %v4825, %v4833
        %v4849 = vmul.f32 %v4826, %v4833
        %v4850 = vmul.f32 %v4827, %v4833
        %v4851 = vld [vmem:[%s13] sm:$0x1]
        %v4853 = vlaneseq
        %v4854 = vshrl.u32 %v4853, 7
        %v4855 = vsub.s32 0, %v4854
        %v4856 = vrot.slane %v4851, %v4855
        %v4858 = vadd.f32 %v4835, %v4856
        %v4859 = vadd.f32 %v4836, %v4856
        %v4860 = vadd.f32 %v4837, %v4856
        %v4861 = vadd.f32 %v4838, %v4856
        %v4862 = vadd.f32 %v4839, %v4856
        %v4863 = vadd.f32 %v4840, %v4856
        %v4864 = vadd.f32 %v4841, %v4856
        %v4865 = vadd.f32 %v4842, %v4856
        %v4866 = vadd.f32 %v4843, %v4856
        %v4867 = vadd.f32 %v4844, %v4856
        %v4868 = vadd.f32 %v4845, %v4856
        %v4869 = vadd.f32 %v4846, %v4856
        %v4870 = vadd.f32 %v4847, %v4856
        %v4871 = vadd.f32 %v4848, %v4856
        %v4872 = vadd.f32 %v4849, %v4856
        %v4873 = vadd.f32 %v4850, %v4856
        %4874 = vst [vmem:[%s586] sm:$0xff] %v4858
        %4875 = vst [vmem:[%s586 + $0x8] sm:$0xff] %v4859
        %4876 = vst [vmem:[%s586 + $0x10] sm:$0xff] %v4860
        %4877 = vst [vmem:[%s586 + $0x18] sm:$0xff] %v4861
        %4878 = vst [vmem:[%s586 + $0x20] sm:$0xff] %v4862
        %4879 = vst [vmem:[%s586 + $0x28] sm:$0xff] %v4863
        %4880 = vst [vmem:[%s586 + $0x30] sm:$0xff] %v4864
        %4881 = vst [vmem:[%s586 + $0x38] sm:$0xff] %v4865
        %4882 = vst [vmem:[%s586 + $0x40] sm:$0xff] %v4866
        %4883 = vst [vmem:[%s586 + $0x48] sm:$0xff] %v4867
        %4884 = vst [vmem:[%s586 + $0x50] sm:$0xff] %v4868
        %4885 = vst [vmem:[%s586 + $0x58] sm:$0xff] %v4869
        %4886 = vst [vmem:[%s586 + $0x60] sm:$0xff] %v4870
        %4887 = vst [vmem:[%s586 + $0x68] sm:$0xff] %v4871
        %4888 = vst [vmem:[%s586 + $0x70] sm:$0xff] %v4872
        %4889 = vst [vmem:[%s586 + $0x78] sm:$0xff] %v4873
        %s4890 = sand.u32 %s355, 1
        %s4891 = scalar_lea.sflag [#allocation6], %s4890
        %s4892 = sand.u32 %s355, 1
        %s4893 = smul.addr %s4892, 128
        %s4894 = scalar_lea.vmem [#allocation16], %s4893
        // Predicated region
        $region109: #{tpu_custom_call.1} parent=75 // pred_check
          %p4895 = pneg %p365
        $region110: #{tpu_custom_call.1} parent=75 // pred_check_branch
          %4897 = sbr.rel (%p4895) target = $region112
        $region111: #{tpu_custom_call.1} parent=75 // pred_region
          %s4898 = smul.u32 16, %s39
          %s4900 = ssub.s32 2048, 2048
          %4901 = vsyncadd %s4891, %s4900
          %s4902 = smul.addr %s38, 16
          %s4903 = sadd.s32 %s4898, %s4902
          %s4904 = smul.addr %s4903, 128
          %s4905 = scalar_lea.hbm %s14, %s4904
          %s4906 = sshll.u32 %s4894, 4
          %s4907 = int_to_ptr.vmem [resolvable:$true] %s4906
          %4912 = dma.vmem_to_hbm [thread:$0]  %s4907, 2048, %s4905, %s4891, 128, 128, 8
        $region112: #{tpu_custom_call.1} parent=75 // pred_fallthru
          _
      $region76: #{tpu_custom_call.1} parent=5 // pred_fallthru
        _
      %p4913 = scmp.le.s32.totalorder 2, %s29
      // Predicated region
      $region113: #{tpu_custom_call.1} parent=5 // pred_check
        %p4914 = pneg %p4913
      $region114: #{tpu_custom_call.1} parent=5 // pred_check_branch
        %4916 = sbr.rel (%p4914) target = $region116
      $region115: #{tpu_custom_call.1} parent=5 // pred_region
        %s4917 = ssub.s32 %s29, 2
        // Predicated region
        $region117: #{tpu_custom_call.1} parent=115 // pred_check
          %p4918 = pneg %p371
        $region118: #{tpu_custom_call.1} parent=115 // pred_check_branch
          %4920 = sbr.rel (%p4918) target = $region120
        $region119: #{tpu_custom_call.1} parent=115 // pred_region
          %s4921 = sand.u32 %s356, 1
          %s4922 = scalar_lea.sflag [#allocation6], %s4921
          %s4923 = sand.u32 %s356, 1
          %s4924 = smul.addr %s4923, 128
          %s4925 = scalar_lea.vmem [#allocation16], %s4924
          %4926 = dma.done %s4922, 2048
        $region120: #{tpu_custom_call.1} parent=115 // pred_fallthru
          _
      $region116: #{tpu_custom_call.1} parent=5 // pred_fallthru
        _
    $region6: #{tpu_custom_call.1} parent=1 // loop_footer
      %s33 = sadd.s32 1, %s29
    $region7: #{tpu_custom_call.1} parent=1 // loop_footer_branch
      %28 = sbr.rel target = $region3
    $region8: #{tpu_custom_call.1} parent=1 // loop_exit
      _
    %4927 = vsyncpa [#allocation5], 1
    %s4928 = scalar_lea.sflag [#allocation5], 1
    %4929 = vsyncpa %s4928, 1
    %4930 = vsyncpa [#allocation8], 1
    %4931 = vsyncpa [#allocation11], 1
    %4932 = vsyncpa [#allocation14], 1
    %4933 = vsyncpa [#allocation6], 1
    %s4934 = scalar_lea.sflag [#allocation6], 1
    %4935 = vsyncpa %s4934, 1

</llo_original>
